<compile_context>
chip_gen: v6e
topology: v6e:2x2x1
jax: 0.10.0
libtpu: 0.0.40
codegen_flags: <defaults>
</compile_context>

<pallas_src>
import functools
import math

import jax
import jax.numpy as jnp
from jax.experimental import pallas as pl
from jax.experimental.pallas import tpu as pltpu


# ----------------------------------------------------------------------------
# Pallas kernels: single matmul (im2col) + bias (+ residual) (+ ReLU)
# ----------------------------------------------------------------------------
def _conv_mm_kernel(x_ref, w_ref, b_ref, o_ref, *, relu):
    # x_ref: (1, T, K) bf16   w_ref: (K, Cout) bf16   b_ref: (1, Cout) f32
    acc = jnp.dot(x_ref[0], w_ref[...], preferred_element_type=jnp.float32)
    out = acc + b_ref[...]
    if relu:
        out = jnp.maximum(out, 0.0)
    o_ref[0] = out.astype(o_ref.dtype)


def _conv_mm_res_kernel(x_ref, w_ref, b_ref, r_ref, o_ref, *, relu, res_scale):
    # Same as above, plus a fused residual add: out = r + res_scale*(x@w + b)
    acc = jnp.dot(x_ref[0], w_ref[...], preferred_element_type=jnp.float32)
    out = acc + b_ref[...]
    if res_scale != 1.0:
        out = out * res_scale
    out = out + r_ref[0].astype(jnp.float32)
    if relu:
        out = jnp.maximum(out, 0.0)
    o_ref[0] = out.astype(o_ref.dtype)


def _pick_tile(hw, max_rows):
    """Largest HW row tile <= max_rows that divides HW and is a multiple of 8."""
    if hw <= max_rows:
        return hw
    for t in range(max_rows, 7, -1):
        if hw % t == 0 and t % 8 == 0:
            return t
    return hw  # fallback: whole image (full-dim block is always legal)


def conv_mm(x_nhwc, w_hwio, bias, *, relu=False, residual=None,
            res_scale=1.0, out_dtype=jnp.bfloat16, max_tile_rows=512):
    """'same' conv (stride 1) as one (HW_tile, ks*ks*Cin) x (ks*ks*Cin, Cout)
    MXU matmul per grid step, with bias / ReLU / residual fused in-kernel."""
    B, H, W, Cin = x_nhwc.shape
    ks = w_hwio.shape[0]
    Cout = w_hwio.shape[-1]
    HW = H * W
    K = ks * ks * Cin
    p = ks // 2

    # Wrapper-side glue (pure data movement): im2col in bf16.
    xb = x_nhwc.astype(jnp.bfloat16)
    xp = jnp.pad(xb, ((0, 0), (p, p), (p, p), (0, 0)))
    cols = [xp[:, dy:dy + H, dx:dx + W, :]
            for dy in range(ks) for dx in range(ks)]
    xcol = jnp.concatenate(cols, axis=-1).reshape(B, HW, K)     # (B, HW, K)

    wm = w_hwio.reshape(K, Cout).astype(jnp.bfloat16)           # (K, Cout)
    b2 = bias.reshape(1, Cout).astype(jnp.float32)

    T = _pick_tile(HW, max_tile_rows)
    grid = (B, HW // T)

    in_specs = [
        pl.BlockSpec((1, T, K), lambda b, t: (b, t, 0)),
        pl.BlockSpec((K, Cout), lambda b, t: (0, 0)),
        pl.BlockSpec((1, Cout), lambda b, t: (0, 0)),
    ]
    args = [xcol, wm, b2]

    if residual is not None:
        rcol = residual.reshape(B, HW, Cout)
        in_specs.append(pl.BlockSpec((1, T, Cout), lambda b, t: (b, t, 0)))
        args.append(rcol)
        kern = functools.partial(_conv_mm_res_kernel, relu=relu,
                                 res_scale=float(res_scale))
    else:
        kern = functools.partial(_conv_mm_kernel, relu=relu)

    out = pl.pallas_call(
        kern,
        out_shape=jax.ShapeDtypeStruct((B, HW, Cout), out_dtype),
        grid=grid,
        in_specs=in_specs,
        out_specs=pl.BlockSpec((1, T, Cout), lambda b, t: (b, t, 0)),
        compiler_params=pltpu.CompilerParams(
            dimension_semantics=("parallel", "parallel")),
    )(*args)
    return out.reshape(B, H, W, Cout)


# ----------------------------------------------------------------------------
# Glue op: PixelShuffle (pure permutation), PyTorch semantics in NHWC
# ----------------------------------------------------------------------------
def pixel_shuffle_nhwc(x, r):
    # out[b, h*r+i, w*r+j, c] = in[b, h, w, c*r*r + i*r + j]
    B, H, W, C = x.shape
    c = C // (r * r)
    x = x.reshape(B, H, W, c, r, r)
    x = jnp.transpose(x, (0, 1, 4, 2, 5, 3))     # (B, H, r, W, r, c)
    return x.reshape(B, H * r, W * r, c)


# ----------------------------------------------------------------------------
# Parameter init (deterministic synthetic weights; weight_norm folded exactly)
# ----------------------------------------------------------------------------
def init_params(key, in_nc, out_nc, nf, nb, upscale):
    n_convs = 3 + 2 * nb                       # head + body(2*nb) + tail + skip
    keys = iter(jax.random.split(key, 3 * n_convs))

    def wn_conv(cin, cout, ks):
        kv, kg, kb = next(keys), next(keys), next(keys)
        fan = ks * ks * cin
        v = jax.random.normal(kv, (ks, ks, cin, cout), jnp.float32) / math.sqrt(fan)
        g = 1.0 + 0.1 * jax.random.normal(kg, (cout,), jnp.float32)
        b = 0.01 * jax.random.normal(kb, (cout,), jnp.float32)
        # torch weight_norm (dim=0): w = g * v / ||v||, norm per output channel.
        nrm = jnp.sqrt(jnp.sum(v * v, axis=(0, 1, 2), keepdims=True)) + 1e-12
        w = v * (g.reshape(1, 1, 1, cout) / nrm)
        return {'w': w, 'b': b}

    nfh = nf // 2
    out_feats = upscale * upscale * out_nc
    return {
        'head': wn_conv(in_nc, nfh, 3),
        'body': [{'conv0': wn_conv(nfh, nf * 3, 3),
                  'conv1': wn_conv(nf * 3, nfh, 3)} for _ in range(nb)],
        'tail': wn_conv(nfh, out_feats, 3),
        'skip': wn_conv(in_nc, out_feats, 5),
    }


# ----------------------------------------------------------------------------
# Full WDSRNet forward
#   s = skip(x); x = head(x); x = body(x); x = tail(x); x += s
# ----------------------------------------------------------------------------
def wdsrnet_forward(params, x_nchw, *, upscale=4, res_scale=1.0):
    x = jnp.transpose(x_nchw, (0, 2, 3, 1)).astype(jnp.float32)   # NCHW -> NHWC

    # skip branch: 5x5 conv (pre-pixel-shuffle); its add is fused into tail.
    s = conv_mm(x, params['skip']['w'], params['skip']['b'],
                out_dtype=jnp.bfloat16)

    # head: 3x3 conv, no activation.
    h = conv_mm(x, params['head']['w'], params['head']['b'],
                out_dtype=jnp.bfloat16)

    # body: nb x ResNetBlock_wn = conv0 -> ReLU -> conv1, residual add fused.
    for blk in params['body']:
        t = conv_mm(h, blk['conv0']['w'], blk['conv0']['b'],
                    relu=True, out_dtype=jnp.bfloat16)
        h = conv_mm(t, blk['conv1']['w'], blk['conv1']['b'],
                    residual=h, res_scale=res_scale, out_dtype=jnp.bfloat16)

    # tail: 3x3 conv with the global skip add fused in-kernel, f32 output.
    # (PixelShuffle commutes with the add, so shuffling once afterwards is exact.)
    out = conv_mm(h, params['tail']['w'], params['tail']['b'],
                  residual=s, out_dtype=jnp.float32)

    out = pixel_shuffle_nhwc(out, upscale)
    return jnp.transpose(out, (0, 3, 1, 2))       # NHWC -> NCHW


if __name__ == "__main__":
    in_nc, out_nc, nf, nb, upscale = 3, 3, 32, 2, 4
    B, H, W = 2, 16, 16

    key = jax.random.PRNGKey(0)
    kp, kx = jax.random.split(key, 2)

    params = init_params(kp, in_nc, out_nc, nf, nb, upscale)
    x = jax.random.normal(kx, (B, in_nc, H, W), jnp.float32)

    fwd = jax.jit(functools.partial(wdsrnet_forward, upscale=upscale,
                                    res_scale=1.0))
    out = fwd(params, x)
    jax.block_until_ready(out)

    assert out.shape == (B, out_nc, H * upscale, W * upscale), out.shape
    assert out.dtype == jnp.float32
    assert bool(jnp.all(jnp.isfinite(out)))
    print("KERNEL_OK")
</pallas_src>

<mosaic_0001>
module attributes {stable_mosaic.version = 11 : i64} {
  func.func @_conv_mm_kernel(%arg0: i32, %arg1: i32, %arg2: memref<1x256x75xbf16, #tpu.memory_space<vmem>>, %arg3: memref<75x48xbf16, #tpu.memory_space<vmem>>, %arg4: memref<1x48xf32, #tpu.memory_space<vmem>>, %arg5: memref<1x256x48xbf16, #tpu.memory_space<vmem>>) attributes {dimension_semantics = [#tpu.dimension_semantics<parallel>, #tpu.dimension_semantics<parallel>], iteration_bounds = array<i64: 2, 1>, scalar_prefetch = 0 : i64, scratch_operands = 0 : i64, tpu.core_type = #tpu.core_type<tc>, window_params = [{transform_indices = @transform_0, window_bounds = array<i64: 1, 256, 75>}, {pipeline_mode = #tpu.pipeline_mode<synchronous>, transform_indices = @transform_1, window_bounds = array<i64: 75, 48>}, {pipeline_mode = #tpu.pipeline_mode<synchronous>, transform_indices = @transform_2, window_bounds = array<i64: 1, 48>}, {transform_indices = @transform_3, window_bounds = array<i64: 1, 256, 48>}]} {
    %c0 = arith.constant 0 : index
    %c0_0 = arith.constant 0 : index
    %c0_1 = arith.constant 0 : index
    %0 = vector.load %arg2[%c0, %c0_0, %c0_1] : memref<1x256x75xbf16, #tpu.memory_space<vmem>>, vector<1x256x75xbf16>
    %1 = vector.shape_cast %0 : vector<1x256x75xbf16> to vector<256x75xbf16>
    %c0_2 = arith.constant 0 : index
    %c0_3 = arith.constant 0 : index
    %2 = vector.load %arg3[%c0_2, %c0_3] : memref<75x48xbf16, #tpu.memory_space<vmem>>, vector<75x48xbf16>
    %cst = arith.constant dense<0.000000e+00> : vector<256x48xf32>
    %3 = tpu.matmul %1, %2, %cst {dimension_numbers = #tpu.dot_dimension_numbers<[1], [0], [0], [1], [0, 0, 1, 1], [], []>} : vector<256x75xbf16>, vector<75x48xbf16>, vector<256x48xf32> -> vector<256x48xf32>
    %c0_4 = arith.constant 0 : index
    %c0_5 = arith.constant 0 : index
    %4 = vector.load %arg4[%c0_4, %c0_5] : memref<1x48xf32, #tpu.memory_space<vmem>>, vector<1x48xf32>
    %5 = vector.broadcast %4 : vector<1x48xf32> to vector<256x48xf32>
    %6 = arith.addf %3, %5 : vector<256x48xf32>
    %7 = arith.truncf %6 : vector<256x48xf32> to vector<256x48xbf16>
    %c0_6 = arith.constant 0 : index
    %c0_7 = arith.constant 0 : index
    %c0_8 = arith.constant 0 : index
    %8 = vector.load %arg5[%c0_6, %c0_7, %c0_8] : memref<1x256x48xbf16, #tpu.memory_space<vmem>>, vector<1x256x48xbf16>
    %9 = vector.shape_cast %8 : vector<1x256x48xbf16> to vector<256x48xbf16>
    %10 = vector.shape_cast %7 : vector<256x48xbf16> to vector<1x256x48xbf16>
    tpu.vector_store %arg5[%c0_6, %c0_7, %c0_8], %10 {strides = array<i32>} : memref<1x256x48xbf16, #tpu.memory_space<vmem>>, vector<1x256x48xbf16>,
    return
  }
  func.func @transform_0(%arg0: i32, %arg1: i32) -> (i32, i32, i32) {
    %c0_i32 = arith.constant 0 : i32
    %c0_i32_0 = arith.constant 0 : i32
    return %arg0, %arg1, %c0_i32 : i32, i32, i32
  }
  func.func @transform_1(%arg0: i32, %arg1: i32) -> (i32, i32) {
    %c0_i32 = arith.constant 0 : i32
    %c0_i32_0 = arith.constant 0 : i32
    %c0_i32_1 = arith.constant 0 : i32
    return %c0_i32, %c0_i32_0 : i32, i32
  }
  func.func @transform_2(%arg0: i32, %arg1: i32) -> (i32, i32) {
    %c0_i32 = arith.constant 0 : i32
    %c0_i32_0 = arith.constant 0 : i32
    %c0_i32_1 = arith.constant 0 : i32
    return %c0_i32, %c0_i32_0 : i32, i32
  }
  func.func @transform_3(%arg0: i32, %arg1: i32) -> (i32, i32, i32) {
    %c0_i32 = arith.constant 0 : i32
    %c0_i32_0 = arith.constant 0 : i32
    return %arg0, %arg1, %c0_i32 : i32, i32, i32
  }
}

module attributes {stable_mosaic.version = 11 : i64} {
  func.func @_conv_mm_kernel(%arg0: i32, %arg1: i32, %arg2: memref<1x256x27xbf16, #tpu.memory_space<vmem>>, %arg3: memref<27x16xbf16, #tpu.memory_space<vmem>>, %arg4: memref<1x16xf32, #tpu.memory_space<vmem>>, %arg5: memref<1x256x16xbf16, #tpu.memory_space<vmem>>) attributes {dimension_semantics = [#tpu.dimension_semantics<parallel>, #tpu.dimension_semantics<parallel>], iteration_bounds = array<i64: 2, 1>, scalar_prefetch = 0 : i64, scratch_operands = 0 : i64, tpu.core_type = #tpu.core_type<tc>, window_params = [{transform_indices = @transform_0, window_bounds = array<i64: 1, 256, 27>}, {pipeline_mode = #tpu.pipeline_mode<synchronous>, transform_indices = @transform_1, window_bounds = array<i64: 27, 16>}, {pipeline_mode = #tpu.pipeline_mode<synchronous>, transform_indices = @transform_2, window_bounds = array<i64: 1, 16>}, {transform_indices = @transform_3, window_bounds = array<i64: 1, 256, 16>}]} {
    %c0 = arith.constant 0 : index
    %c0_0 = arith.constant 0 : index
    %c0_1 = arith.constant 0 : index
    %0 = vector.load %arg2[%c0, %c0_0, %c0_1] : memref<1x256x27xbf16, #tpu.memory_space<vmem>>, vector<1x256x27xbf16>
    %1 = vector.shape_cast %0 : vector<1x256x27xbf16> to vector<256x27xbf16>
    %c0_2 = arith.constant 0 : index
    %c0_3 = arith.constant 0 : index
    %2 = vector.load %arg3[%c0_2, %c0_3] : memref<27x16xbf16, #tpu.memory_space<vmem>>, vector<27x16xbf16>
    %cst = arith.constant dense<0.000000e+00> : vector<256x16xf32>
    %3 = tpu.matmul %1, %2, %cst {dimension_numbers = #tpu.dot_dimension_numbers<[1], [0], [0], [1], [0, 0, 1, 1], [], []>} : vector<256x27xbf16>, vector<27x16xbf16>, vector<256x16xf32> -> vector<256x16xf32>
    %c0_4 = arith.constant 0 : index
    %c0_5 = arith.constant 0 : index
    %4 = vector.load %arg4[%c0_4, %c0_5] : memref<1x16xf32, #tpu.memory_space<vmem>>, vector<1x16xf32>
    %5 = vector.broadcast %4 : vector<1x16xf32> to vector<256x16xf32>
    %6 = arith.addf %3, %5 : vector<256x16xf32>
    %7 = arith.truncf %6 : vector<256x16xf32> to vector<256x16xbf16>
    %c0_6 = arith.constant 0 : index
    %c0_7 = arith.constant 0 : index
    %c0_8 = arith.constant 0 : index
    %8 = vector.load %arg5[%c0_6, %c0_7, %c0_8] : memref<1x256x16xbf16, #tpu.memory_space<vmem>>, vector<1x256x16xbf16>
    %9 = vector.shape_cast %8 : vector<1x256x16xbf16> to vector<256x16xbf16>
    %10 = vector.shape_cast %7 : vector<256x16xbf16> to vector<1x256x16xbf16>
    tpu.vector_store %arg5[%c0_6, %c0_7, %c0_8], %10 {strides = array<i32>} : memref<1x256x16xbf16, #tpu.memory_space<vmem>>, vector<1x256x16xbf16>,
    return
  }
  func.func @transform_0(%arg0: i32, %arg1: i32) -> (i32, i32, i32) {
    %c0_i32 = arith.constant 0 : i32
    %c0_i32_0 = arith.constant 0 : i32
    return %arg0, %arg1, %c0_i32 : i32, i32, i32
  }
  func.func @transform_1(%arg0: i32, %arg1: i32) -> (i32, i32) {
    %c0_i32 = arith.constant 0 : i32
    %c0_i32_0 = arith.constant 0 : i32
    %c0_i32_1 = arith.constant 0 : i32
    return %c0_i32, %c0_i32_0 : i32, i32
  }
  func.func @transform_2(%arg0: i32, %arg1: i32) -> (i32, i32) {
    %c0_i32 = arith.constant 0 : i32
    %c0_i32_0 = arith.constant 0 : i32
    %c0_i32_1 = arith.constant 0 : i32
    return %c0_i32, %c0_i32_0 : i32, i32
  }
  func.func @transform_3(%arg0: i32, %arg1: i32) -> (i32, i32, i32) {
    %c0_i32 = arith.constant 0 : i32
    %c0_i32_0 = arith.constant 0 : i32
    return %arg0, %arg1, %c0_i32 : i32, i32, i32
  }
}

module attributes {stable_mosaic.version = 11 : i64} {
  func.func @_conv_mm_kernel(%arg0: i32, %arg1: i32, %arg2: memref<1x256x144xbf16, #tpu.memory_space<vmem>>, %arg3: memref<144x96xbf16, #tpu.memory_space<vmem>>, %arg4: memref<1x96xf32, #tpu.memory_space<vmem>>, %arg5: memref<1x256x96xbf16, #tpu.memory_space<vmem>>) attributes {dimension_semantics = [#tpu.dimension_semantics<parallel>, #tpu.dimension_semantics<parallel>], iteration_bounds = array<i64: 2, 1>, scalar_prefetch = 0 : i64, scratch_operands = 0 : i64, tpu.core_type = #tpu.core_type<tc>, window_params = [{transform_indices = @transform_0, window_bounds = array<i64: 1, 256, 144>}, {pipeline_mode = #tpu.pipeline_mode<synchronous>, transform_indices = @transform_1, window_bounds = array<i64: 144, 96>}, {pipeline_mode = #tpu.pipeline_mode<synchronous>, transform_indices = @transform_2, window_bounds = array<i64: 1, 96>}, {transform_indices = @transform_3, window_bounds = array<i64: 1, 256, 96>}]} {
    %c0 = arith.constant 0 : index
    %c0_0 = arith.constant 0 : index
    %c0_1 = arith.constant 0 : index
    %0 = vector.load %arg2[%c0, %c0_0, %c0_1] : memref<1x256x144xbf16, #tpu.memory_space<vmem>>, vector<1x256x144xbf16>
    %1 = vector.shape_cast %0 : vector<1x256x144xbf16> to vector<256x144xbf16>
    %c0_2 = arith.constant 0 : index
    %c0_3 = arith.constant 0 : index
    %2 = vector.load %arg3[%c0_2, %c0_3] : memref<144x96xbf16, #tpu.memory_space<vmem>>, vector<144x96xbf16>
    %cst = arith.constant dense<0.000000e+00> : vector<256x96xf32>
    %3 = tpu.matmul %1, %2, %cst {dimension_numbers = #tpu.dot_dimension_numbers<[1], [0], [0], [1], [0, 0, 1, 1], [], []>} : vector<256x144xbf16>, vector<144x96xbf16>, vector<256x96xf32> -> vector<256x96xf32>
    %c0_4 = arith.constant 0 : index
    %c0_5 = arith.constant 0 : index
    %4 = vector.load %arg4[%c0_4, %c0_5] : memref<1x96xf32, #tpu.memory_space<vmem>>, vector<1x96xf32>
    %5 = vector.broadcast %4 : vector<1x96xf32> to vector<256x96xf32>
    %6 = arith.addf %3, %5 : vector<256x96xf32>
    %cst_6 = arith.constant 0.000000e+00 : f32
    %7 = vector.broadcast %cst_6 : f32 to vector<256x96xf32>
    %8 = arith.maximumf %6, %7 : vector<256x96xf32>
    %9 = arith.truncf %8 : vector<256x96xf32> to vector<256x96xbf16>
    %c0_7 = arith.constant 0 : index
    %c0_8 = arith.constant 0 : index
    %c0_9 = arith.constant 0 : index
    %10 = vector.load %arg5[%c0_7, %c0_8, %c0_9] : memref<1x256x96xbf16, #tpu.memory_space<vmem>>, vector<1x256x96xbf16>
    %11 = vector.shape_cast %10 : vector<1x256x96xbf16> to vector<256x96xbf16>
    %12 = vector.shape_cast %9 : vector<256x96xbf16> to vector<1x256x96xbf16>
    tpu.vector_store %arg5[%c0_7, %c0_8, %c0_9], %12 {strides = array<i32>} : memref<1x256x96xbf16, #tpu.memory_space<vmem>>, vector<1x256x96xbf16>,
    return
  }
  func.func @transform_0(%arg0: i32, %arg1: i32) -> (i32, i32, i32) {
    %c0_i32 = arith.constant 0 : i32
    %c0_i32_0 = arith.constant 0 : i32
    return %arg0, %arg1, %c0_i32 : i32, i32, i32
  }
  func.func @transform_1(%arg0: i32, %arg1: i32) -> (i32, i32) {
    %c0_i32 = arith.constant 0 : i32
    %c0_i32_0 = arith.constant 0 : i32
    %c0_i32_1 = arith.constant 0 : i32
    return %c0_i32, %c0_i32_0 : i32, i32
  }
  func.func @transform_2(%arg0: i32, %arg1: i32) -> (i32, i32) {
    %c0_i32 = arith.constant 0 : i32
    %c0_i32_0 = arith.constant 0 : i32
    %c0_i32_1 = arith.constant 0 : i32
    return %c0_i32, %c0_i32_0 : i32, i32
  }
  func.func @transform_3(%arg0: i32, %arg1: i32) -> (i32, i32, i32) {
    %c0_i32 = arith.constant 0 : i32
    %c0_i32_0 = arith.constant 0 : i32
    return %arg0, %arg1, %c0_i32 : i32, i32, i32
  }
}

module attributes {stable_mosaic.version = 11 : i64} {
  func.func @_conv_mm_res_kernel(%arg0: i32, %arg1: i32, %arg2: memref<1x256x864xbf16, #tpu.memory_space<vmem>>, %arg3: memref<864x16xbf16, #tpu.memory_space<vmem>>, %arg4: memref<1x16xf32, #tpu.memory_space<vmem>>, %arg5: memref<1x256x16xbf16, #tpu.memory_space<vmem>>, %arg6: memref<1x256x16xbf16, #tpu.memory_space<vmem>>) attributes {dimension_semantics = [#tpu.dimension_semantics<parallel>, #tpu.dimension_semantics<parallel>], iteration_bounds = array<i64: 2, 1>, scalar_prefetch = 0 : i64, scratch_operands = 0 : i64, tpu.core_type = #tpu.core_type<tc>, window_params = [{transform_indices = @transform_0, window_bounds = array<i64: 1, 256, 864>}, {pipeline_mode = #tpu.pipeline_mode<synchronous>, transform_indices = @transform_1, window_bounds = array<i64: 864, 16>}, {pipeline_mode = #tpu.pipeline_mode<synchronous>, transform_indices = @transform_2, window_bounds = array<i64: 1, 16>}, {transform_indices = @transform_3, window_bounds = array<i64: 1, 256, 16>}, {transform_indices = @transform_4, window_bounds = array<i64: 1, 256, 16>}]} {
    %c0 = arith.constant 0 : index
    %c0_0 = arith.constant 0 : index
    %c0_1 = arith.constant 0 : index
    %0 = vector.load %arg2[%c0, %c0_0, %c0_1] : memref<1x256x864xbf16, #tpu.memory_space<vmem>>, vector<1x256x864xbf16>
    %1 = vector.shape_cast %0 : vector<1x256x864xbf16> to vector<256x864xbf16>
    %c0_2 = arith.constant 0 : index
    %c0_3 = arith.constant 0 : index
    %2 = vector.load %arg3[%c0_2, %c0_3] : memref<864x16xbf16, #tpu.memory_space<vmem>>, vector<864x16xbf16>
    %cst = arith.constant dense<0.000000e+00> : vector<256x16xf32>
    %3 = tpu.matmul %1, %2, %cst {dimension_numbers = #tpu.dot_dimension_numbers<[1], [0], [0], [1], [0, 0, 1, 1], [], []>} : vector<256x864xbf16>, vector<864x16xbf16>, vector<256x16xf32> -> vector<256x16xf32>
    %c0_4 = arith.constant 0 : index
    %c0_5 = arith.constant 0 : index
    %4 = vector.load %arg4[%c0_4, %c0_5] : memref<1x16xf32, #tpu.memory_space<vmem>>, vector<1x16xf32>
    %5 = vector.broadcast %4 : vector<1x16xf32> to vector<256x16xf32>
    %6 = arith.addf %3, %5 : vector<256x16xf32>
    %c0_6 = arith.constant 0 : index
    %c0_7 = arith.constant 0 : index
    %c0_8 = arith.constant 0 : index
    %7 = vector.load %arg5[%c0_6, %c0_7, %c0_8] : memref<1x256x16xbf16, #tpu.memory_space<vmem>>, vector<1x256x16xbf16>
    %8 = vector.shape_cast %7 : vector<1x256x16xbf16> to vector<256x16xbf16>
    %9 = arith.extf %8 : vector<256x16xbf16> to vector<256x16xf32>
    %10 = arith.addf %6, %9 : vector<256x16xf32>
    %11 = arith.truncf %10 : vector<256x16xf32> to vector<256x16xbf16>
    %c0_9 = arith.constant 0 : index
    %c0_10 = arith.constant 0 : index
    %c0_11 = arith.constant 0 : index
    %12 = vector.load %arg6[%c0_9, %c0_10, %c0_11] : memref<1x256x16xbf16, #tpu.memory_space<vmem>>, vector<1x256x16xbf16>
    %13 = vector.shape_cast %12 : vector<1x256x16xbf16> to vector<256x16xbf16>
    %14 = vector.shape_cast %11 : vector<256x16xbf16> to vector<1x256x16xbf16>
    tpu.vector_store %arg6[%c0_9, %c0_10, %c0_11], %14 {strides = array<i32>} : memref<1x256x16xbf16, #tpu.memory_space<vmem>>, vector<1x256x16xbf16>,
    return
  }
  func.func @transform_0(%arg0: i32, %arg1: i32) -> (i32, i32, i32) {
    %c0_i32 = arith.constant 0 : i32
    %c0_i32_0 = arith.constant 0 : i32
    return %arg0, %arg1, %c0_i32 : i32, i32, i32
  }
  func.func @transform_1(%arg0: i32, %arg1: i32) -> (i32, i32) {
    %c0_i32 = arith.constant 0 : i32
    %c0_i32_0 = arith.constant 0 : i32
    %c0_i32_1 = arith.constant 0 : i32
    return %c0_i32, %c0_i32_0 : i32, i32
  }
  func.func @transform_2(%arg0: i32, %arg1: i32) -> (i32, i32) {
    %c0_i32 = arith.constant 0 : i32
    %c0_i32_0 = arith.constant 0 : i32
    %c0_i32_1 = arith.constant 0 : i32
    return %c0_i32, %c0_i32_0 : i32, i32
  }
  func.func @transform_3(%arg0: i32, %arg1: i32) -> (i32, i32, i32) {
    %c0_i32 = arith.constant 0 : i32
    %c0_i32_0 = arith.constant 0 : i32
    return %arg0, %arg1, %c0_i32 : i32, i32, i32
  }
  func.func @transform_4(%arg0: i32, %arg1: i32) -> (i32, i32, i32) {
    %c0_i32 = arith.constant 0 : i32
    %c0_i32_0 = arith.constant 0 : i32
    return %arg0, %arg1, %c0_i32 : i32, i32, i32
  }
}

module attributes {stable_mosaic.version = 11 : i64} {
  func.func @_conv_mm_res_kernel(%arg0: i32, %arg1: i32, %arg2: memref<1x256x144xbf16, #tpu.memory_space<vmem>>, %arg3: memref<144x48xbf16, #tpu.memory_space<vmem>>, %arg4: memref<1x48xf32, #tpu.memory_space<vmem>>, %arg5: memref<1x256x48xbf16, #tpu.memory_space<vmem>>, %arg6: memref<1x256x48xf32, #tpu.memory_space<vmem>>) attributes {dimension_semantics = [#tpu.dimension_semantics<parallel>, #tpu.dimension_semantics<parallel>], iteration_bounds = array<i64: 2, 1>, scalar_prefetch = 0 : i64, scratch_operands = 0 : i64, tpu.core_type = #tpu.core_type<tc>, window_params = [{transform_indices = @transform_0, window_bounds = array<i64: 1, 256, 144>}, {pipeline_mode = #tpu.pipeline_mode<synchronous>, transform_indices = @transform_1, window_bounds = array<i64: 144, 48>}, {pipeline_mode = #tpu.pipeline_mode<synchronous>, transform_indices = @transform_2, window_bounds = array<i64: 1, 48>}, {transform_indices = @transform_3, window_bounds = array<i64: 1, 256, 48>}, {transform_indices = @transform_4, window_bounds = array<i64: 1, 256, 48>}]} {
    %c0 = arith.constant 0 : index
    %c0_0 = arith.constant 0 : index
    %c0_1 = arith.constant 0 : index
    %0 = vector.load %arg2[%c0, %c0_0, %c0_1] : memref<1x256x144xbf16, #tpu.memory_space<vmem>>, vector<1x256x144xbf16>
    %1 = vector.shape_cast %0 : vector<1x256x144xbf16> to vector<256x144xbf16>
    %c0_2 = arith.constant 0 : index
    %c0_3 = arith.constant 0 : index
    %2 = vector.load %arg3[%c0_2, %c0_3] : memref<144x48xbf16, #tpu.memory_space<vmem>>, vector<144x48xbf16>
    %cst = arith.constant dense<0.000000e+00> : vector<256x48xf32>
    %3 = tpu.matmul %1, %2, %cst {dimension_numbers = #tpu.dot_dimension_numbers<[1], [0], [0], [1], [0, 0, 1, 1], [], []>} : vector<256x144xbf16>, vector<144x48xbf16>, vector<256x48xf32> -> vector<256x48xf32>
    %c0_4 = arith.constant 0 : index
    %c0_5 = arith.constant 0 : index
    %4 = vector.load %arg4[%c0_4, %c0_5] : memref<1x48xf32, #tpu.memory_space<vmem>>, vector<1x48xf32>
    %5 = vector.broadcast %4 : vector<1x48xf32> to vector<256x48xf32>
    %6 = arith.addf %3, %5 : vector<256x48xf32>
    %c0_6 = arith.constant 0 : index
    %c0_7 = arith.constant 0 : index
    %c0_8 = arith.constant 0 : index
    %7 = vector.load %arg5[%c0_6, %c0_7, %c0_8] : memref<1x256x48xbf16, #tpu.memory_space<vmem>>, vector<1x256x48xbf16>
    %8 = vector.shape_cast %7 : vector<1x256x48xbf16> to vector<256x48xbf16>
    %9 = arith.extf %8 : vector<256x48xbf16> to vector<256x48xf32>
    %10 = arith.addf %6, %9 : vector<256x48xf32>
    %c0_9 = arith.constant 0 : index
    %c0_10 = arith.constant 0 : index
    %c0_11 = arith.constant 0 : index
    %11 = vector.load %arg6[%c0_9, %c0_10, %c0_11] : memref<1x256x48xf32, #tpu.memory_space<vmem>>, vector<1x256x48xf32>
    %12 = vector.shape_cast %11 : vector<1x256x48xf32> to vector<256x48xf32>
    %13 = vector.shape_cast %10 : vector<256x48xf32> to vector<1x256x48xf32>
    tpu.vector_store %arg6[%c0_9, %c0_10, %c0_11], %13 {strides = array<i32>} : memref<1x256x48xf32, #tpu.memory_space<vmem>>, vector<1x256x48xf32>,
    return
  }
  func.func @transform_0(%arg0: i32, %arg1: i32) -> (i32, i32, i32) {
    %c0_i32 = arith.constant 0 : i32
    %c0_i32_0 = arith.constant 0 : i32
    return %arg0, %arg1, %c0_i32 : i32, i32, i32
  }
  func.func @transform_1(%arg0: i32, %arg1: i32) -> (i32, i32) {
    %c0_i32 = arith.constant 0 : i32
    %c0_i32_0 = arith.constant 0 : i32
    %c0_i32_1 = arith.constant 0 : i32
    return %c0_i32, %c0_i32_0 : i32, i32
  }
  func.func @transform_2(%arg0: i32, %arg1: i32) -> (i32, i32) {
    %c0_i32 = arith.constant 0 : i32
    %c0_i32_0 = arith.constant 0 : i32
    %c0_i32_1 = arith.constant 0 : i32
    return %c0_i32, %c0_i32_0 : i32, i32
  }
  func.func @transform_3(%arg0: i32, %arg1: i32) -> (i32, i32, i32) {
    %c0_i32 = arith.constant 0 : i32
    %c0_i32_0 = arith.constant 0 : i32
    return %arg0, %arg1, %c0_i32 : i32, i32, i32
  }
  func.func @transform_4(%arg0: i32, %arg1: i32) -> (i32, i32, i32) {
    %c0_i32 = arith.constant 0 : i32
    %c0_i32_0 = arith.constant 0 : i32
    return %arg0, %arg1, %c0_i32 : i32, i32, i32
  }
}

</mosaic_0001>

<llo_original>
// kernel: wdsrnet_forward.7
$region0: #{wdsrnet_forward.7}
  #allocation0 [shape = 'u32[]', space=smem, size = 0x4, offset = 0x4, fixed_abs, tag = 'smem constant byte address 0x4 - core index']
  #allocation1 [shape = 'u32[144,128]{1,0:T(1,128)}', space=vmem, size = 0x12000, scoped, tag = 'internal scratch']
  %s0 = inlined_call_operand.vmem [shape: bf16[2,256,75], index: 0, kind: input, shape index: {}]
  %s1 = inlined_call_operand.vmem [shape: bf16[75,48], index: 1, kind: input, shape index: {}]
  %s2 = inlined_call_operand.vmem [shape: f32[1,48], index: 2, kind: input, shape index: {}]
  %s3 = inlined_call_operand.vmem [shape: bf16[2,256,48], index: 3, kind: output, shape index: {}]
  %s4 = sld [smem:[#allocation0]]
  $region45: #{wdsrnet_forward.7} parent=0
    _
  %s6 = ssub.s32 1, %s4
  %s7 = scalar_select 0, %s6, %s4
  loop: start=0, step=1, limit=4
  $region2: #{wdsrnet_forward.7} parent=0 // loop_pre_header
    _
  $region3: #{wdsrnet_forward.7} parent=0 // loop_header
    %s9 = sphi 0, %s13
    %p10 = scmp.ge.s32.totalorder %s9, 4
    %s16 = sphi 0, %s28
    %s17 = sphi 0, %s24
    %s18 = sphi 0, %s16
    %s19 = sphi 0, %s17
    %s20 = sphi 0, %s18
    %s21 = sphi 0, %s19
    %s33 = sphi 0, %s35
    %s36 = sphi 0, %s33
    %s37 = sphi 0, %s36
    %s53 = sphi 0, %s37
    %s57 = sphi 0, %s57
    %s59 = sphi 0, %s57
    %s60 = sphi 0, %s59
    %s74 = sphi 0, %s60
    %s78 = sphi 0, %s78
    %s80 = sphi 0, %s78
    %s81 = sphi 0, %s80
    %s95 = sphi 0, %s81
    %s103 = sphi 0, %s105
    %s106 = sphi 0, %s103
    %s107 = sphi 0, %s106
    %s123 = sphi 0, %s107
  $region4: #{wdsrnet_forward.7} parent=0 // loop_header_branch
    %12 = sbr.rel (%p10) target = $region8
  $region5: #{wdsrnet_forward.7} parent=0 // loop_body
    %s14 = ssub.s32 %s9, 1
    %s15 = ssub.s32 %s9, 2
    %s22 = sadd.s32 1, %s17
    %p23 = scmp.ge.s32.totalorder %s22, 1
    %s24 = scalar_select %p23, 0, %s22
    %s25 = sadd.s32 1, %s16
    %s26 = scalar_select %p23, %s25, %s16
    %p27 = scmp.ge.s32.totalorder %s26, 2
    %s28 = scalar_select %p27, 0, %s26
    %s29 = ssub.s32 %s16, %s28
    %s30 = ssub.s32 %s17, %s24
    %s31 = sor.u32 %s29, %s30
    %p32 = scmp.eq.s32.totalorder %s31, 0
    %s34 = sadd.s32 %s33, 1
    %s35 = scalar_select %p32, %s33, %s34
    %p38 = pneg %p32
    %p39 = scmp.eq.s32.totalorder %s9, 1
    %p40 = por %p38, %p39
    %p41 = scmp.ne.s32.totalorder %s33, %s36
    %p42 = scmp.eq.s32.totalorder %s9, 0
    %p43 = por %p41, %p42
    %p44 = scmp.ne.s32.totalorder %s33, %s36
    %p45 = scmp.eq.s32.totalorder %s14, 1
    %p46 = por %p44, %p45
    %p47 = scmp.ne.s32.totalorder %s36, %s37
    %p48 = scmp.eq.s32.totalorder %s14, 0
    %p49 = por %p47, %p48
    %p50 = scmp.ne.s32.totalorder %s36, %s37
    %p51 = scmp.eq.s32.totalorder %s15, 1
    %p52 = por %p50, %p51
    %p54 = scmp.ne.s32.totalorder %s37, %s53
    %p55 = scmp.eq.s32.totalorder %s15, 0
    %p56 = por %p54, %p55
    %s58 = sadd.s32 %s57, 1
    %p61 = scmp.eq.s32.totalorder %s9, 1
    %p62 = scmp.ne.s32.totalorder %s57, %s59
    %p63 = scmp.eq.s32.totalorder %s9, 0
    %p64 = por %p62, %p63
    %p65 = scmp.ne.s32.totalorder %s57, %s59
    %p66 = scmp.eq.s32.totalorder %s14, 1
    %p67 = por %p65, %p66
    %p68 = scmp.ne.s32.totalorder %s59, %s60
    %p69 = scmp.eq.s32.totalorder %s14, 0
    %p70 = por %p68, %p69
    %p71 = scmp.ne.s32.totalorder %s59, %s60
    %p72 = scmp.eq.s32.totalorder %s15, 1
    %p73 = por %p71, %p72
    %p75 = scmp.ne.s32.totalorder %s60, %s74
    %p76 = scmp.eq.s32.totalorder %s15, 0
    %p77 = por %p75, %p76
    %s79 = sadd.s32 %s78, 1
    %p82 = scmp.eq.s32.totalorder %s9, 1
    %p83 = scmp.ne.s32.totalorder %s78, %s80
    %p84 = scmp.eq.s32.totalorder %s9, 0
    %p85 = por %p83, %p84
    %p86 = scmp.ne.s32.totalorder %s78, %s80
    %p87 = scmp.eq.s32.totalorder %s14, 1
    %p88 = por %p86, %p87
    %p89 = scmp.ne.s32.totalorder %s80, %s81
    %p90 = scmp.eq.s32.totalorder %s14, 0
    %p91 = por %p89, %p90
    %p92 = scmp.ne.s32.totalorder %s80, %s81
    %p93 = scmp.eq.s32.totalorder %s15, 1
    %p94 = por %p92, %p93
    %p96 = scmp.ne.s32.totalorder %s81, %s95
    %p97 = scmp.eq.s32.totalorder %s15, 0
    %p98 = por %p96, %p97
    %s99 = ssub.s32 %s16, %s28
    %s100 = ssub.s32 %s17, %s24
    %s101 = sor.u32 %s99, %s100
    %p102 = scmp.eq.s32.totalorder %s101, 0
    %s104 = sadd.s32 %s103, 1
    %s105 = scalar_select %p102, %s103, %s104
    %p108 = pneg %p102
    %p109 = scmp.eq.s32.totalorder %s9, 1
    %p110 = por %p108, %p109
    %p111 = scmp.ne.s32.totalorder %s103, %s106
    %p112 = scmp.eq.s32.totalorder %s9, 0
    %p113 = por %p111, %p112
    %p114 = scmp.ne.s32.totalorder %s103, %s106
    %p115 = scmp.eq.s32.totalorder %s14, 1
    %p116 = por %p114, %p115
    %p117 = scmp.ne.s32.totalorder %s106, %s107
    %p118 = scmp.eq.s32.totalorder %s14, 0
    %p119 = por %p117, %p118
    %p120 = scmp.ne.s32.totalorder %s106, %s107
    %p121 = scmp.eq.s32.totalorder %s15, 1
    %p122 = por %p120, %p121
    %p124 = scmp.ne.s32.totalorder %s107, %s123
    %p125 = scmp.eq.s32.totalorder %s15, 0
    %p126 = por %p124, %p125
    %p127 = scmp.le.s32.totalorder 1, %s9
    %p128 = scmp.lt.s32.totalorder %s9, 3
    %p129 = pnand %p127, %p128
    %p130 = pneg %p129
    // Predicated region
    $region9: #{wdsrnet_forward.7} parent=5 // pred_check
      _
    $region10: #{wdsrnet_forward.7} parent=5 // pred_check_branch
      %132 = sbr.rel (%p129) target = $region12
    $region11: #{wdsrnet_forward.7} parent=5 // pred_region
      %s133 = ssub.s32 %s9, 1
      // Predicated region
      $region13: #{wdsrnet_forward.7} parent=11 // pred_check
        %p134 = pneg %p70
      $region14: #{wdsrnet_forward.7} parent=11 // pred_check_branch
        %136 = sbr.rel (%p134) target = $region16
      $region15: #{wdsrnet_forward.7} parent=11 // pred_region
        _
      $region16: #{wdsrnet_forward.7} parent=11 // pred_fallthru
        _
      // Predicated region
      $region17: #{wdsrnet_forward.7} parent=11 // pred_check
        %p137 = pneg %p91
      $region18: #{wdsrnet_forward.7} parent=11 // pred_check_branch
        %139 = sbr.rel (%p137) target = $region20
      $region19: #{wdsrnet_forward.7} parent=11 // pred_region
        _
      $region20: #{wdsrnet_forward.7} parent=11 // pred_fallthru
        _
    $region12: #{wdsrnet_forward.7} parent=5 // pred_fallthru
      _
    %p140 = scmp.lt.s32.totalorder %s9, 2
    // Predicated region
    $region21: #{wdsrnet_forward.7} parent=5 // pred_check
      %p141 = pneg %p140
    $region22: #{wdsrnet_forward.7} parent=5 // pred_check_branch
      %143 = sbr.rel (%p141) target = $region24
    $region23: #{wdsrnet_forward.7} parent=5 // pred_region
      // Predicated region
      $region25: #{wdsrnet_forward.7} parent=23 // pred_check
        %p144 = pneg %p43
      $region26: #{wdsrnet_forward.7} parent=23 // pred_check_branch
        %146 = sbr.rel (%p144) target = $region28
      $region27: #{wdsrnet_forward.7} parent=23 // pred_region
        %s147 = smul.u32 32, %s17
        %p148 = scmp.lt.s32.totalorder %s16, 1
        %s149 = scalar_select %p148, %s16, 1
        %p150 = scmp.lt.s32.totalorder %s147, 31
        %s151 = scalar_select %p150, %s147, 31
        %s152 = smul.addr %s149, 32
        %s153 = sadd.s32 %s151, %s152
        %s154 = smul.addr %s153, 4
        %s155 = scalar_lea.vmem %s0, %s154
        %s156 = smul.u32 32, %s17
      $region28: #{wdsrnet_forward.7} parent=23 // pred_fallthru
        _
    $region24: #{wdsrnet_forward.7} parent=5 // pred_fallthru
      _
    %p157 = scmp.le.s32.totalorder 1, %s9
    %p158 = scmp.lt.s32.totalorder %s9, 3
    %p159 = pnand %p157, %p158
    %p160 = pneg %p159
    // Predicated region
    $region29: #{wdsrnet_forward.7} parent=5 // pred_check
      _
    $region30: #{wdsrnet_forward.7} parent=5 // pred_check_branch
      %162 = sbr.rel (%p159) target = $region32
    $region31: #{wdsrnet_forward.7} parent=5 // pred_region
      %s163 = ssub.s32 %s9, 1
      %s164 = smul.u32 32, %s19
      %p165 = scmp.lt.s32.totalorder %s18, 1
      %s166 = scalar_select %p165, %s18, 1
      %p167 = scmp.lt.s32.totalorder %s164, 31
      %s168 = scalar_select %p167, %s164, 31
      %s169 = smul.addr %s166, 32
      %s170 = sadd.s32 %s168, %s169
      %s171 = smul.addr %s170, 4
      %s172 = scalar_lea.vmem %s0, %s171
      %p173 = pneg %p49
      %p174 = pneg %p46
      %p175 = pneg %p70
      %p176 = pneg %p67
      %p177 = pneg %p91
      %p178 = pneg %p88
      %p179 = pneg %p119
      %p180 = pneg %p116
      %s181 = smul.u32 32, %s19
      %p182 = scmp.lt.s32.totalorder %s18, 1
      %s183 = scalar_select %p182, %s18, 1
      %p184 = scmp.lt.s32.totalorder %s181, 31
      %s185 = scalar_select %p184, %s181, 31
      %s186 = smul.addr %s183, 32
      %s187 = sadd.s32 %s185, %s186
      %s188 = smul.addr %s187, 4
      %s189 = scalar_lea.vmem %s3, %s188
      %s190 = smul.u32 32, %s19
      %p191 = scmp.lt.s32.totalorder %s18, 1
      %s192 = scalar_select %p191, %s18, 1
      %p193 = scmp.lt.s32.totalorder %s190, 31
      %s194 = scalar_select %p193, %s190, 31
      %s195 = smul.addr %s192, 32
      %s196 = sadd.s32 %s194, %s195
      %s197 = smul.addr %s196, 4
      %s198 = scalar_lea.vmem %s0, %s197
      %s199 = smul.u32 32, %s19
      %s200 = smul.u32 32, %s19
      %p201 = scmp.lt.s32.totalorder %s18, 1
      %s202 = scalar_select %p201, %s18, 1
      %p203 = scmp.lt.s32.totalorder %s200, 31
      %s204 = scalar_select %p203, %s200, 31
      %s205 = smul.addr %s202, 32
      %s206 = sadd.s32 %s204, %s205
      %s207 = smul.addr %s206, 4
      %s208 = scalar_lea.vmem %s3, %s207
      %s209 = smul.u32 32, %s19
      %v211 = vld [vmem:[%s198] sm:$0xf]
      %v212 = vld [vmem:[%s198 + $0x4] sm:$0xf]
      %v213 = vld [vmem:[%s198 + $0x8] sm:$0xf]
      %v214 = vld [vmem:[%s198 + $0xc] sm:$0xf]
      %v215 = vld [vmem:[%s198 + $0x10] sm:$0xf]
      %v216 = vld [vmem:[%s198 + $0x14] sm:$0xf]
      %v217 = vld [vmem:[%s198 + $0x18] sm:$0xf]
      %v218 = vld [vmem:[%s198 + $0x1c] sm:$0xf]
      %v219 = vld [vmem:[%s198 + $0x20] sm:$0xf]
      %v220 = vld [vmem:[%s198 + $0x24] sm:$0xf]
      %v221 = vld [vmem:[%s198 + $0x28] sm:$0xf]
      %v222 = vld [vmem:[%s198 + $0x2c] sm:$0xf]
      %v223 = vld [vmem:[%s198 + $0x30] sm:$0xf]
      %v224 = vld [vmem:[%s198 + $0x34] sm:$0xf]
      %v225 = vld [vmem:[%s198 + $0x38] sm:$0xf]
      %v226 = vld [vmem:[%s198 + $0x3c] sm:$0xf]
      %v227 = vld [vmem:[%s198 + $0x40] sm:$0xf]
      %v228 = vld [vmem:[%s198 + $0x44] sm:$0xf]
      %v229 = vld [vmem:[%s198 + $0x48] sm:$0xf]
      %v230 = vld [vmem:[%s198 + $0x4c] sm:$0xf]
      %v231 = vld [vmem:[%s198 + $0x50] sm:$0xf]
      %v232 = vld [vmem:[%s198 + $0x54] sm:$0xf]
      %v233 = vld [vmem:[%s198 + $0x58] sm:$0xf]
      %v234 = vld [vmem:[%s198 + $0x5c] sm:$0xf]
      %v235 = vld [vmem:[%s198 + $0x60] sm:$0xf]
      %v236 = vld [vmem:[%s198 + $0x64] sm:$0xf]
      %v237 = vld [vmem:[%s198 + $0x68] sm:$0xf]
      %v238 = vld [vmem:[%s198 + $0x6c] sm:$0xf]
      %v239 = vld [vmem:[%s198 + $0x70] sm:$0xf]
      %v240 = vld [vmem:[%s198 + $0x74] sm:$0xf]
      %v241 = vld [vmem:[%s198 + $0x78] sm:$0xf]
      %v242 = vld [vmem:[%s198 + $0x7c] sm:$0xf]
      %v243 = vld [vmem:[%s1] sm:$0xf]
      %v244 = vld [vmem:[%s1 + $0x4] sm:$0xf]
      %v245 = vld [vmem:[%s1 + $0x8] sm:$0xf]
      %v246 = vld [vmem:[%s1 + $0xc] sm:$0xf]
      %v247 = vld [vmem:[%s1 + $0x10] sm:$0xf]
      %v248 = vld [vmem:[%s1 + $0x14] sm:$0xf]
      %v249 = vld [vmem:[%s1 + $0x18] sm:$0xf]
      %v250 = vld [vmem:[%s1 + $0x1c] sm:$0xf]
      %v251 = vld [vmem:[%s1 + $0x20] sm:$0xf]
      %v252 = vld [vmem:[%s1 + $0x24] sm:$0x3]
      %v253 = vld [vmem:[%s2] sm:$0x1]
      %v255 = vlaneseq
      %v256 = vshrl.u32 %v255, 7
      %v257 = vsub.s32 0, %v256
      %v258 = vrot.slane %v253, %v257
      %v292 = vunpack.c.l.b16 %v211
      %v293 = vunpack.c.l.b16 %v212
      %v294 = vunpack.c.l.b16 %v213
      %v295 = vunpack.c.l.b16 %v214
      %v296 = vunpack.c.l.b16 %v215
      %v297 = vunpack.c.l.b16 %v216
      %v298 = vunpack.c.l.b16 %v217
      %v299 = vunpack.c.l.b16 %v218
      %v300 = vunpack.c.l.b16 %v219
      %v301 = vunpack.c.l.b16 %v220
      %v302 = vunpack.c.l.b16 %v221
      %v303 = vunpack.c.l.b16 %v222
      %v304 = vunpack.c.l.b16 %v223
      %v305 = vunpack.c.l.b16 %v224
      %v306 = vunpack.c.l.b16 %v225
      %v307 = vunpack.c.l.b16 %v226
      %v308 = vunpack.c.l.b16 %v227
      %v309 = vunpack.c.l.b16 %v228
      %v310 = vunpack.c.l.b16 %v229
      %v311 = vunpack.c.l.b16 %v230
      %v312 = vunpack.c.l.b16 %v231
      %v313 = vunpack.c.l.b16 %v232
      %v314 = vunpack.c.l.b16 %v233
      %v315 = vunpack.c.l.b16 %v234
      %v316 = vunpack.c.l.b16 %v235
      %v317 = vunpack.c.l.b16 %v236
      %v318 = vunpack.c.l.b16 %v237
      %v319 = vunpack.c.l.b16 %v238
      %v320 = vunpack.c.l.b16 %v239
      %v321 = vunpack.c.l.b16 %v240
      %v322 = vunpack.c.l.b16 %v241
      %v323 = vunpack.c.l.b16 %v242
      %v324 = vpack.c.b16 %v293, %v292
      %v325 = vpack.c.b16 %v295, %v294
      %v326 = vpack.c.b16 %v297, %v296
      %v327 = vpack.c.b16 %v299, %v298
      %v328 = vpack.c.b16 %v301, %v300
      %v329 = vpack.c.b16 %v303, %v302
      %v330 = vpack.c.b16 %v305, %v304
      %v331 = vpack.c.b16 %v307, %v306
      %v332 = vpack.c.b16 %v309, %v308
      %v333 = vpack.c.b16 %v311, %v310
      %v334 = vpack.c.b16 %v313, %v312
      %v335 = vpack.c.b16 %v315, %v314
      %v336 = vpack.c.b16 %v317, %v316
      %v337 = vpack.c.b16 %v319, %v318
      %v338 = vpack.c.b16 %v321, %v320
      %v339 = vpack.c.b16 %v323, %v322
      %v350 = vunpack.c.l.b16 %v243
      %v351 = vunpack.c.l.b16 %v244
      %v352 = vunpack.c.l.b16 %v245
      %v353 = vunpack.c.l.b16 %v246
      %v354 = vunpack.c.l.b16 %v247
      %v355 = vunpack.c.l.b16 %v248
      %v356 = vunpack.c.l.b16 %v249
      %v357 = vunpack.c.l.b16 %v250
      %v358 = vunpack.c.l.b16 %v251
      %v359 = vunpack.c.l.b16 %v252
      %v360 = vpack.c.b16 %v351, %v350
      %v361 = vpack.c.b16 %v353, %v352
      %v362 = vpack.c.b16 %v355, %v354
      %v363 = vpack.c.b16 %v357, %v356
      %v364 = vpack.c.b16 %v359, %v358
      %vm369 = vcmask 613376
      %v371 = vsel %vm369, %v324, 0
      %v374 = vsel %vm369, %v325, 0
      %v377 = vsel %vm369, %v326, 0
      %v380 = vsel %vm369, %v327, 0
      %v383 = vsel %vm369, %v328, 0
      %v386 = vsel %vm369, %v329, 0
      %v389 = vsel %vm369, %v330, 0
      %v392 = vsel %vm369, %v331, 0
      %v395 = vsel %vm369, %v332, 0
      %v398 = vsel %vm369, %v333, 0
      %v401 = vsel %vm369, %v334, 0
      %v404 = vsel %vm369, %v335, 0
      %v407 = vsel %vm369, %v336, 0
      %v410 = vsel %vm369, %v337, 0
      %v413 = vsel %vm369, %v338, 0
      %v416 = vsel %vm369, %v339, 0
      %vm418 = vcmask 1044480
      %vm419 = vcmask 1045504
      %v420 = vsel %vm418, 4294967295, 65535
      %v421 = vsel %vm419, %v420, 0
      %v423 = vand.u32 %v364, %v421
      %425 = vmatprep.subr.bf16.mxu0 0
      %426 = vmatpush1.bf16.msra.mxu0 0
      %427 = vmatprep.subr.bf16.mxu0 0
      %428 = vmatpush1.bf16.msra.mxu0 0
      %429 = vmatprep.subr.bf16.mxu0 0
      %430 = vmatpush1.bf16.msra.mxu0 0
      %431 = vmatprep.subr.bf16.mxu0 0
      %432 = vmatpush1.bf16.msra.mxu0 %v423
      %433 = vmatprep.subr.bf16.mxu0 0
      %434 = vmatpush1.bf16.msra.mxu0 %v363
      %435 = vmatprep.subr.bf16.mxu0 0
      %436 = vmatpush1.bf16.msra.mxu0 %v362
      %437 = vmatprep.subr.bf16.mxu0 0
      %438 = vmatpush1.bf16.msra.mxu0 %v361
      %439 = vmatprep.subr.bf16.mxu0 0
      %440 = vmatpush1.bf16.msra.mxu0 %v360
      %441 = vmatprep.subr.bf16.mxu0 0
      %442 = vmatpush2.bf16.msra.mxu0 0
      %443 = vmatprep.subr.bf16.mxu0 0
      %444 = vmatpush2.bf16.msra.mxu0 0
      %445 = vmatprep.subr.bf16.mxu0 0
      %446 = vmatpush2.bf16.msra.mxu0 0
      %447 = vmatprep.subr.bf16.mxu0 0
      %448 = vmatpush2.bf16.msra.mxu0 0
      %449 = vmatprep.subr.bf16.mxu0 0
      %450 = vmatpush2.bf16.msra.mxu0 0
      %451 = vmatprep.subr.bf16.mxu0 0
      %452 = vmatpush2.bf16.msra.mxu0 0
      %453 = vmatprep.subr.bf16.mxu0 0
      %454 = vmatpush2.bf16.msra.mxu0 0
      %455 = vmatprep.subr.bf16.mxu0 0
      %456 = vmatpush2.bf16.msra.mxu0 0
      %457 = vmatprep.mubr.bf16.mxu0 0
      %458 = vmatmul.mubr.bf16.gmra.mxu0 %v371
      %v459 = vpop.f32.mrf.mxu0
      %v460 = vadd.f32 %v258, %v459
      %v461 = vpop.f32.mrf.mxu0
      %v462 = vpop.f32.mrf.mxu0
      %v463 = vadd.f32 %v258, %v462
      %v464 = vpop.f32.mrf.mxu0
      %465 = vmatprep.mubr.bf16.mxu0 0
      %466 = vmatmul.mubr.bf16.gmra.mxu0 %v374
      %v467 = vpop.f32.mrf.mxu0
      %v468 = vadd.f32 %v258, %v467
      %v469 = vpop.f32.mrf.mxu0
      %v470 = vpop.f32.mrf.mxu0
      %v471 = vadd.f32 %v258, %v470
      %v472 = vpop.f32.mrf.mxu0
      %473 = vmatprep.mubr.bf16.mxu0 0
      %474 = vmatmul.mubr.bf16.gmra.mxu0 %v377
      %v475 = vpop.f32.mrf.mxu0
      %v476 = vadd.f32 %v258, %v475
      %v477 = vpop.f32.mrf.mxu0
      %v478 = vpop.f32.mrf.mxu0
      %v479 = vadd.f32 %v258, %v478
      %v480 = vpop.f32.mrf.mxu0
      %481 = vmatprep.mubr.bf16.mxu0 0
      %482 = vmatmul.mubr.bf16.gmra.mxu0 %v380
      %v483 = vpop.f32.mrf.mxu0
      %v484 = vadd.f32 %v258, %v483
      %v485 = vpop.f32.mrf.mxu0
      %v486 = vpop.f32.mrf.mxu0
      %v487 = vadd.f32 %v258, %v486
      %v488 = vpop.f32.mrf.mxu0
      %489 = vmatprep.mubr.bf16.mxu0 0
      %490 = vmatmul.mubr.bf16.gmra.mxu0 %v383
      %v491 = vpop.f32.mrf.mxu0
      %v492 = vadd.f32 %v258, %v491
      %v493 = vpop.f32.mrf.mxu0
      %v494 = vpop.f32.mrf.mxu0
      %v495 = vadd.f32 %v258, %v494
      %v496 = vpop.f32.mrf.mxu0
      %497 = vmatprep.mubr.bf16.mxu0 0
      %498 = vmatmul.mubr.bf16.gmra.mxu0 %v386
      %v499 = vpop.f32.mrf.mxu0
      %v500 = vadd.f32 %v258, %v499
      %v501 = vpop.f32.mrf.mxu0
      %v502 = vpop.f32.mrf.mxu0
      %v503 = vadd.f32 %v258, %v502
      %v504 = vpop.f32.mrf.mxu0
      %505 = vmatprep.mubr.bf16.mxu0 0
      %506 = vmatmul.mubr.bf16.gmra.mxu0 %v389
      %v507 = vpop.f32.mrf.mxu0
      %v508 = vadd.f32 %v258, %v507
      %v509 = vpop.f32.mrf.mxu0
      %v510 = vpop.f32.mrf.mxu0
      %v511 = vadd.f32 %v258, %v510
      %v512 = vpop.f32.mrf.mxu0
      %513 = vmatprep.mubr.bf16.mxu0 0
      %514 = vmatmul.mubr.bf16.gmra.mxu0 %v392
      %v515 = vpop.f32.mrf.mxu0
      %v516 = vadd.f32 %v258, %v515
      %v517 = vpop.f32.mrf.mxu0
      %v518 = vpop.f32.mrf.mxu0
      %v519 = vadd.f32 %v258, %v518
      %v520 = vpop.f32.mrf.mxu0
      %521 = vmatprep.mubr.bf16.mxu0 0
      %522 = vmatmul.mubr.bf16.gmra.mxu0 %v395
      %v523 = vpop.f32.mrf.mxu0
      %v524 = vadd.f32 %v258, %v523
      %v525 = vpop.f32.mrf.mxu0
      %v526 = vpop.f32.mrf.mxu0
      %v527 = vadd.f32 %v258, %v526
      %v528 = vpop.f32.mrf.mxu0
      %529 = vmatprep.mubr.bf16.mxu0 0
      %530 = vmatmul.mubr.bf16.gmra.mxu0 %v398
      %v531 = vpop.f32.mrf.mxu0
      %v532 = vadd.f32 %v258, %v531
      %v533 = vpop.f32.mrf.mxu0
      %v534 = vpop.f32.mrf.mxu0
      %v535 = vadd.f32 %v258, %v534
      %v536 = vpop.f32.mrf.mxu0
      %537 = vmatprep.mubr.bf16.mxu0 0
      %538 = vmatmul.mubr.bf16.gmra.mxu0 %v401
      %v539 = vpop.f32.mrf.mxu0
      %v540 = vadd.f32 %v258, %v539
      %v541 = vpop.f32.mrf.mxu0
      %v542 = vpop.f32.mrf.mxu0
      %v543 = vadd.f32 %v258, %v542
      %v544 = vpop.f32.mrf.mxu0
      %545 = vmatprep.mubr.bf16.mxu0 0
      %546 = vmatmul.mubr.bf16.gmra.mxu0 %v404
      %v547 = vpop.f32.mrf.mxu0
      %v548 = vadd.f32 %v258, %v547
      %v549 = vpop.f32.mrf.mxu0
      %v550 = vpop.f32.mrf.mxu0
      %v551 = vadd.f32 %v258, %v550
      %v552 = vpop.f32.mrf.mxu0
      %553 = vmatprep.mubr.bf16.mxu0 0
      %554 = vmatmul.mubr.bf16.gmra.mxu0 %v407
      %v555 = vpop.f32.mrf.mxu0
      %v556 = vadd.f32 %v258, %v555
      %v557 = vpop.f32.mrf.mxu0
      %v558 = vpop.f32.mrf.mxu0
      %v559 = vadd.f32 %v258, %v558
      %v560 = vpop.f32.mrf.mxu0
      %561 = vmatprep.mubr.bf16.mxu0 0
      %562 = vmatmul.mubr.bf16.gmra.mxu0 %v410
      %v563 = vpop.f32.mrf.mxu0
      %v564 = vadd.f32 %v258, %v563
      %v565 = vpop.f32.mrf.mxu0
      %v566 = vpop.f32.mrf.mxu0
      %v567 = vadd.f32 %v258, %v566
      %v568 = vpop.f32.mrf.mxu0
      %569 = vmatprep.mubr.bf16.mxu0 0
      %570 = vmatmul.mubr.bf16.gmra.mxu0 %v413
      %v571 = vpop.f32.mrf.mxu0
      %v572 = vadd.f32 %v258, %v571
      %v573 = vpop.f32.mrf.mxu0
      %v574 = vpop.f32.mrf.mxu0
      %v575 = vadd.f32 %v258, %v574
      %v576 = vpop.f32.mrf.mxu0
      %577 = vmatprep.mubr.bf16.mxu0 0
      %578 = vmatmul.mubr.bf16.gmra.mxu0 %v416
      %v579 = vpop.f32.mrf.mxu0
      %v580 = vadd.f32 %v258, %v579
      %v581 = vpop.f32.mrf.mxu0
      %v582 = vpop.f32.mrf.mxu0
      %v583 = vadd.f32 %v258, %v582
      %v584 = vpop.f32.mrf.mxu0
      %585 = vdwg.mxu0
      %v586 = vpack.c.bf16 %v463, %v460
      %v587 = vpack.c.bf16 %v471, %v468
      %v588 = vpack.c.bf16 %v479, %v476
      %v589 = vpack.c.bf16 %v487, %v484
      %v590 = vpack.c.bf16 %v495, %v492
      %v591 = vpack.c.bf16 %v503, %v500
      %v592 = vpack.c.bf16 %v511, %v508
      %v593 = vpack.c.bf16 %v519, %v516
      %v594 = vpack.c.bf16 %v527, %v524
      %v595 = vpack.c.bf16 %v535, %v532
      %v596 = vpack.c.bf16 %v543, %v540
      %v597 = vpack.c.bf16 %v551, %v548
      %v598 = vpack.c.bf16 %v559, %v556
      %v599 = vpack.c.bf16 %v567, %v564
      %v600 = vpack.c.bf16 %v575, %v572
      %v601 = vpack.c.bf16 %v583, %v580
      %v618 = vunpack.c.l.b16 %v586
      %v619 = vunpack.c.h.b16 %v586
      %v620 = vunpack.c.l.b16 %v587
      %v621 = vunpack.c.h.b16 %v587
      %v622 = vunpack.c.l.b16 %v588
      %v623 = vunpack.c.h.b16 %v588
      %v624 = vunpack.c.l.b16 %v589
      %v625 = vunpack.c.h.b16 %v589
      %v626 = vunpack.c.l.b16 %v590
      %v627 = vunpack.c.h.b16 %v590
      %v628 = vunpack.c.l.b16 %v591
      %v629 = vunpack.c.h.b16 %v591
      %v630 = vunpack.c.l.b16 %v592
      %v631 = vunpack.c.h.b16 %v592
      %v632 = vunpack.c.l.b16 %v593
      %v633 = vunpack.c.h.b16 %v593
      %v634 = vunpack.c.l.b16 %v594
      %v635 = vunpack.c.h.b16 %v594
      %v636 = vunpack.c.l.b16 %v595
      %v637 = vunpack.c.h.b16 %v595
      %v638 = vunpack.c.l.b16 %v596
      %v639 = vunpack.c.h.b16 %v596
      %v640 = vunpack.c.l.b16 %v597
      %v641 = vunpack.c.h.b16 %v597
      %v642 = vunpack.c.l.b16 %v598
      %v643 = vunpack.c.h.b16 %v598
      %v644 = vunpack.c.l.b16 %v599
      %v645 = vunpack.c.h.b16 %v599
      %v646 = vunpack.c.l.b16 %v600
      %v647 = vunpack.c.h.b16 %v600
      %v648 = vunpack.c.l.b16 %v601
      %v649 = vunpack.c.h.b16 %v601
      %v650 = vpack.c.b16 %v618, %v618
      %v651 = vpack.c.b16 %v619, %v619
      %v652 = vpack.c.b16 %v620, %v620
      %v653 = vpack.c.b16 %v621, %v621
      %v654 = vpack.c.b16 %v622, %v622
      %v655 = vpack.c.b16 %v623, %v623
      %v656 = vpack.c.b16 %v624, %v624
      %v657 = vpack.c.b16 %v625, %v625
      %v658 = vpack.c.b16 %v626, %v626
      %v659 = vpack.c.b16 %v627, %v627
      %v660 = vpack.c.b16 %v628, %v628
      %v661 = vpack.c.b16 %v629, %v629
      %v662 = vpack.c.b16 %v630, %v630
      %v663 = vpack.c.b16 %v631, %v631
      %v664 = vpack.c.b16 %v632, %v632
      %v665 = vpack.c.b16 %v633, %v633
      %v666 = vpack.c.b16 %v634, %v634
      %v667 = vpack.c.b16 %v635, %v635
      %v668 = vpack.c.b16 %v636, %v636
      %v669 = vpack.c.b16 %v637, %v637
      %v670 = vpack.c.b16 %v638, %v638
      %v671 = vpack.c.b16 %v639, %v639
      %v672 = vpack.c.b16 %v640, %v640
      %v673 = vpack.c.b16 %v641, %v641
      %v674 = vpack.c.b16 %v642, %v642
      %v675 = vpack.c.b16 %v643, %v643
      %v676 = vpack.c.b16 %v644, %v644
      %v677 = vpack.c.b16 %v645, %v645
      %v678 = vpack.c.b16 %v646, %v646
      %v679 = vpack.c.b16 %v647, %v647
      %v680 = vpack.c.b16 %v648, %v648
      %v681 = vpack.c.b16 %v649, %v649
      %vm714 = vcmask 388096
      %715 = vst.msk [vmem:[%s208] sm:$0xf] %vm714, %v650
      %716 = vst.msk [vmem:[%s208 + $0x4] sm:$0xf] %vm714, %v651
      %717 = vst.msk [vmem:[%s208 + $0x8] sm:$0xf] %vm714, %v652
      %718 = vst.msk [vmem:[%s208 + $0xc] sm:$0xf] %vm714, %v653
      %719 = vst.msk [vmem:[%s208 + $0x10] sm:$0xf] %vm714, %v654
      %720 = vst.msk [vmem:[%s208 + $0x14] sm:$0xf] %vm714, %v655
      %721 = vst.msk [vmem:[%s208 + $0x18] sm:$0xf] %vm714, %v656
      %722 = vst.msk [vmem:[%s208 + $0x1c] sm:$0xf] %vm714, %v657
      %723 = vst.msk [vmem:[%s208 + $0x20] sm:$0xf] %vm714, %v658
      %724 = vst.msk [vmem:[%s208 + $0x24] sm:$0xf] %vm714, %v659
      %725 = vst.msk [vmem:[%s208 + $0x28] sm:$0xf] %vm714, %v660
      %726 = vst.msk [vmem:[%s208 + $0x2c] sm:$0xf] %vm714, %v661
      %727 = vst.msk [vmem:[%s208 + $0x30] sm:$0xf] %vm714, %v662
      %728 = vst.msk [vmem:[%s208 + $0x34] sm:$0xf] %vm714, %v663
      %729 = vst.msk [vmem:[%s208 + $0x38] sm:$0xf] %vm714, %v664
      %730 = vst.msk [vmem:[%s208 + $0x3c] sm:$0xf] %vm714, %v665
      %731 = vst.msk [vmem:[%s208 + $0x40] sm:$0xf] %vm714, %v666
      %732 = vst.msk [vmem:[%s208 + $0x44] sm:$0xf] %vm714, %v667
      %733 = vst.msk [vmem:[%s208 + $0x48] sm:$0xf] %vm714, %v668
      %734 = vst.msk [vmem:[%s208 + $0x4c] sm:$0xf] %vm714, %v669
      %735 = vst.msk [vmem:[%s208 + $0x50] sm:$0xf] %vm714, %v670
      %736 = vst.msk [vmem:[%s208 + $0x54] sm:$0xf] %vm714, %v671
      %737 = vst.msk [vmem:[%s208 + $0x58] sm:$0xf] %vm714, %v672
      %738 = vst.msk [vmem:[%s208 + $0x5c] sm:$0xf] %vm714, %v673
      %739 = vst.msk [vmem:[%s208 + $0x60] sm:$0xf] %vm714, %v674
      %740 = vst.msk [vmem:[%s208 + $0x64] sm:$0xf] %vm714, %v675
      %741 = vst.msk [vmem:[%s208 + $0x68] sm:$0xf] %vm714, %v676
      %742 = vst.msk [vmem:[%s208 + $0x6c] sm:$0xf] %vm714, %v677
      %743 = vst.msk [vmem:[%s208 + $0x70] sm:$0xf] %vm714, %v678
      %744 = vst.msk [vmem:[%s208 + $0x74] sm:$0xf] %vm714, %v679
      %745 = vst.msk [vmem:[%s208 + $0x78] sm:$0xf] %vm714, %v680
      %746 = vst.msk [vmem:[%s208 + $0x7c] sm:$0xf] %vm714, %v681
      %s747 = smul.u32 32, %s19
      %p748 = scmp.lt.s32.totalorder %s18, 1
      %s749 = scalar_select %p748, %s18, 1
      %p750 = scmp.lt.s32.totalorder %s747, 31
      %s751 = scalar_select %p750, %s747, 31
      %s752 = smul.addr %s749, 32
      %s753 = sadd.s32 %s751, %s752
      %s754 = smul.addr %s753, 4
      %s755 = scalar_lea.vmem %s3, %s754
      // Predicated region
      $region33: #{wdsrnet_forward.7} parent=31 // pred_check
        %p756 = pneg %p116
      $region34: #{wdsrnet_forward.7} parent=31 // pred_check_branch
        %758 = sbr.rel (%p756) target = $region36
      $region35: #{wdsrnet_forward.7} parent=31 // pred_region
        %s759 = smul.u32 32, %s19
      $region36: #{wdsrnet_forward.7} parent=31 // pred_fallthru
        _
    $region32: #{wdsrnet_forward.7} parent=5 // pred_fallthru
      _
    %p760 = scmp.le.s32.totalorder 2, %s9
    // Predicated region
    $region37: #{wdsrnet_forward.7} parent=5 // pred_check
      %p761 = pneg %p760
    $region38: #{wdsrnet_forward.7} parent=5 // pred_check_branch
      %763 = sbr.rel (%p761) target = $region40
    $region39: #{wdsrnet_forward.7} parent=5 // pred_region
      %s764 = ssub.s32 %s9, 2
      // Predicated region
      $region41: #{wdsrnet_forward.7} parent=39 // pred_check
        %p765 = pneg %p122
      $region42: #{wdsrnet_forward.7} parent=39 // pred_check_branch
        %767 = sbr.rel (%p765) target = $region44
      $region43: #{wdsrnet_forward.7} parent=39 // pred_region
        %s768 = smul.u32 32, %s21
        %p769 = scmp.lt.s32.totalorder %s20, 1
        %s770 = scalar_select %p769, %s20, 1
        %p771 = scmp.lt.s32.totalorder %s768, 31
        %s772 = scalar_select %p771, %s768, 31
        %s773 = smul.addr %s770, 32
        %s774 = sadd.s32 %s772, %s773
        %s775 = smul.addr %s774, 4
        %s776 = scalar_lea.vmem %s3, %s775
      $region44: #{wdsrnet_forward.7} parent=39 // pred_fallthru
        _
    $region40: #{wdsrnet_forward.7} parent=5 // pred_fallthru
      _
  $region6: #{wdsrnet_forward.7} parent=0 // loop_footer
    %s13 = sadd.s32 1, %s9
  $region7: #{wdsrnet_forward.7} parent=0 // loop_footer_branch
    %8 = sbr.rel target = $region3
  $region8: #{wdsrnet_forward.7} parent=0 // loop_exit
    _

// kernel: wdsrnet_forward.8
$region0: #{wdsrnet_forward.8}
  #allocation0 [shape = 'u32[]', space=smem, size = 0x4, offset = 0x4, fixed_abs, tag = 'smem constant byte address 0x4 - core index']
  #allocation1 [shape = 'u32[144,128]{1,0:T(1,128)}', space=vmem, size = 0x12000, scoped, tag = 'internal scratch']
  %s0 = inlined_call_operand.vmem [shape: bf16[2,256,27], index: 0, kind: input, shape index: {}]
  %s1 = inlined_call_operand.vmem [shape: bf16[27,16], index: 1, kind: input, shape index: {}]
  %s2 = inlined_call_operand.vmem [shape: f32[1,16], index: 2, kind: input, shape index: {}]
  %s3 = inlined_call_operand.vmem [shape: bf16[2,256,16], index: 3, kind: output, shape index: {}]
  %s4 = sld [smem:[#allocation0]]
  $region45: #{wdsrnet_forward.8} parent=0
    _
  %s6 = ssub.s32 1, %s4
  %s7 = scalar_select 0, %s6, %s4
  loop: start=0, step=1, limit=4
  $region2: #{wdsrnet_forward.8} parent=0 // loop_pre_header
    _
  $region3: #{wdsrnet_forward.8} parent=0 // loop_header
    %s9 = sphi 0, %s13
    %p10 = scmp.ge.s32.totalorder %s9, 4
    %s16 = sphi 0, %s28
    %s17 = sphi 0, %s24
    %s18 = sphi 0, %s16
    %s19 = sphi 0, %s17
    %s20 = sphi 0, %s18
    %s21 = sphi 0, %s19
    %s33 = sphi 0, %s35
    %s36 = sphi 0, %s33
    %s37 = sphi 0, %s36
    %s53 = sphi 0, %s37
    %s57 = sphi 0, %s57
    %s59 = sphi 0, %s57
    %s60 = sphi 0, %s59
    %s74 = sphi 0, %s60
    %s78 = sphi 0, %s78
    %s80 = sphi 0, %s78
    %s81 = sphi 0, %s80
    %s95 = sphi 0, %s81
    %s103 = sphi 0, %s105
    %s106 = sphi 0, %s103
    %s107 = sphi 0, %s106
    %s123 = sphi 0, %s107
  $region4: #{wdsrnet_forward.8} parent=0 // loop_header_branch
    %12 = sbr.rel (%p10) target = $region8
  $region5: #{wdsrnet_forward.8} parent=0 // loop_body
    %s14 = ssub.s32 %s9, 1
    %s15 = ssub.s32 %s9, 2
    %s22 = sadd.s32 1, %s17
    %p23 = scmp.ge.s32.totalorder %s22, 1
    %s24 = scalar_select %p23, 0, %s22
    %s25 = sadd.s32 1, %s16
    %s26 = scalar_select %p23, %s25, %s16
    %p27 = scmp.ge.s32.totalorder %s26, 2
    %s28 = scalar_select %p27, 0, %s26
    %s29 = ssub.s32 %s16, %s28
    %s30 = ssub.s32 %s17, %s24
    %s31 = sor.u32 %s29, %s30
    %p32 = scmp.eq.s32.totalorder %s31, 0
    %s34 = sadd.s32 %s33, 1
    %s35 = scalar_select %p32, %s33, %s34
    %p38 = pneg %p32
    %p39 = scmp.eq.s32.totalorder %s9, 1
    %p40 = por %p38, %p39
    %p41 = scmp.ne.s32.totalorder %s33, %s36
    %p42 = scmp.eq.s32.totalorder %s9, 0
    %p43 = por %p41, %p42
    %p44 = scmp.ne.s32.totalorder %s33, %s36
    %p45 = scmp.eq.s32.totalorder %s14, 1
    %p46 = por %p44, %p45
    %p47 = scmp.ne.s32.totalorder %s36, %s37
    %p48 = scmp.eq.s32.totalorder %s14, 0
    %p49 = por %p47, %p48
    %p50 = scmp.ne.s32.totalorder %s36, %s37
    %p51 = scmp.eq.s32.totalorder %s15, 1
    %p52 = por %p50, %p51
    %p54 = scmp.ne.s32.totalorder %s37, %s53
    %p55 = scmp.eq.s32.totalorder %s15, 0
    %p56 = por %p54, %p55
    %s58 = sadd.s32 %s57, 1
    %p61 = scmp.eq.s32.totalorder %s9, 1
    %p62 = scmp.ne.s32.totalorder %s57, %s59
    %p63 = scmp.eq.s32.totalorder %s9, 0
    %p64 = por %p62, %p63
    %p65 = scmp.ne.s32.totalorder %s57, %s59
    %p66 = scmp.eq.s32.totalorder %s14, 1
    %p67 = por %p65, %p66
    %p68 = scmp.ne.s32.totalorder %s59, %s60
    %p69 = scmp.eq.s32.totalorder %s14, 0
    %p70 = por %p68, %p69
    %p71 = scmp.ne.s32.totalorder %s59, %s60
    %p72 = scmp.eq.s32.totalorder %s15, 1
    %p73 = por %p71, %p72
    %p75 = scmp.ne.s32.totalorder %s60, %s74
    %p76 = scmp.eq.s32.totalorder %s15, 0
    %p77 = por %p75, %p76
    %s79 = sadd.s32 %s78, 1
    %p82 = scmp.eq.s32.totalorder %s9, 1
    %p83 = scmp.ne.s32.totalorder %s78, %s80
    %p84 = scmp.eq.s32.totalorder %s9, 0
    %p85 = por %p83, %p84
    %p86 = scmp.ne.s32.totalorder %s78, %s80
    %p87 = scmp.eq.s32.totalorder %s14, 1
    %p88 = por %p86, %p87
    %p89 = scmp.ne.s32.totalorder %s80, %s81
    %p90 = scmp.eq.s32.totalorder %s14, 0
    %p91 = por %p89, %p90
    %p92 = scmp.ne.s32.totalorder %s80, %s81
    %p93 = scmp.eq.s32.totalorder %s15, 1
    %p94 = por %p92, %p93
    %p96 = scmp.ne.s32.totalorder %s81, %s95
    %p97 = scmp.eq.s32.totalorder %s15, 0
    %p98 = por %p96, %p97
    %s99 = ssub.s32 %s16, %s28
    %s100 = ssub.s32 %s17, %s24
    %s101 = sor.u32 %s99, %s100
    %p102 = scmp.eq.s32.totalorder %s101, 0
    %s104 = sadd.s32 %s103, 1
    %s105 = scalar_select %p102, %s103, %s104
    %p108 = pneg %p102
    %p109 = scmp.eq.s32.totalorder %s9, 1
    %p110 = por %p108, %p109
    %p111 = scmp.ne.s32.totalorder %s103, %s106
    %p112 = scmp.eq.s32.totalorder %s9, 0
    %p113 = por %p111, %p112
    %p114 = scmp.ne.s32.totalorder %s103, %s106
    %p115 = scmp.eq.s32.totalorder %s14, 1
    %p116 = por %p114, %p115
    %p117 = scmp.ne.s32.totalorder %s106, %s107
    %p118 = scmp.eq.s32.totalorder %s14, 0
    %p119 = por %p117, %p118
    %p120 = scmp.ne.s32.totalorder %s106, %s107
    %p121 = scmp.eq.s32.totalorder %s15, 1
    %p122 = por %p120, %p121
    %p124 = scmp.ne.s32.totalorder %s107, %s123
    %p125 = scmp.eq.s32.totalorder %s15, 0
    %p126 = por %p124, %p125
    %p127 = scmp.le.s32.totalorder 1, %s9
    %p128 = scmp.lt.s32.totalorder %s9, 3
    %p129 = pnand %p127, %p128
    %p130 = pneg %p129
    // Predicated region
    $region9: #{wdsrnet_forward.8} parent=5 // pred_check
      _
    $region10: #{wdsrnet_forward.8} parent=5 // pred_check_branch
      %132 = sbr.rel (%p129) target = $region12
    $region11: #{wdsrnet_forward.8} parent=5 // pred_region
      %s133 = ssub.s32 %s9, 1
      // Predicated region
      $region13: #{wdsrnet_forward.8} parent=11 // pred_check
        %p134 = pneg %p70
      $region14: #{wdsrnet_forward.8} parent=11 // pred_check_branch
        %136 = sbr.rel (%p134) target = $region16
      $region15: #{wdsrnet_forward.8} parent=11 // pred_region
        _
      $region16: #{wdsrnet_forward.8} parent=11 // pred_fallthru
        _
      // Predicated region
      $region17: #{wdsrnet_forward.8} parent=11 // pred_check
        %p137 = pneg %p91
      $region18: #{wdsrnet_forward.8} parent=11 // pred_check_branch
        %139 = sbr.rel (%p137) target = $region20
      $region19: #{wdsrnet_forward.8} parent=11 // pred_region
        _
      $region20: #{wdsrnet_forward.8} parent=11 // pred_fallthru
        _
    $region12: #{wdsrnet_forward.8} parent=5 // pred_fallthru
      _
    %p140 = scmp.lt.s32.totalorder %s9, 2
    // Predicated region
    $region21: #{wdsrnet_forward.8} parent=5 // pred_check
      %p141 = pneg %p140
    $region22: #{wdsrnet_forward.8} parent=5 // pred_check_branch
      %143 = sbr.rel (%p141) target = $region24
    $region23: #{wdsrnet_forward.8} parent=5 // pred_region
      // Predicated region
      $region25: #{wdsrnet_forward.8} parent=23 // pred_check
        %p144 = pneg %p43
      $region26: #{wdsrnet_forward.8} parent=23 // pred_check_branch
        %146 = sbr.rel (%p144) target = $region28
      $region27: #{wdsrnet_forward.8} parent=23 // pred_region
        %s147 = smul.u32 32, %s17
        %p148 = scmp.lt.s32.totalorder %s16, 1
        %s149 = scalar_select %p148, %s16, 1
        %p150 = scmp.lt.s32.totalorder %s147, 31
        %s151 = scalar_select %p150, %s147, 31
        %s152 = smul.addr %s149, 32
        %s153 = sadd.s32 %s151, %s152
        %s154 = smul.addr %s153, 4
        %s155 = scalar_lea.vmem %s0, %s154
        %s156 = smul.u32 32, %s17
      $region28: #{wdsrnet_forward.8} parent=23 // pred_fallthru
        _
    $region24: #{wdsrnet_forward.8} parent=5 // pred_fallthru
      _
    %p157 = scmp.le.s32.totalorder 1, %s9
    %p158 = scmp.lt.s32.totalorder %s9, 3
    %p159 = pnand %p157, %p158
    %p160 = pneg %p159
    // Predicated region
    $region29: #{wdsrnet_forward.8} parent=5 // pred_check
      _
    $region30: #{wdsrnet_forward.8} parent=5 // pred_check_branch
      %162 = sbr.rel (%p159) target = $region32
    $region31: #{wdsrnet_forward.8} parent=5 // pred_region
      %s163 = ssub.s32 %s9, 1
      %s164 = smul.u32 32, %s19
      %p165 = scmp.lt.s32.totalorder %s18, 1
      %s166 = scalar_select %p165, %s18, 1
      %p167 = scmp.lt.s32.totalorder %s164, 31
      %s168 = scalar_select %p167, %s164, 31
      %s169 = smul.addr %s166, 32
      %s170 = sadd.s32 %s168, %s169
      %s171 = smul.addr %s170, 4
      %s172 = scalar_lea.vmem %s0, %s171
      %p173 = pneg %p49
      %p174 = pneg %p46
      %p175 = pneg %p70
      %p176 = pneg %p67
      %p177 = pneg %p91
      %p178 = pneg %p88
      %p179 = pneg %p119
      %p180 = pneg %p116
      %s181 = smul.u32 32, %s19
      %p182 = scmp.lt.s32.totalorder %s18, 1
      %s183 = scalar_select %p182, %s18, 1
      %p184 = scmp.lt.s32.totalorder %s181, 31
      %s185 = scalar_select %p184, %s181, 31
      %s186 = smul.addr %s183, 32
      %s187 = sadd.s32 %s185, %s186
      %s188 = smul.addr %s187, 4
      %s189 = scalar_lea.vmem %s3, %s188
      %s190 = smul.u32 32, %s19
      %p191 = scmp.lt.s32.totalorder %s18, 1
      %s192 = scalar_select %p191, %s18, 1
      %p193 = scmp.lt.s32.totalorder %s190, 31
      %s194 = scalar_select %p193, %s190, 31
      %s195 = smul.addr %s192, 32
      %s196 = sadd.s32 %s194, %s195
      %s197 = smul.addr %s196, 4
      %s198 = scalar_lea.vmem %s0, %s197
      %s199 = smul.u32 32, %s19
      %s200 = smul.u32 32, %s19
      %p201 = scmp.lt.s32.totalorder %s18, 1
      %s202 = scalar_select %p201, %s18, 1
      %p203 = scmp.lt.s32.totalorder %s200, 31
      %s204 = scalar_select %p203, %s200, 31
      %s205 = smul.addr %s202, 32
      %s206 = sadd.s32 %s204, %s205
      %s207 = smul.addr %s206, 4
      %s208 = scalar_lea.vmem %s3, %s207
      %s209 = smul.u32 32, %s19
      %v211 = vld [vmem:[%s198] sm:$0xf]
      %v212 = vld [vmem:[%s198 + $0x4] sm:$0xf]
      %v213 = vld [vmem:[%s198 + $0x8] sm:$0xf]
      %v214 = vld [vmem:[%s198 + $0xc] sm:$0xf]
      %v215 = vld [vmem:[%s198 + $0x10] sm:$0xf]
      %v216 = vld [vmem:[%s198 + $0x14] sm:$0xf]
      %v217 = vld [vmem:[%s198 + $0x18] sm:$0xf]
      %v218 = vld [vmem:[%s198 + $0x1c] sm:$0xf]
      %v219 = vld [vmem:[%s198 + $0x20] sm:$0xf]
      %v220 = vld [vmem:[%s198 + $0x24] sm:$0xf]
      %v221 = vld [vmem:[%s198 + $0x28] sm:$0xf]
      %v222 = vld [vmem:[%s198 + $0x2c] sm:$0xf]
      %v223 = vld [vmem:[%s198 + $0x30] sm:$0xf]
      %v224 = vld [vmem:[%s198 + $0x34] sm:$0xf]
      %v225 = vld [vmem:[%s198 + $0x38] sm:$0xf]
      %v226 = vld [vmem:[%s198 + $0x3c] sm:$0xf]
      %v227 = vld [vmem:[%s198 + $0x40] sm:$0xf]
      %v228 = vld [vmem:[%s198 + $0x44] sm:$0xf]
      %v229 = vld [vmem:[%s198 + $0x48] sm:$0xf]
      %v230 = vld [vmem:[%s198 + $0x4c] sm:$0xf]
      %v231 = vld [vmem:[%s198 + $0x50] sm:$0xf]
      %v232 = vld [vmem:[%s198 + $0x54] sm:$0xf]
      %v233 = vld [vmem:[%s198 + $0x58] sm:$0xf]
      %v234 = vld [vmem:[%s198 + $0x5c] sm:$0xf]
      %v235 = vld [vmem:[%s198 + $0x60] sm:$0xf]
      %v236 = vld [vmem:[%s198 + $0x64] sm:$0xf]
      %v237 = vld [vmem:[%s198 + $0x68] sm:$0xf]
      %v238 = vld [vmem:[%s198 + $0x6c] sm:$0xf]
      %v239 = vld [vmem:[%s198 + $0x70] sm:$0xf]
      %v240 = vld [vmem:[%s198 + $0x74] sm:$0xf]
      %v241 = vld [vmem:[%s198 + $0x78] sm:$0xf]
      %v242 = vld [vmem:[%s198 + $0x7c] sm:$0xf]
      %v243 = vld [vmem:[%s1] sm:$0xf]
      %v244 = vld [vmem:[%s1 + $0x4] sm:$0xf]
      %v245 = vld [vmem:[%s1 + $0x8] sm:$0xf]
      %v246 = vld [vmem:[%s1 + $0xc] sm:$0x3]
      %v247 = vld [vmem:[%s2] sm:$0x1]
      %v249 = vlaneseq
      %v250 = vshrl.u32 %v249, 7
      %v251 = vsub.s32 0, %v250
      %v252 = vrot.slane %v247, %v251
      %v286 = vunpack.c.l.b16 %v211
      %v287 = vunpack.c.l.b16 %v212
      %v288 = vunpack.c.l.b16 %v213
      %v289 = vunpack.c.l.b16 %v214
      %v290 = vunpack.c.l.b16 %v215
      %v291 = vunpack.c.l.b16 %v216
      %v292 = vunpack.c.l.b16 %v217
      %v293 = vunpack.c.l.b16 %v218
      %v294 = vunpack.c.l.b16 %v219
      %v295 = vunpack.c.l.b16 %v220
      %v296 = vunpack.c.l.b16 %v221
      %v297 = vunpack.c.l.b16 %v222
      %v298 = vunpack.c.l.b16 %v223
      %v299 = vunpack.c.l.b16 %v224
      %v300 = vunpack.c.l.b16 %v225
      %v301 = vunpack.c.l.b16 %v226
      %v302 = vunpack.c.l.b16 %v227
      %v303 = vunpack.c.l.b16 %v228
      %v304 = vunpack.c.l.b16 %v229
      %v305 = vunpack.c.l.b16 %v230
      %v306 = vunpack.c.l.b16 %v231
      %v307 = vunpack.c.l.b16 %v232
      %v308 = vunpack.c.l.b16 %v233
      %v309 = vunpack.c.l.b16 %v234
      %v310 = vunpack.c.l.b16 %v235
      %v311 = vunpack.c.l.b16 %v236
      %v312 = vunpack.c.l.b16 %v237
      %v313 = vunpack.c.l.b16 %v238
      %v314 = vunpack.c.l.b16 %v239
      %v315 = vunpack.c.l.b16 %v240
      %v316 = vunpack.c.l.b16 %v241
      %v317 = vunpack.c.l.b16 %v242
      %v318 = vpack.c.b16 %v287, %v286
      %v319 = vpack.c.b16 %v289, %v288
      %v320 = vpack.c.b16 %v291, %v290
      %v321 = vpack.c.b16 %v293, %v292
      %v322 = vpack.c.b16 %v295, %v294
      %v323 = vpack.c.b16 %v297, %v296
      %v324 = vpack.c.b16 %v299, %v298
      %v325 = vpack.c.b16 %v301, %v300
      %v326 = vpack.c.b16 %v303, %v302
      %v327 = vpack.c.b16 %v305, %v304
      %v328 = vpack.c.b16 %v307, %v306
      %v329 = vpack.c.b16 %v309, %v308
      %v330 = vpack.c.b16 %v311, %v310
      %v331 = vpack.c.b16 %v313, %v312
      %v332 = vpack.c.b16 %v315, %v314
      %v333 = vpack.c.b16 %v317, %v316
      %v338 = vunpack.c.l.b16 %v243
      %v339 = vunpack.c.l.b16 %v244
      %v340 = vunpack.c.l.b16 %v245
      %v341 = vunpack.c.l.b16 %v246
      %v342 = vpack.c.b16 %v339, %v338
      %v343 = vpack.c.b16 %v341, %v340
      %vm345 = vcmask 220160
      %v347 = vsel %vm345, %v318, 0
      %v350 = vsel %vm345, %v319, 0
      %v353 = vsel %vm345, %v320, 0
      %v356 = vsel %vm345, %v321, 0
      %v359 = vsel %vm345, %v322, 0
      %v362 = vsel %vm345, %v323, 0
      %v365 = vsel %vm345, %v324, 0
      %v368 = vsel %vm345, %v325, 0
      %v371 = vsel %vm345, %v326, 0
      %v374 = vsel %vm345, %v327, 0
      %v377 = vsel %vm345, %v328, 0
      %v380 = vsel %vm345, %v329, 0
      %v383 = vsel %vm345, %v330, 0
      %v386 = vsel %vm345, %v331, 0
      %v389 = vsel %vm345, %v332, 0
      %v392 = vsel %vm345, %v333, 0
      %vm394 = vcmask 1044480
      %vm395 = vcmask 1045504
      %v396 = vsel %vm394, 4294967295, 65535
      %v397 = vsel %vm395, %v396, 0
      %v399 = vand.u32 %v343, %v397
      %401 = vmatprep.subr.bf16.mxu0 0
      %402 = vmatpush1.bf16.msra.mxu0 0
      %403 = vmatprep.subr.bf16.mxu0 0
      %404 = vmatpush1.bf16.msra.mxu0 0
      %405 = vmatprep.subr.bf16.mxu0 0
      %406 = vmatpush1.bf16.msra.mxu0 0
      %407 = vmatprep.subr.bf16.mxu0 0
      %408 = vmatpush1.bf16.msra.mxu0 0
      %409 = vmatprep.subr.bf16.mxu0 0
      %410 = vmatpush1.bf16.msra.mxu0 0
      %411 = vmatprep.subr.bf16.mxu0 0
      %412 = vmatpush1.bf16.msra.mxu0 0
      %413 = vmatprep.subr.bf16.mxu0 0
      %414 = vmatpush1.bf16.msra.mxu0 %v399
      %415 = vmatprep.subr.bf16.mxu0 0
      %416 = vmatpush1.bf16.msra.mxu0 %v342
      %417 = vmatprep.subr.bf16.mxu0 0
      %418 = vmatpush2.bf16.msra.mxu0 0
      %419 = vmatprep.subr.bf16.mxu0 0
      %420 = vmatpush2.bf16.msra.mxu0 0
      %421 = vmatprep.subr.bf16.mxu0 0
      %422 = vmatpush2.bf16.msra.mxu0 0
      %423 = vmatprep.subr.bf16.mxu0 0
      %424 = vmatpush2.bf16.msra.mxu0 0
      %425 = vmatprep.subr.bf16.mxu0 0
      %426 = vmatpush2.bf16.msra.mxu0 0
      %427 = vmatprep.subr.bf16.mxu0 0
      %428 = vmatpush2.bf16.msra.mxu0 0
      %429 = vmatprep.subr.bf16.mxu0 0
      %430 = vmatpush2.bf16.msra.mxu0 0
      %431 = vmatprep.subr.bf16.mxu0 0
      %432 = vmatpush2.bf16.msra.mxu0 0
      %433 = vmatprep.mubr.bf16.mxu0 0
      %434 = vmatmul.mubr.bf16.gmra.mxu0 %v347
      %v435 = vpop.f32.mrf.mxu0
      %v436 = vadd.f32 %v252, %v435
      %v437 = vpop.f32.mrf.mxu0
      %v438 = vpop.f32.mrf.mxu0
      %v439 = vadd.f32 %v252, %v438
      %v440 = vpop.f32.mrf.mxu0
      %441 = vmatprep.mubr.bf16.mxu0 0
      %442 = vmatmul.mubr.bf16.gmra.mxu0 %v350
      %v443 = vpop.f32.mrf.mxu0
      %v444 = vadd.f32 %v252, %v443
      %v445 = vpop.f32.mrf.mxu0
      %v446 = vpop.f32.mrf.mxu0
      %v447 = vadd.f32 %v252, %v446
      %v448 = vpop.f32.mrf.mxu0
      %449 = vmatprep.mubr.bf16.mxu0 0
      %450 = vmatmul.mubr.bf16.gmra.mxu0 %v353
      %v451 = vpop.f32.mrf.mxu0
      %v452 = vadd.f32 %v252, %v451
      %v453 = vpop.f32.mrf.mxu0
      %v454 = vpop.f32.mrf.mxu0
      %v455 = vadd.f32 %v252, %v454
      %v456 = vpop.f32.mrf.mxu0
      %457 = vmatprep.mubr.bf16.mxu0 0
      %458 = vmatmul.mubr.bf16.gmra.mxu0 %v356
      %v459 = vpop.f32.mrf.mxu0
      %v460 = vadd.f32 %v252, %v459
      %v461 = vpop.f32.mrf.mxu0
      %v462 = vpop.f32.mrf.mxu0
      %v463 = vadd.f32 %v252, %v462
      %v464 = vpop.f32.mrf.mxu0
      %465 = vmatprep.mubr.bf16.mxu0 0
      %466 = vmatmul.mubr.bf16.gmra.mxu0 %v359
      %v467 = vpop.f32.mrf.mxu0
      %v468 = vadd.f32 %v252, %v467
      %v469 = vpop.f32.mrf.mxu0
      %v470 = vpop.f32.mrf.mxu0
      %v471 = vadd.f32 %v252, %v470
      %v472 = vpop.f32.mrf.mxu0
      %473 = vmatprep.mubr.bf16.mxu0 0
      %474 = vmatmul.mubr.bf16.gmra.mxu0 %v362
      %v475 = vpop.f32.mrf.mxu0
      %v476 = vadd.f32 %v252, %v475
      %v477 = vpop.f32.mrf.mxu0
      %v478 = vpop.f32.mrf.mxu0
      %v479 = vadd.f32 %v252, %v478
      %v480 = vpop.f32.mrf.mxu0
      %481 = vmatprep.mubr.bf16.mxu0 0
      %482 = vmatmul.mubr.bf16.gmra.mxu0 %v365
      %v483 = vpop.f32.mrf.mxu0
      %v484 = vadd.f32 %v252, %v483
      %v485 = vpop.f32.mrf.mxu0
      %v486 = vpop.f32.mrf.mxu0
      %v487 = vadd.f32 %v252, %v486
      %v488 = vpop.f32.mrf.mxu0
      %489 = vmatprep.mubr.bf16.mxu0 0
      %490 = vmatmul.mubr.bf16.gmra.mxu0 %v368
      %v491 = vpop.f32.mrf.mxu0
      %v492 = vadd.f32 %v252, %v491
      %v493 = vpop.f32.mrf.mxu0
      %v494 = vpop.f32.mrf.mxu0
      %v495 = vadd.f32 %v252, %v494
      %v496 = vpop.f32.mrf.mxu0
      %497 = vmatprep.mubr.bf16.mxu0 0
      %498 = vmatmul.mubr.bf16.gmra.mxu0 %v371
      %v499 = vpop.f32.mrf.mxu0
      %v500 = vadd.f32 %v252, %v499
      %v501 = vpop.f32.mrf.mxu0
      %v502 = vpop.f32.mrf.mxu0
      %v503 = vadd.f32 %v252, %v502
      %v504 = vpop.f32.mrf.mxu0
      %505 = vmatprep.mubr.bf16.mxu0 0
      %506 = vmatmul.mubr.bf16.gmra.mxu0 %v374
      %v507 = vpop.f32.mrf.mxu0
      %v508 = vadd.f32 %v252, %v507
      %v509 = vpop.f32.mrf.mxu0
      %v510 = vpop.f32.mrf.mxu0
      %v511 = vadd.f32 %v252, %v510
      %v512 = vpop.f32.mrf.mxu0
      %513 = vmatprep.mubr.bf16.mxu0 0
      %514 = vmatmul.mubr.bf16.gmra.mxu0 %v377
      %v515 = vpop.f32.mrf.mxu0
      %v516 = vadd.f32 %v252, %v515
      %v517 = vpop.f32.mrf.mxu0
      %v518 = vpop.f32.mrf.mxu0
      %v519 = vadd.f32 %v252, %v518
      %v520 = vpop.f32.mrf.mxu0
      %521 = vmatprep.mubr.bf16.mxu0 0
      %522 = vmatmul.mubr.bf16.gmra.mxu0 %v380
      %v523 = vpop.f32.mrf.mxu0
      %v524 = vadd.f32 %v252, %v523
      %v525 = vpop.f32.mrf.mxu0
      %v526 = vpop.f32.mrf.mxu0
      %v527 = vadd.f32 %v252, %v526
      %v528 = vpop.f32.mrf.mxu0
      %529 = vmatprep.mubr.bf16.mxu0 0
      %530 = vmatmul.mubr.bf16.gmra.mxu0 %v383
      %v531 = vpop.f32.mrf.mxu0
      %v532 = vadd.f32 %v252, %v531
      %v533 = vpop.f32.mrf.mxu0
      %v534 = vpop.f32.mrf.mxu0
      %v535 = vadd.f32 %v252, %v534
      %v536 = vpop.f32.mrf.mxu0
      %537 = vmatprep.mubr.bf16.mxu0 0
      %538 = vmatmul.mubr.bf16.gmra.mxu0 %v386
      %v539 = vpop.f32.mrf.mxu0
      %v540 = vadd.f32 %v252, %v539
      %v541 = vpop.f32.mrf.mxu0
      %v542 = vpop.f32.mrf.mxu0
      %v543 = vadd.f32 %v252, %v542
      %v544 = vpop.f32.mrf.mxu0
      %545 = vmatprep.mubr.bf16.mxu0 0
      %546 = vmatmul.mubr.bf16.gmra.mxu0 %v389
      %v547 = vpop.f32.mrf.mxu0
      %v548 = vadd.f32 %v252, %v547
      %v549 = vpop.f32.mrf.mxu0
      %v550 = vpop.f32.mrf.mxu0
      %v551 = vadd.f32 %v252, %v550
      %v552 = vpop.f32.mrf.mxu0
      %553 = vmatprep.mubr.bf16.mxu0 0
      %554 = vmatmul.mubr.bf16.gmra.mxu0 %v392
      %v555 = vpop.f32.mrf.mxu0
      %v556 = vadd.f32 %v252, %v555
      %v557 = vpop.f32.mrf.mxu0
      %v558 = vpop.f32.mrf.mxu0
      %v559 = vadd.f32 %v252, %v558
      %v560 = vpop.f32.mrf.mxu0
      %561 = vdwg.mxu0
      %v562 = vpack.c.bf16 %v439, %v436
      %v563 = vpack.c.bf16 %v447, %v444
      %v564 = vpack.c.bf16 %v455, %v452
      %v565 = vpack.c.bf16 %v463, %v460
      %v566 = vpack.c.bf16 %v471, %v468
      %v567 = vpack.c.bf16 %v479, %v476
      %v568 = vpack.c.bf16 %v487, %v484
      %v569 = vpack.c.bf16 %v495, %v492
      %v570 = vpack.c.bf16 %v503, %v500
      %v571 = vpack.c.bf16 %v511, %v508
      %v572 = vpack.c.bf16 %v519, %v516
      %v573 = vpack.c.bf16 %v527, %v524
      %v574 = vpack.c.bf16 %v535, %v532
      %v575 = vpack.c.bf16 %v543, %v540
      %v576 = vpack.c.bf16 %v551, %v548
      %v577 = vpack.c.bf16 %v559, %v556
      %v594 = vunpack.c.l.b16 %v562
      %v595 = vunpack.c.h.b16 %v562
      %v596 = vunpack.c.l.b16 %v563
      %v597 = vunpack.c.h.b16 %v563
      %v598 = vunpack.c.l.b16 %v564
      %v599 = vunpack.c.h.b16 %v564
      %v600 = vunpack.c.l.b16 %v565
      %v601 = vunpack.c.h.b16 %v565
      %v602 = vunpack.c.l.b16 %v566
      %v603 = vunpack.c.h.b16 %v566
      %v604 = vunpack.c.l.b16 %v567
      %v605 = vunpack.c.h.b16 %v567
      %v606 = vunpack.c.l.b16 %v568
      %v607 = vunpack.c.h.b16 %v568
      %v608 = vunpack.c.l.b16 %v569
      %v609 = vunpack.c.h.b16 %v569
      %v610 = vunpack.c.l.b16 %v570
      %v611 = vunpack.c.h.b16 %v570
      %v612 = vunpack.c.l.b16 %v571
      %v613 = vunpack.c.h.b16 %v571
      %v614 = vunpack.c.l.b16 %v572
      %v615 = vunpack.c.h.b16 %v572
      %v616 = vunpack.c.l.b16 %v573
      %v617 = vunpack.c.h.b16 %v573
      %v618 = vunpack.c.l.b16 %v574
      %v619 = vunpack.c.h.b16 %v574
      %v620 = vunpack.c.l.b16 %v575
      %v621 = vunpack.c.h.b16 %v575
      %v622 = vunpack.c.l.b16 %v576
      %v623 = vunpack.c.h.b16 %v576
      %v624 = vunpack.c.l.b16 %v577
      %v625 = vunpack.c.h.b16 %v577
      %v626 = vpack.c.b16 %v594, %v594
      %v627 = vpack.c.b16 %v595, %v595
      %v628 = vpack.c.b16 %v596, %v596
      %v629 = vpack.c.b16 %v597, %v597
      %v630 = vpack.c.b16 %v598, %v598
      %v631 = vpack.c.b16 %v599, %v599
      %v632 = vpack.c.b16 %v600, %v600
      %v633 = vpack.c.b16 %v601, %v601
      %v634 = vpack.c.b16 %v602, %v602
      %v635 = vpack.c.b16 %v603, %v603
      %v636 = vpack.c.b16 %v604, %v604
      %v637 = vpack.c.b16 %v605, %v605
      %v638 = vpack.c.b16 %v606, %v606
      %v639 = vpack.c.b16 %v607, %v607
      %v640 = vpack.c.b16 %v608, %v608
      %v641 = vpack.c.b16 %v609, %v609
      %v642 = vpack.c.b16 %v610, %v610
      %v643 = vpack.c.b16 %v611, %v611
      %v644 = vpack.c.b16 %v612, %v612
      %v645 = vpack.c.b16 %v613, %v613
      %v646 = vpack.c.b16 %v614, %v614
      %v647 = vpack.c.b16 %v615, %v615
      %v648 = vpack.c.b16 %v616, %v616
      %v649 = vpack.c.b16 %v617, %v617
      %v650 = vpack.c.b16 %v618, %v618
      %v651 = vpack.c.b16 %v619, %v619
      %v652 = vpack.c.b16 %v620, %v620
      %v653 = vpack.c.b16 %v621, %v621
      %v654 = vpack.c.b16 %v622, %v622
      %v655 = vpack.c.b16 %v623, %v623
      %v656 = vpack.c.b16 %v624, %v624
      %v657 = vpack.c.b16 %v625, %v625
      %vm690 = vcmask 125952
      %691 = vst.msk [vmem:[%s208] sm:$0xf] %vm690, %v626
      %692 = vst.msk [vmem:[%s208 + $0x4] sm:$0xf] %vm690, %v627
      %693 = vst.msk [vmem:[%s208 + $0x8] sm:$0xf] %vm690, %v628
      %694 = vst.msk [vmem:[%s208 + $0xc] sm:$0xf] %vm690, %v629
      %695 = vst.msk [vmem:[%s208 + $0x10] sm:$0xf] %vm690, %v630
      %696 = vst.msk [vmem:[%s208 + $0x14] sm:$0xf] %vm690, %v631
      %697 = vst.msk [vmem:[%s208 + $0x18] sm:$0xf] %vm690, %v632
      %698 = vst.msk [vmem:[%s208 + $0x1c] sm:$0xf] %vm690, %v633
      %699 = vst.msk [vmem:[%s208 + $0x20] sm:$0xf] %vm690, %v634
      %700 = vst.msk [vmem:[%s208 + $0x24] sm:$0xf] %vm690, %v635
      %701 = vst.msk [vmem:[%s208 + $0x28] sm:$0xf] %vm690, %v636
      %702 = vst.msk [vmem:[%s208 + $0x2c] sm:$0xf] %vm690, %v637
      %703 = vst.msk [vmem:[%s208 + $0x30] sm:$0xf] %vm690, %v638
      %704 = vst.msk [vmem:[%s208 + $0x34] sm:$0xf] %vm690, %v639
      %705 = vst.msk [vmem:[%s208 + $0x38] sm:$0xf] %vm690, %v640
      %706 = vst.msk [vmem:[%s208 + $0x3c] sm:$0xf] %vm690, %v641
      %707 = vst.msk [vmem:[%s208 + $0x40] sm:$0xf] %vm690, %v642
      %708 = vst.msk [vmem:[%s208 + $0x44] sm:$0xf] %vm690, %v643
      %709 = vst.msk [vmem:[%s208 + $0x48] sm:$0xf] %vm690, %v644
      %710 = vst.msk [vmem:[%s208 + $0x4c] sm:$0xf] %vm690, %v645
      %711 = vst.msk [vmem:[%s208 + $0x50] sm:$0xf] %vm690, %v646
      %712 = vst.msk [vmem:[%s208 + $0x54] sm:$0xf] %vm690, %v647
      %713 = vst.msk [vmem:[%s208 + $0x58] sm:$0xf] %vm690, %v648
      %714 = vst.msk [vmem:[%s208 + $0x5c] sm:$0xf] %vm690, %v649
      %715 = vst.msk [vmem:[%s208 + $0x60] sm:$0xf] %vm690, %v650
      %716 = vst.msk [vmem:[%s208 + $0x64] sm:$0xf] %vm690, %v651
      %717 = vst.msk [vmem:[%s208 + $0x68] sm:$0xf] %vm690, %v652
      %718 = vst.msk [vmem:[%s208 + $0x6c] sm:$0xf] %vm690, %v653
      %719 = vst.msk [vmem:[%s208 + $0x70] sm:$0xf] %vm690, %v654
      %720 = vst.msk [vmem:[%s208 + $0x74] sm:$0xf] %vm690, %v655
      %721 = vst.msk [vmem:[%s208 + $0x78] sm:$0xf] %vm690, %v656
      %722 = vst.msk [vmem:[%s208 + $0x7c] sm:$0xf] %vm690, %v657
      %s723 = smul.u32 32, %s19
      %p724 = scmp.lt.s32.totalorder %s18, 1
      %s725 = scalar_select %p724, %s18, 1
      %p726 = scmp.lt.s32.totalorder %s723, 31
      %s727 = scalar_select %p726, %s723, 31
      %s728 = smul.addr %s725, 32
      %s729 = sadd.s32 %s727, %s728
      %s730 = smul.addr %s729, 4
      %s731 = scalar_lea.vmem %s3, %s730
      // Predicated region
      $region33: #{wdsrnet_forward.8} parent=31 // pred_check
        %p732 = pneg %p116
      $region34: #{wdsrnet_forward.8} parent=31 // pred_check_branch
        %734 = sbr.rel (%p732) target = $region36
      $region35: #{wdsrnet_forward.8} parent=31 // pred_region
        %s735 = smul.u32 32, %s19
      $region36: #{wdsrnet_forward.8} parent=31 // pred_fallthru
        _
    $region32: #{wdsrnet_forward.8} parent=5 // pred_fallthru
      _
    %p736 = scmp.le.s32.totalorder 2, %s9
    // Predicated region
    $region37: #{wdsrnet_forward.8} parent=5 // pred_check
      %p737 = pneg %p736
    $region38: #{wdsrnet_forward.8} parent=5 // pred_check_branch
      %739 = sbr.rel (%p737) target = $region40
    $region39: #{wdsrnet_forward.8} parent=5 // pred_region
      %s740 = ssub.s32 %s9, 2
      // Predicated region
      $region41: #{wdsrnet_forward.8} parent=39 // pred_check
        %p741 = pneg %p122
      $region42: #{wdsrnet_forward.8} parent=39 // pred_check_branch
        %743 = sbr.rel (%p741) target = $region44
      $region43: #{wdsrnet_forward.8} parent=39 // pred_region
        %s744 = smul.u32 32, %s21
        %p745 = scmp.lt.s32.totalorder %s20, 1
        %s746 = scalar_select %p745, %s20, 1
        %p747 = scmp.lt.s32.totalorder %s744, 31
        %s748 = scalar_select %p747, %s744, 31
        %s749 = smul.addr %s746, 32
        %s750 = sadd.s32 %s748, %s749
        %s751 = smul.addr %s750, 4
        %s752 = scalar_lea.vmem %s3, %s751
      $region44: #{wdsrnet_forward.8} parent=39 // pred_fallthru
        _
    $region40: #{wdsrnet_forward.8} parent=5 // pred_fallthru
      _
  $region6: #{wdsrnet_forward.8} parent=0 // loop_footer
    %s13 = sadd.s32 1, %s9
  $region7: #{wdsrnet_forward.8} parent=0 // loop_footer_branch
    %8 = sbr.rel target = $region3
  $region8: #{wdsrnet_forward.8} parent=0 // loop_exit
    _

// kernel: wdsrnet_forward.9
$region0: #{wdsrnet_forward.9}
  #allocation0 [shape = 'u32[]', space=smem, size = 0x4, offset = 0x4, fixed_abs, tag = 'smem constant byte address 0x4 - core index']
  #allocation1 [shape = 'u32[144,128]{1,0:T(1,128)}', space=vmem, size = 0x12000, scoped, tag = 'internal scratch']
  %s0 = inlined_call_operand.vmem [shape: bf16[2,256,144], index: 0, kind: input, shape index: {}]
  %s1 = inlined_call_operand.vmem [shape: bf16[144,96], index: 1, kind: input, shape index: {}]
  %s2 = inlined_call_operand.vmem [shape: f32[1,96], index: 2, kind: input, shape index: {}]
  %s3 = inlined_call_operand.vmem [shape: bf16[2,256,96], index: 3, kind: output, shape index: {}]
  %s4 = sld [smem:[#allocation0]]
  $region45: #{wdsrnet_forward.9} parent=0
    _
  %s6 = ssub.s32 1, %s4
  %s7 = scalar_select 0, %s6, %s4
  loop: start=0, step=1, limit=4
  $region2: #{wdsrnet_forward.9} parent=0 // loop_pre_header
    _
  $region3: #{wdsrnet_forward.9} parent=0 // loop_header
    %s9 = sphi 0, %s13
    %p10 = scmp.ge.s32.totalorder %s9, 4
    %s16 = sphi 0, %s28
    %s17 = sphi 0, %s24
    %s18 = sphi 0, %s16
    %s19 = sphi 0, %s17
    %s20 = sphi 0, %s18
    %s21 = sphi 0, %s19
    %s33 = sphi 0, %s35
    %s36 = sphi 0, %s33
    %s37 = sphi 0, %s36
    %s53 = sphi 0, %s37
    %s57 = sphi 0, %s57
    %s59 = sphi 0, %s57
    %s60 = sphi 0, %s59
    %s74 = sphi 0, %s60
    %s78 = sphi 0, %s78
    %s80 = sphi 0, %s78
    %s81 = sphi 0, %s80
    %s95 = sphi 0, %s81
    %s103 = sphi 0, %s105
    %s106 = sphi 0, %s103
    %s107 = sphi 0, %s106
    %s123 = sphi 0, %s107
  $region4: #{wdsrnet_forward.9} parent=0 // loop_header_branch
    %12 = sbr.rel (%p10) target = $region8
  $region5: #{wdsrnet_forward.9} parent=0 // loop_body
    %s14 = ssub.s32 %s9, 1
    %s15 = ssub.s32 %s9, 2
    %s22 = sadd.s32 1, %s17
    %p23 = scmp.ge.s32.totalorder %s22, 1
    %s24 = scalar_select %p23, 0, %s22
    %s25 = sadd.s32 1, %s16
    %s26 = scalar_select %p23, %s25, %s16
    %p27 = scmp.ge.s32.totalorder %s26, 2
    %s28 = scalar_select %p27, 0, %s26
    %s29 = ssub.s32 %s16, %s28
    %s30 = ssub.s32 %s17, %s24
    %s31 = sor.u32 %s29, %s30
    %p32 = scmp.eq.s32.totalorder %s31, 0
    %s34 = sadd.s32 %s33, 1
    %s35 = scalar_select %p32, %s33, %s34
    %p38 = pneg %p32
    %p39 = scmp.eq.s32.totalorder %s9, 1
    %p40 = por %p38, %p39
    %p41 = scmp.ne.s32.totalorder %s33, %s36
    %p42 = scmp.eq.s32.totalorder %s9, 0
    %p43 = por %p41, %p42
    %p44 = scmp.ne.s32.totalorder %s33, %s36
    %p45 = scmp.eq.s32.totalorder %s14, 1
    %p46 = por %p44, %p45
    %p47 = scmp.ne.s32.totalorder %s36, %s37
    %p48 = scmp.eq.s32.totalorder %s14, 0
    %p49 = por %p47, %p48
    %p50 = scmp.ne.s32.totalorder %s36, %s37
    %p51 = scmp.eq.s32.totalorder %s15, 1
    %p52 = por %p50, %p51
    %p54 = scmp.ne.s32.totalorder %s37, %s53
    %p55 = scmp.eq.s32.totalorder %s15, 0
    %p56 = por %p54, %p55
    %s58 = sadd.s32 %s57, 1
    %p61 = scmp.eq.s32.totalorder %s9, 1
    %p62 = scmp.ne.s32.totalorder %s57, %s59
    %p63 = scmp.eq.s32.totalorder %s9, 0
    %p64 = por %p62, %p63
    %p65 = scmp.ne.s32.totalorder %s57, %s59
    %p66 = scmp.eq.s32.totalorder %s14, 1
    %p67 = por %p65, %p66
    %p68 = scmp.ne.s32.totalorder %s59, %s60
    %p69 = scmp.eq.s32.totalorder %s14, 0
    %p70 = por %p68, %p69
    %p71 = scmp.ne.s32.totalorder %s59, %s60
    %p72 = scmp.eq.s32.totalorder %s15, 1
    %p73 = por %p71, %p72
    %p75 = scmp.ne.s32.totalorder %s60, %s74
    %p76 = scmp.eq.s32.totalorder %s15, 0
    %p77 = por %p75, %p76
    %s79 = sadd.s32 %s78, 1
    %p82 = scmp.eq.s32.totalorder %s9, 1
    %p83 = scmp.ne.s32.totalorder %s78, %s80
    %p84 = scmp.eq.s32.totalorder %s9, 0
    %p85 = por %p83, %p84
    %p86 = scmp.ne.s32.totalorder %s78, %s80
    %p87 = scmp.eq.s32.totalorder %s14, 1
    %p88 = por %p86, %p87
    %p89 = scmp.ne.s32.totalorder %s80, %s81
    %p90 = scmp.eq.s32.totalorder %s14, 0
    %p91 = por %p89, %p90
    %p92 = scmp.ne.s32.totalorder %s80, %s81
    %p93 = scmp.eq.s32.totalorder %s15, 1
    %p94 = por %p92, %p93
    %p96 = scmp.ne.s32.totalorder %s81, %s95
    %p97 = scmp.eq.s32.totalorder %s15, 0
    %p98 = por %p96, %p97
    %s99 = ssub.s32 %s16, %s28
    %s100 = ssub.s32 %s17, %s24
    %s101 = sor.u32 %s99, %s100
    %p102 = scmp.eq.s32.totalorder %s101, 0
    %s104 = sadd.s32 %s103, 1
    %s105 = scalar_select %p102, %s103, %s104
    %p108 = pneg %p102
    %p109 = scmp.eq.s32.totalorder %s9, 1
    %p110 = por %p108, %p109
    %p111 = scmp.ne.s32.totalorder %s103, %s106
    %p112 = scmp.eq.s32.totalorder %s9, 0
    %p113 = por %p111, %p112
    %p114 = scmp.ne.s32.totalorder %s103, %s106
    %p115 = scmp.eq.s32.totalorder %s14, 1
    %p116 = por %p114, %p115
    %p117 = scmp.ne.s32.totalorder %s106, %s107
    %p118 = scmp.eq.s32.totalorder %s14, 0
    %p119 = por %p117, %p118
    %p120 = scmp.ne.s32.totalorder %s106, %s107
    %p121 = scmp.eq.s32.totalorder %s15, 1
    %p122 = por %p120, %p121
    %p124 = scmp.ne.s32.totalorder %s107, %s123
    %p125 = scmp.eq.s32.totalorder %s15, 0
    %p126 = por %p124, %p125
    %p127 = scmp.le.s32.totalorder 1, %s9
    %p128 = scmp.lt.s32.totalorder %s9, 3
    %p129 = pnand %p127, %p128
    %p130 = pneg %p129
    // Predicated region
    $region9: #{wdsrnet_forward.9} parent=5 // pred_check
      _
    $region10: #{wdsrnet_forward.9} parent=5 // pred_check_branch
      %132 = sbr.rel (%p129) target = $region12
    $region11: #{wdsrnet_forward.9} parent=5 // pred_region
      %s133 = ssub.s32 %s9, 1
      // Predicated region
      $region13: #{wdsrnet_forward.9} parent=11 // pred_check
        %p134 = pneg %p70
      $region14: #{wdsrnet_forward.9} parent=11 // pred_check_branch
        %136 = sbr.rel (%p134) target = $region16
      $region15: #{wdsrnet_forward.9} parent=11 // pred_region
        _
      $region16: #{wdsrnet_forward.9} parent=11 // pred_fallthru
        _
      // Predicated region
      $region17: #{wdsrnet_forward.9} parent=11 // pred_check
        %p137 = pneg %p91
      $region18: #{wdsrnet_forward.9} parent=11 // pred_check_branch
        %139 = sbr.rel (%p137) target = $region20
      $region19: #{wdsrnet_forward.9} parent=11 // pred_region
        _
      $region20: #{wdsrnet_forward.9} parent=11 // pred_fallthru
        _
    $region12: #{wdsrnet_forward.9} parent=5 // pred_fallthru
      _
    %p140 = scmp.lt.s32.totalorder %s9, 2
    // Predicated region
    $region21: #{wdsrnet_forward.9} parent=5 // pred_check
      %p141 = pneg %p140
    $region22: #{wdsrnet_forward.9} parent=5 // pred_check_branch
      %143 = sbr.rel (%p141) target = $region24
    $region23: #{wdsrnet_forward.9} parent=5 // pred_region
      // Predicated region
      $region25: #{wdsrnet_forward.9} parent=23 // pred_check
        %p144 = pneg %p43
      $region26: #{wdsrnet_forward.9} parent=23 // pred_check_branch
        %146 = sbr.rel (%p144) target = $region28
      $region27: #{wdsrnet_forward.9} parent=23 // pred_region
        %s147 = smul.u32 32, %s17
        %p148 = scmp.lt.s32.totalorder %s16, 1
        %s149 = scalar_select %p148, %s16, 1
        %p150 = scmp.lt.s32.totalorder %s147, 31
        %s151 = scalar_select %p150, %s147, 31
        %s152 = smul.addr %s151, 2
        %s153 = smul.addr %s149, 64
        %s154 = sadd.s32 %s152, %s153
        %s155 = smul.addr %s154, 4
        %s156 = scalar_lea.vmem %s0, %s155
        %s157 = smul.u32 32, %s17
      $region28: #{wdsrnet_forward.9} parent=23 // pred_fallthru
        _
    $region24: #{wdsrnet_forward.9} parent=5 // pred_fallthru
      _
    %p158 = scmp.le.s32.totalorder 1, %s9
    %p159 = scmp.lt.s32.totalorder %s9, 3
    %p160 = pnand %p158, %p159
    %p161 = pneg %p160
    // Predicated region
    $region29: #{wdsrnet_forward.9} parent=5 // pred_check
      _
    $region30: #{wdsrnet_forward.9} parent=5 // pred_check_branch
      %163 = sbr.rel (%p160) target = $region32
    $region31: #{wdsrnet_forward.9} parent=5 // pred_region
      %s164 = ssub.s32 %s9, 1
      %s165 = smul.u32 32, %s19
      %p166 = scmp.lt.s32.totalorder %s18, 1
      %s167 = scalar_select %p166, %s18, 1
      %p168 = scmp.lt.s32.totalorder %s165, 31
      %s169 = scalar_select %p168, %s165, 31
      %s170 = smul.addr %s169, 2
      %s171 = smul.addr %s167, 64
      %s172 = sadd.s32 %s170, %s171
      %s173 = smul.addr %s172, 4
      %s174 = scalar_lea.vmem %s0, %s173
      %p175 = pneg %p49
      %p176 = pneg %p46
      %p177 = pneg %p70
      %p178 = pneg %p67
      %p179 = pneg %p91
      %p180 = pneg %p88
      %p181 = pneg %p119
      %p182 = pneg %p116
      %s183 = smul.u32 32, %s19
      %p184 = scmp.lt.s32.totalorder %s18, 1
      %s185 = scalar_select %p184, %s18, 1
      %p186 = scmp.lt.s32.totalorder %s183, 31
      %s187 = scalar_select %p186, %s183, 31
      %s188 = smul.addr %s185, 32
      %s189 = sadd.s32 %s187, %s188
      %s190 = smul.addr %s189, 4
      %s191 = scalar_lea.vmem %s3, %s190
      %s192 = smul.u32 32, %s19
      %p193 = scmp.lt.s32.totalorder %s18, 1
      %s194 = scalar_select %p193, %s18, 1
      %p195 = scmp.lt.s32.totalorder %s192, 31
      %s196 = scalar_select %p195, %s192, 31
      %s197 = smul.addr %s196, 2
      %s198 = smul.addr %s194, 64
      %s199 = sadd.s32 %s197, %s198
      %s200 = smul.addr %s199, 4
      %s201 = scalar_lea.vmem %s0, %s200
      %s202 = smul.u32 32, %s19
      %s203 = smul.u32 32, %s19
      %p204 = scmp.lt.s32.totalorder %s18, 1
      %s205 = scalar_select %p204, %s18, 1
      %p206 = scmp.lt.s32.totalorder %s203, 31
      %s207 = scalar_select %p206, %s203, 31
      %s208 = smul.addr %s205, 32
      %s209 = sadd.s32 %s207, %s208
      %s210 = smul.addr %s209, 4
      %s211 = scalar_lea.vmem %s3, %s210
      %s212 = smul.u32 32, %s19
      %v214 = vld [vmem:[%s201] sm:$0xff]
      %v215 = vld [vmem:[%s201 + $0x8] sm:$0xff]
      %v216 = vld [vmem:[%s201 + $0x10] sm:$0xff]
      %v217 = vld [vmem:[%s201 + $0x18] sm:$0xff]
      %v218 = vld [vmem:[%s201 + $0x20] sm:$0xff]
      %v219 = vld [vmem:[%s201 + $0x28] sm:$0xff]
      %v220 = vld [vmem:[%s201 + $0x30] sm:$0xff]
      %v221 = vld [vmem:[%s201 + $0x38] sm:$0xff]
      %v222 = vld [vmem:[%s201 + $0x40] sm:$0xff]
      %v223 = vld [vmem:[%s201 + $0x48] sm:$0xff]
      %v224 = vld [vmem:[%s201 + $0x50] sm:$0xff]
      %v225 = vld [vmem:[%s201 + $0x58] sm:$0xff]
      %v226 = vld [vmem:[%s201 + $0x60] sm:$0xff]
      %v227 = vld [vmem:[%s201 + $0x68] sm:$0xff]
      %v228 = vld [vmem:[%s201 + $0x70] sm:$0xff]
      %v229 = vld [vmem:[%s201 + $0x78] sm:$0xff]
      %v230 = vld [vmem:[%s201 + $0x80] sm:$0xff]
      %v231 = vld [vmem:[%s201 + $0x88] sm:$0xff]
      %v232 = vld [vmem:[%s201 + $0x90] sm:$0xff]
      %v233 = vld [vmem:[%s201 + $0x98] sm:$0xff]
      %v234 = vld [vmem:[%s201 + $0xa0] sm:$0xff]
      %v235 = vld [vmem:[%s201 + $0xa8] sm:$0xff]
      %v236 = vld [vmem:[%s201 + $0xb0] sm:$0xff]
      %v237 = vld [vmem:[%s201 + $0xb8] sm:$0xff]
      %v238 = vld [vmem:[%s201 + $0xc0] sm:$0xff]
      %v239 = vld [vmem:[%s201 + $0xc8] sm:$0xff]
      %v240 = vld [vmem:[%s201 + $0xd0] sm:$0xff]
      %v241 = vld [vmem:[%s201 + $0xd8] sm:$0xff]
      %v242 = vld [vmem:[%s201 + $0xe0] sm:$0xff]
      %v243 = vld [vmem:[%s201 + $0xe8] sm:$0xff]
      %v244 = vld [vmem:[%s201 + $0xf0] sm:$0xff]
      %v245 = vld [vmem:[%s201 + $0xf8] sm:$0xff]
      %v246 = vld [vmem:[%s1] sm:$0xf]
      %v247 = vld [vmem:[%s1 + $0x4] sm:$0xf]
      %v248 = vld [vmem:[%s1 + $0x8] sm:$0xf]
      %v249 = vld [vmem:[%s1 + $0xc] sm:$0xf]
      %v250 = vld [vmem:[%s1 + $0x10] sm:$0xf]
      %v251 = vld [vmem:[%s1 + $0x14] sm:$0xf]
      %v252 = vld [vmem:[%s1 + $0x18] sm:$0xf]
      %v253 = vld [vmem:[%s1 + $0x1c] sm:$0xf]
      %v254 = vld [vmem:[%s1 + $0x20] sm:$0xf]
      %v255 = vld [vmem:[%s1 + $0x24] sm:$0xf]
      %v256 = vld [vmem:[%s1 + $0x28] sm:$0xf]
      %v257 = vld [vmem:[%s1 + $0x2c] sm:$0xf]
      %v258 = vld [vmem:[%s1 + $0x30] sm:$0xf]
      %v259 = vld [vmem:[%s1 + $0x34] sm:$0xf]
      %v260 = vld [vmem:[%s1 + $0x38] sm:$0xf]
      %v261 = vld [vmem:[%s1 + $0x3c] sm:$0xf]
      %v262 = vld [vmem:[%s1 + $0x40] sm:$0xf]
      %v263 = vld [vmem:[%s1 + $0x44] sm:$0xf]
      %v264 = vld [vmem:[%s2] sm:$0x1]
      %v266 = vlaneseq
      %v267 = vshrl.u32 %v266, 7
      %v268 = vsub.s32 0, %v267
      %v269 = vrot.slane %v264, %v268
      %v303 = vunpack.c.l.b16 %v214
      %v304 = vunpack.c.h.b16 %v214
      %v305 = vunpack.c.l.b16 %v215
      %v306 = vunpack.c.h.b16 %v215
      %v307 = vunpack.c.l.b16 %v216
      %v308 = vunpack.c.h.b16 %v216
      %v309 = vunpack.c.l.b16 %v217
      %v310 = vunpack.c.h.b16 %v217
      %v311 = vunpack.c.l.b16 %v218
      %v312 = vunpack.c.h.b16 %v218
      %v313 = vunpack.c.l.b16 %v219
      %v314 = vunpack.c.h.b16 %v219
      %v315 = vunpack.c.l.b16 %v220
      %v316 = vunpack.c.h.b16 %v220
      %v317 = vunpack.c.l.b16 %v221
      %v318 = vunpack.c.h.b16 %v221
      %v319 = vunpack.c.l.b16 %v222
      %v320 = vunpack.c.h.b16 %v222
      %v321 = vunpack.c.l.b16 %v223
      %v322 = vunpack.c.h.b16 %v223
      %v323 = vunpack.c.l.b16 %v224
      %v324 = vunpack.c.h.b16 %v224
      %v325 = vunpack.c.l.b16 %v225
      %v326 = vunpack.c.h.b16 %v225
      %v327 = vunpack.c.l.b16 %v226
      %v328 = vunpack.c.h.b16 %v226
      %v329 = vunpack.c.l.b16 %v227
      %v330 = vunpack.c.h.b16 %v227
      %v331 = vunpack.c.l.b16 %v228
      %v332 = vunpack.c.h.b16 %v228
      %v333 = vunpack.c.l.b16 %v229
      %v334 = vunpack.c.h.b16 %v229
      %v335 = vunpack.c.l.b16 %v230
      %v336 = vunpack.c.h.b16 %v230
      %v337 = vunpack.c.l.b16 %v231
      %v338 = vunpack.c.h.b16 %v231
      %v339 = vunpack.c.l.b16 %v232
      %v340 = vunpack.c.h.b16 %v232
      %v341 = vunpack.c.l.b16 %v233
      %v342 = vunpack.c.h.b16 %v233
      %v343 = vunpack.c.l.b16 %v234
      %v344 = vunpack.c.h.b16 %v234
      %v345 = vunpack.c.l.b16 %v235
      %v346 = vunpack.c.h.b16 %v235
      %v347 = vunpack.c.l.b16 %v236
      %v348 = vunpack.c.h.b16 %v236
      %v349 = vunpack.c.l.b16 %v237
      %v350 = vunpack.c.h.b16 %v237
      %v351 = vunpack.c.l.b16 %v238
      %v352 = vunpack.c.h.b16 %v238
      %v353 = vunpack.c.l.b16 %v239
      %v354 = vunpack.c.h.b16 %v239
      %v355 = vunpack.c.l.b16 %v240
      %v356 = vunpack.c.h.b16 %v240
      %v357 = vunpack.c.l.b16 %v241
      %v358 = vunpack.c.h.b16 %v241
      %v359 = vunpack.c.l.b16 %v242
      %v360 = vunpack.c.h.b16 %v242
      %v361 = vunpack.c.l.b16 %v243
      %v362 = vunpack.c.h.b16 %v243
      %v363 = vunpack.c.l.b16 %v244
      %v364 = vunpack.c.h.b16 %v244
      %v365 = vunpack.c.l.b16 %v245
      %v366 = vunpack.c.h.b16 %v245
      %v367 = vpack.c.b16 %v305, %v303
      %v368 = vpack.c.b16 %v306, %v304
      %v369 = vpack.c.b16 %v309, %v307
      %v370 = vpack.c.b16 %v310, %v308
      %v371 = vpack.c.b16 %v313, %v311
      %v372 = vpack.c.b16 %v314, %v312
      %v373 = vpack.c.b16 %v317, %v315
      %v374 = vpack.c.b16 %v318, %v316
      %v375 = vpack.c.b16 %v321, %v319
      %v376 = vpack.c.b16 %v322, %v320
      %v377 = vpack.c.b16 %v325, %v323
      %v378 = vpack.c.b16 %v326, %v324
      %v379 = vpack.c.b16 %v329, %v327
      %v380 = vpack.c.b16 %v330, %v328
      %v381 = vpack.c.b16 %v333, %v331
      %v382 = vpack.c.b16 %v334, %v332
      %v383 = vpack.c.b16 %v337, %v335
      %v384 = vpack.c.b16 %v338, %v336
      %v385 = vpack.c.b16 %v341, %v339
      %v386 = vpack.c.b16 %v342, %v340
      %v387 = vpack.c.b16 %v345, %v343
      %v388 = vpack.c.b16 %v346, %v344
      %v389 = vpack.c.b16 %v349, %v347
      %v390 = vpack.c.b16 %v350, %v348
      %v391 = vpack.c.b16 %v353, %v351
      %v392 = vpack.c.b16 %v354, %v352
      %v393 = vpack.c.b16 %v357, %v355
      %v394 = vpack.c.b16 %v358, %v356
      %v395 = vpack.c.b16 %v361, %v359
      %v396 = vpack.c.b16 %v362, %v360
      %v397 = vpack.c.b16 %v365, %v363
      %v398 = vpack.c.b16 %v366, %v364
      %v433 = vunpack.c.l.b16 %v246
      %v434 = vunpack.c.l.b16 %v247
      %v435 = vunpack.c.l.b16 %v248
      %v436 = vunpack.c.l.b16 %v249
      %v437 = vunpack.c.l.b16 %v250
      %v438 = vunpack.c.l.b16 %v251
      %v439 = vunpack.c.l.b16 %v252
      %v440 = vunpack.c.l.b16 %v253
      %v441 = vunpack.c.l.b16 %v254
      %v442 = vunpack.c.l.b16 %v255
      %v443 = vunpack.c.l.b16 %v256
      %v444 = vunpack.c.l.b16 %v257
      %v445 = vunpack.c.l.b16 %v258
      %v446 = vunpack.c.l.b16 %v259
      %v447 = vunpack.c.l.b16 %v260
      %v448 = vunpack.c.l.b16 %v261
      %v449 = vunpack.c.l.b16 %v262
      %v450 = vunpack.c.l.b16 %v263
      %v451 = vpack.c.b16 %v434, %v433
      %v452 = vpack.c.b16 %v436, %v435
      %v453 = vpack.c.b16 %v438, %v437
      %v454 = vpack.c.b16 %v440, %v439
      %v455 = vpack.c.b16 %v442, %v441
      %v456 = vpack.c.b16 %v444, %v443
      %v457 = vpack.c.b16 %v446, %v445
      %v458 = vpack.c.b16 %v448, %v447
      %v459 = vpack.c.b16 %v450, %v449
      %vm469 = vcmask 130048
      %v471 = vsel %vm469, %v368, 0
      %v474 = vsel %vm469, %v370, 0
      %v477 = vsel %vm469, %v372, 0
      %v480 = vsel %vm469, %v374, 0
      %v483 = vsel %vm469, %v376, 0
      %v486 = vsel %vm469, %v378, 0
      %v489 = vsel %vm469, %v380, 0
      %v492 = vsel %vm469, %v382, 0
      %v495 = vsel %vm469, %v384, 0
      %v498 = vsel %vm469, %v386, 0
      %v501 = vsel %vm469, %v388, 0
      %v504 = vsel %vm469, %v390, 0
      %v507 = vsel %vm469, %v392, 0
      %v510 = vsel %vm469, %v394, 0
      %v513 = vsel %vm469, %v396, 0
      %v516 = vsel %vm469, %v398, 0
      %518 = vmatprep.subr.bf16.mxu0 0
      %519 = vmatpush1.bf16.msra.mxu0 %v458
      %520 = vmatprep.subr.bf16.mxu0 0
      %521 = vmatpush1.bf16.msra.mxu0 %v457
      %522 = vmatprep.subr.bf16.mxu0 0
      %523 = vmatpush1.bf16.msra.mxu0 %v456
      %524 = vmatprep.subr.bf16.mxu0 0
      %525 = vmatpush1.bf16.msra.mxu0 %v455
      %526 = vmatprep.subr.bf16.mxu0 0
      %527 = vmatpush1.bf16.msra.mxu0 %v454
      %528 = vmatprep.subr.bf16.mxu0 0
      %529 = vmatpush1.bf16.msra.mxu0 %v453
      %530 = vmatprep.subr.bf16.mxu0 0
      %531 = vmatpush1.bf16.msra.mxu0 %v452
      %532 = vmatprep.subr.bf16.mxu0 0
      %533 = vmatpush1.bf16.msra.mxu0 %v451
      %534 = vmatprep.subr.bf16.mxu0 0
      %535 = vmatpush2.bf16.msra.mxu0 0
      %536 = vmatprep.subr.bf16.mxu0 0
      %537 = vmatpush2.bf16.msra.mxu0 0
      %538 = vmatprep.subr.bf16.mxu0 0
      %539 = vmatpush2.bf16.msra.mxu0 0
      %540 = vmatprep.subr.bf16.mxu0 0
      %541 = vmatpush2.bf16.msra.mxu0 0
      %542 = vmatprep.subr.bf16.mxu0 0
      %543 = vmatpush2.bf16.msra.mxu0 0
      %544 = vmatprep.subr.bf16.mxu0 0
      %545 = vmatpush2.bf16.msra.mxu0 0
      %546 = vmatprep.subr.bf16.mxu0 0
      %547 = vmatpush2.bf16.msra.mxu0 0
      %548 = vmatprep.subr.bf16.mxu0 0
      %549 = vmatpush2.bf16.msra.mxu0 %v459
      %550 = vmatprep.mubr.bf16.mxu0 %v471
      %551 = vmatmul.mubr.bf16.gmra.mxu0 %v367
      %v552 = vpop.f32.mrf.mxu0
      %v553 = vadd.f32 %v269, %v552
      %v554 = vpop.f32.mrf.mxu0
      %v555 = vpop.f32.mrf.mxu0
      %v556 = vadd.f32 %v269, %v555
      %v557 = vpop.f32.mrf.mxu0
      %558 = vmatprep.mubr.bf16.mxu0 %v474
      %559 = vmatmul.mubr.bf16.gmra.mxu0 %v369
      %v560 = vpop.f32.mrf.mxu0
      %v561 = vadd.f32 %v269, %v560
      %v562 = vpop.f32.mrf.mxu0
      %v563 = vpop.f32.mrf.mxu0
      %v564 = vadd.f32 %v269, %v563
      %v565 = vpop.f32.mrf.mxu0
      %566 = vmatprep.mubr.bf16.mxu0 %v477
      %567 = vmatmul.mubr.bf16.gmra.mxu0 %v371
      %v568 = vpop.f32.mrf.mxu0
      %v569 = vadd.f32 %v269, %v568
      %v570 = vpop.f32.mrf.mxu0
      %v571 = vpop.f32.mrf.mxu0
      %v572 = vadd.f32 %v269, %v571
      %v573 = vpop.f32.mrf.mxu0
      %574 = vmatprep.mubr.bf16.mxu0 %v480
      %575 = vmatmul.mubr.bf16.gmra.mxu0 %v373
      %v576 = vpop.f32.mrf.mxu0
      %v577 = vadd.f32 %v269, %v576
      %v578 = vpop.f32.mrf.mxu0
      %v579 = vpop.f32.mrf.mxu0
      %v580 = vadd.f32 %v269, %v579
      %v581 = vpop.f32.mrf.mxu0
      %582 = vmatprep.mubr.bf16.mxu0 %v483
      %583 = vmatmul.mubr.bf16.gmra.mxu0 %v375
      %v584 = vpop.f32.mrf.mxu0
      %v585 = vadd.f32 %v269, %v584
      %v586 = vpop.f32.mrf.mxu0
      %v587 = vpop.f32.mrf.mxu0
      %v588 = vadd.f32 %v269, %v587
      %v589 = vpop.f32.mrf.mxu0
      %590 = vmatprep.mubr.bf16.mxu0 %v486
      %591 = vmatmul.mubr.bf16.gmra.mxu0 %v377
      %v592 = vpop.f32.mrf.mxu0
      %v593 = vadd.f32 %v269, %v592
      %v594 = vpop.f32.mrf.mxu0
      %v595 = vpop.f32.mrf.mxu0
      %v596 = vadd.f32 %v269, %v595
      %v597 = vpop.f32.mrf.mxu0
      %598 = vmatprep.mubr.bf16.mxu0 %v489
      %599 = vmatmul.mubr.bf16.gmra.mxu0 %v379
      %v600 = vpop.f32.mrf.mxu0
      %v601 = vadd.f32 %v269, %v600
      %v602 = vpop.f32.mrf.mxu0
      %v603 = vpop.f32.mrf.mxu0
      %v604 = vadd.f32 %v269, %v603
      %v605 = vpop.f32.mrf.mxu0
      %606 = vmatprep.mubr.bf16.mxu0 %v492
      %607 = vmatmul.mubr.bf16.gmra.mxu0 %v381
      %v608 = vpop.f32.mrf.mxu0
      %v609 = vadd.f32 %v269, %v608
      %v610 = vpop.f32.mrf.mxu0
      %v611 = vpop.f32.mrf.mxu0
      %v612 = vadd.f32 %v269, %v611
      %v613 = vpop.f32.mrf.mxu0
      %614 = vmatprep.mubr.bf16.mxu0 %v495
      %615 = vmatmul.mubr.bf16.gmra.mxu0 %v383
      %v616 = vpop.f32.mrf.mxu0
      %v617 = vadd.f32 %v269, %v616
      %v618 = vpop.f32.mrf.mxu0
      %v619 = vpop.f32.mrf.mxu0
      %v620 = vadd.f32 %v269, %v619
      %v621 = vpop.f32.mrf.mxu0
      %622 = vmatprep.mubr.bf16.mxu0 %v498
      %623 = vmatmul.mubr.bf16.gmra.mxu0 %v385
      %v624 = vpop.f32.mrf.mxu0
      %v625 = vadd.f32 %v269, %v624
      %v626 = vpop.f32.mrf.mxu0
      %v627 = vpop.f32.mrf.mxu0
      %v628 = vadd.f32 %v269, %v627
      %v629 = vpop.f32.mrf.mxu0
      %630 = vmatprep.mubr.bf16.mxu0 %v501
      %631 = vmatmul.mubr.bf16.gmra.mxu0 %v387
      %v632 = vpop.f32.mrf.mxu0
      %v633 = vadd.f32 %v269, %v632
      %v634 = vpop.f32.mrf.mxu0
      %v635 = vpop.f32.mrf.mxu0
      %v636 = vadd.f32 %v269, %v635
      %v637 = vpop.f32.mrf.mxu0
      %638 = vmatprep.mubr.bf16.mxu0 %v504
      %639 = vmatmul.mubr.bf16.gmra.mxu0 %v389
      %v640 = vpop.f32.mrf.mxu0
      %v641 = vadd.f32 %v269, %v640
      %v642 = vpop.f32.mrf.mxu0
      %v643 = vpop.f32.mrf.mxu0
      %v644 = vadd.f32 %v269, %v643
      %v645 = vpop.f32.mrf.mxu0
      %646 = vmatprep.mubr.bf16.mxu0 %v507
      %647 = vmatmul.mubr.bf16.gmra.mxu0 %v391
      %v648 = vpop.f32.mrf.mxu0
      %v649 = vadd.f32 %v269, %v648
      %v650 = vpop.f32.mrf.mxu0
      %v651 = vpop.f32.mrf.mxu0
      %v652 = vadd.f32 %v269, %v651
      %v653 = vpop.f32.mrf.mxu0
      %654 = vmatprep.mubr.bf16.mxu0 %v510
      %655 = vmatmul.mubr.bf16.gmra.mxu0 %v393
      %v656 = vpop.f32.mrf.mxu0
      %v657 = vadd.f32 %v269, %v656
      %v658 = vpop.f32.mrf.mxu0
      %v659 = vpop.f32.mrf.mxu0
      %v660 = vadd.f32 %v269, %v659
      %v661 = vpop.f32.mrf.mxu0
      %662 = vmatprep.mubr.bf16.mxu0 %v513
      %663 = vmatmul.mubr.bf16.gmra.mxu0 %v395
      %v664 = vpop.f32.mrf.mxu0
      %v665 = vadd.f32 %v269, %v664
      %v666 = vpop.f32.mrf.mxu0
      %v667 = vpop.f32.mrf.mxu0
      %v668 = vadd.f32 %v269, %v667
      %v669 = vpop.f32.mrf.mxu0
      %670 = vmatprep.mubr.bf16.mxu0 %v516
      %671 = vmatmul.mubr.bf16.gmra.mxu0 %v397
      %v672 = vpop.f32.mrf.mxu0
      %v673 = vadd.f32 %v269, %v672
      %v674 = vpop.f32.mrf.mxu0
      %v675 = vpop.f32.mrf.mxu0
      %v676 = vadd.f32 %v269, %v675
      %v677 = vpop.f32.mrf.mxu0
      %678 = vdwg.mxu0
      %v679 = vmax.f32 %v553, 0.0
      %v680 = vmax.f32 %v556, 0.0
      %v681 = vmax.f32 %v561, 0.0
      %v682 = vmax.f32 %v564, 0.0
      %v683 = vmax.f32 %v569, 0.0
      %v684 = vmax.f32 %v572, 0.0
      %v685 = vmax.f32 %v577, 0.0
      %v686 = vmax.f32 %v580, 0.0
      %v687 = vmax.f32 %v585, 0.0
      %v688 = vmax.f32 %v588, 0.0
      %v689 = vmax.f32 %v593, 0.0
      %v690 = vmax.f32 %v596, 0.0
      %v691 = vmax.f32 %v601, 0.0
      %v692 = vmax.f32 %v604, 0.0
      %v693 = vmax.f32 %v609, 0.0
      %v694 = vmax.f32 %v612, 0.0
      %v695 = vmax.f32 %v617, 0.0
      %v696 = vmax.f32 %v620, 0.0
      %v697 = vmax.f32 %v625, 0.0
      %v698 = vmax.f32 %v628, 0.0
      %v699 = vmax.f32 %v633, 0.0
      %v700 = vmax.f32 %v636, 0.0
      %v701 = vmax.f32 %v641, 0.0
      %v702 = vmax.f32 %v644, 0.0
      %v703 = vmax.f32 %v649, 0.0
      %v704 = vmax.f32 %v652, 0.0
      %v705 = vmax.f32 %v657, 0.0
      %v706 = vmax.f32 %v660, 0.0
      %v707 = vmax.f32 %v665, 0.0
      %v708 = vmax.f32 %v668, 0.0
      %v709 = vmax.f32 %v673, 0.0
      %v710 = vmax.f32 %v676, 0.0
      %v711 = vpack.c.bf16 %v680, %v679
      %v712 = vpack.c.bf16 %v682, %v681
      %v713 = vpack.c.bf16 %v684, %v683
      %v714 = vpack.c.bf16 %v686, %v685
      %v715 = vpack.c.bf16 %v688, %v687
      %v716 = vpack.c.bf16 %v690, %v689
      %v717 = vpack.c.bf16 %v692, %v691
      %v718 = vpack.c.bf16 %v694, %v693
      %v719 = vpack.c.bf16 %v696, %v695
      %v720 = vpack.c.bf16 %v698, %v697
      %v721 = vpack.c.bf16 %v700, %v699
      %v722 = vpack.c.bf16 %v702, %v701
      %v723 = vpack.c.bf16 %v704, %v703
      %v724 = vpack.c.bf16 %v706, %v705
      %v725 = vpack.c.bf16 %v708, %v707
      %v726 = vpack.c.bf16 %v710, %v709
      %v743 = vunpack.c.l.b16 %v711
      %v744 = vunpack.c.h.b16 %v711
      %v745 = vunpack.c.l.b16 %v712
      %v746 = vunpack.c.h.b16 %v712
      %v747 = vunpack.c.l.b16 %v713
      %v748 = vunpack.c.h.b16 %v713
      %v749 = vunpack.c.l.b16 %v714
      %v750 = vunpack.c.h.b16 %v714
      %v751 = vunpack.c.l.b16 %v715
      %v752 = vunpack.c.h.b16 %v715
      %v753 = vunpack.c.l.b16 %v716
      %v754 = vunpack.c.h.b16 %v716
      %v755 = vunpack.c.l.b16 %v717
      %v756 = vunpack.c.h.b16 %v717
      %v757 = vunpack.c.l.b16 %v718
      %v758 = vunpack.c.h.b16 %v718
      %v759 = vunpack.c.l.b16 %v719
      %v760 = vunpack.c.h.b16 %v719
      %v761 = vunpack.c.l.b16 %v720
      %v762 = vunpack.c.h.b16 %v720
      %v763 = vunpack.c.l.b16 %v721
      %v764 = vunpack.c.h.b16 %v721
      %v765 = vunpack.c.l.b16 %v722
      %v766 = vunpack.c.h.b16 %v722
      %v767 = vunpack.c.l.b16 %v723
      %v768 = vunpack.c.h.b16 %v723
      %v769 = vunpack.c.l.b16 %v724
      %v770 = vunpack.c.h.b16 %v724
      %v771 = vunpack.c.l.b16 %v725
      %v772 = vunpack.c.h.b16 %v725
      %v773 = vunpack.c.l.b16 %v726
      %v774 = vunpack.c.h.b16 %v726
      %v775 = vpack.c.b16 %v743, %v743
      %v776 = vpack.c.b16 %v744, %v744
      %v777 = vpack.c.b16 %v745, %v745
      %v778 = vpack.c.b16 %v746, %v746
      %v779 = vpack.c.b16 %v747, %v747
      %v780 = vpack.c.b16 %v748, %v748
      %v781 = vpack.c.b16 %v749, %v749
      %v782 = vpack.c.b16 %v750, %v750
      %v783 = vpack.c.b16 %v751, %v751
      %v784 = vpack.c.b16 %v752, %v752
      %v785 = vpack.c.b16 %v753, %v753
      %v786 = vpack.c.b16 %v754, %v754
      %v787 = vpack.c.b16 %v755, %v755
      %v788 = vpack.c.b16 %v756, %v756
      %v789 = vpack.c.b16 %v757, %v757
      %v790 = vpack.c.b16 %v758, %v758
      %v791 = vpack.c.b16 %v759, %v759
      %v792 = vpack.c.b16 %v760, %v760
      %v793 = vpack.c.b16 %v761, %v761
      %v794 = vpack.c.b16 %v762, %v762
      %v795 = vpack.c.b16 %v763, %v763
      %v796 = vpack.c.b16 %v764, %v764
      %v797 = vpack.c.b16 %v765, %v765
      %v798 = vpack.c.b16 %v766, %v766
      %v799 = vpack.c.b16 %v767, %v767
      %v800 = vpack.c.b16 %v768, %v768
      %v801 = vpack.c.b16 %v769, %v769
      %v802 = vpack.c.b16 %v770, %v770
      %v803 = vpack.c.b16 %v771, %v771
      %v804 = vpack.c.b16 %v772, %v772
      %v805 = vpack.c.b16 %v773, %v773
      %v806 = vpack.c.b16 %v774, %v774
      %vm839 = vcmask 781312
      %840 = vst.msk [vmem:[%s211] sm:$0xf] %vm839, %v775
      %841 = vst.msk [vmem:[%s211 + $0x4] sm:$0xf] %vm839, %v776
      %842 = vst.msk [vmem:[%s211 + $0x8] sm:$0xf] %vm839, %v777
      %843 = vst.msk [vmem:[%s211 + $0xc] sm:$0xf] %vm839, %v778
      %844 = vst.msk [vmem:[%s211 + $0x10] sm:$0xf] %vm839, %v779
      %845 = vst.msk [vmem:[%s211 + $0x14] sm:$0xf] %vm839, %v780
      %846 = vst.msk [vmem:[%s211 + $0x18] sm:$0xf] %vm839, %v781
      %847 = vst.msk [vmem:[%s211 + $0x1c] sm:$0xf] %vm839, %v782
      %848 = vst.msk [vmem:[%s211 + $0x20] sm:$0xf] %vm839, %v783
      %849 = vst.msk [vmem:[%s211 + $0x24] sm:$0xf] %vm839, %v784
      %850 = vst.msk [vmem:[%s211 + $0x28] sm:$0xf] %vm839, %v785
      %851 = vst.msk [vmem:[%s211 + $0x2c] sm:$0xf] %vm839, %v786
      %852 = vst.msk [vmem:[%s211 + $0x30] sm:$0xf] %vm839, %v787
      %853 = vst.msk [vmem:[%s211 + $0x34] sm:$0xf] %vm839, %v788
      %854 = vst.msk [vmem:[%s211 + $0x38] sm:$0xf] %vm839, %v789
      %855 = vst.msk [vmem:[%s211 + $0x3c] sm:$0xf] %vm839, %v790
      %856 = vst.msk [vmem:[%s211 + $0x40] sm:$0xf] %vm839, %v791
      %857 = vst.msk [vmem:[%s211 + $0x44] sm:$0xf] %vm839, %v792
      %858 = vst.msk [vmem:[%s211 + $0x48] sm:$0xf] %vm839, %v793
      %859 = vst.msk [vmem:[%s211 + $0x4c] sm:$0xf] %vm839, %v794
      %860 = vst.msk [vmem:[%s211 + $0x50] sm:$0xf] %vm839, %v795
      %861 = vst.msk [vmem:[%s211 + $0x54] sm:$0xf] %vm839, %v796
      %862 = vst.msk [vmem:[%s211 + $0x58] sm:$0xf] %vm839, %v797
      %863 = vst.msk [vmem:[%s211 + $0x5c] sm:$0xf] %vm839, %v798
      %864 = vst.msk [vmem:[%s211 + $0x60] sm:$0xf] %vm839, %v799
      %865 = vst.msk [vmem:[%s211 + $0x64] sm:$0xf] %vm839, %v800
      %866 = vst.msk [vmem:[%s211 + $0x68] sm:$0xf] %vm839, %v801
      %867 = vst.msk [vmem:[%s211 + $0x6c] sm:$0xf] %vm839, %v802
      %868 = vst.msk [vmem:[%s211 + $0x70] sm:$0xf] %vm839, %v803
      %869 = vst.msk [vmem:[%s211 + $0x74] sm:$0xf] %vm839, %v804
      %870 = vst.msk [vmem:[%s211 + $0x78] sm:$0xf] %vm839, %v805
      %871 = vst.msk [vmem:[%s211 + $0x7c] sm:$0xf] %vm839, %v806
      %s872 = smul.u32 32, %s19
      %p873 = scmp.lt.s32.totalorder %s18, 1
      %s874 = scalar_select %p873, %s18, 1
      %p875 = scmp.lt.s32.totalorder %s872, 31
      %s876 = scalar_select %p875, %s872, 31
      %s877 = smul.addr %s874, 32
      %s878 = sadd.s32 %s876, %s877
      %s879 = smul.addr %s878, 4
      %s880 = scalar_lea.vmem %s3, %s879
      // Predicated region
      $region33: #{wdsrnet_forward.9} parent=31 // pred_check
        %p881 = pneg %p116
      $region34: #{wdsrnet_forward.9} parent=31 // pred_check_branch
        %883 = sbr.rel (%p881) target = $region36
      $region35: #{wdsrnet_forward.9} parent=31 // pred_region
        %s884 = smul.u32 32, %s19
      $region36: #{wdsrnet_forward.9} parent=31 // pred_fallthru
        _
    $region32: #{wdsrnet_forward.9} parent=5 // pred_fallthru
      _
    %p885 = scmp.le.s32.totalorder 2, %s9
    // Predicated region
    $region37: #{wdsrnet_forward.9} parent=5 // pred_check
      %p886 = pneg %p885
    $region38: #{wdsrnet_forward.9} parent=5 // pred_check_branch
      %888 = sbr.rel (%p886) target = $region40
    $region39: #{wdsrnet_forward.9} parent=5 // pred_region
      %s889 = ssub.s32 %s9, 2
      // Predicated region
      $region41: #{wdsrnet_forward.9} parent=39 // pred_check
        %p890 = pneg %p122
      $region42: #{wdsrnet_forward.9} parent=39 // pred_check_branch
        %892 = sbr.rel (%p890) target = $region44
      $region43: #{wdsrnet_forward.9} parent=39 // pred_region
        %s893 = smul.u32 32, %s21
        %p894 = scmp.lt.s32.totalorder %s20, 1
        %s895 = scalar_select %p894, %s20, 1
        %p896 = scmp.lt.s32.totalorder %s893, 31
        %s897 = scalar_select %p896, %s893, 31
        %s898 = smul.addr %s895, 32
        %s899 = sadd.s32 %s897, %s898
        %s900 = smul.addr %s899, 4
        %s901 = scalar_lea.vmem %s3, %s900
      $region44: #{wdsrnet_forward.9} parent=39 // pred_fallthru
        _
    $region40: #{wdsrnet_forward.9} parent=5 // pred_fallthru
      _
  $region6: #{wdsrnet_forward.9} parent=0 // loop_footer
    %s13 = sadd.s32 1, %s9
  $region7: #{wdsrnet_forward.9} parent=0 // loop_footer_branch
    %8 = sbr.rel target = $region3
  $region8: #{wdsrnet_forward.9} parent=0 // loop_exit
    _

// kernel: wdsrnet_forward.13
$region0: #{wdsrnet_forward.13}
  #allocation0 [shape = 'u32[]', space=smem, size = 0x4, offset = 0x4, fixed_abs, tag = 'smem constant byte address 0x4 - core index']
  #allocation1 [shape = 'u32[144,128]{1,0:T(1,128)}', space=vmem, size = 0x12000, scoped, tag = 'internal scratch']
  %s0 = inlined_call_operand.vmem [shape: bf16[2,256,144], index: 0, kind: input, shape index: {}]
  %s1 = inlined_call_operand.vmem [shape: bf16[144,48], index: 1, kind: input, shape index: {}]
  %s2 = inlined_call_operand.vmem [shape: f32[1,48], index: 2, kind: input, shape index: {}]
  %s3 = inlined_call_operand.vmem [shape: bf16[2,256,48], index: 3, kind: input, shape index: {}]
  %s4 = inlined_call_operand.vmem [shape: f32[2,256,48], index: 4, kind: output, shape index: {}]
  %s5 = sld [smem:[#allocation0]]
  $region49: #{wdsrnet_forward.13} parent=0
    _
  %s7 = ssub.s32 1, %s5
  %s8 = scalar_select 0, %s7, %s5
  loop: start=0, step=1, limit=4
  $region2: #{wdsrnet_forward.13} parent=0 // loop_pre_header
    _
  $region3: #{wdsrnet_forward.13} parent=0 // loop_header
    %s10 = sphi 0, %s14
    %p11 = scmp.ge.s32.totalorder %s10, 4
    %s17 = sphi 0, %s29
    %s18 = sphi 0, %s25
    %s19 = sphi 0, %s17
    %s20 = sphi 0, %s18
    %s21 = sphi 0, %s19
    %s22 = sphi 0, %s20
    %s34 = sphi 0, %s36
    %s37 = sphi 0, %s34
    %s38 = sphi 0, %s37
    %s54 = sphi 0, %s38
    %s58 = sphi 0, %s58
    %s60 = sphi 0, %s58
    %s61 = sphi 0, %s60
    %s75 = sphi 0, %s61
    %s79 = sphi 0, %s79
    %s81 = sphi 0, %s79
    %s82 = sphi 0, %s81
    %s96 = sphi 0, %s82
    %s104 = sphi 0, %s106
    %s107 = sphi 0, %s104
    %s108 = sphi 0, %s107
    %s124 = sphi 0, %s108
    %s132 = sphi 0, %s134
    %s135 = sphi 0, %s132
    %s136 = sphi 0, %s135
    %s152 = sphi 0, %s136
  $region4: #{wdsrnet_forward.13} parent=0 // loop_header_branch
    %13 = sbr.rel (%p11) target = $region8
  $region5: #{wdsrnet_forward.13} parent=0 // loop_body
    %s15 = ssub.s32 %s10, 1
    %s16 = ssub.s32 %s10, 2
    %s23 = sadd.s32 1, %s18
    %p24 = scmp.ge.s32.totalorder %s23, 1
    %s25 = scalar_select %p24, 0, %s23
    %s26 = sadd.s32 1, %s17
    %s27 = scalar_select %p24, %s26, %s17
    %p28 = scmp.ge.s32.totalorder %s27, 2
    %s29 = scalar_select %p28, 0, %s27
    %s30 = ssub.s32 %s17, %s29
    %s31 = ssub.s32 %s18, %s25
    %s32 = sor.u32 %s30, %s31
    %p33 = scmp.eq.s32.totalorder %s32, 0
    %s35 = sadd.s32 %s34, 1
    %s36 = scalar_select %p33, %s34, %s35
    %p39 = pneg %p33
    %p40 = scmp.eq.s32.totalorder %s10, 1
    %p41 = por %p39, %p40
    %p42 = scmp.ne.s32.totalorder %s34, %s37
    %p43 = scmp.eq.s32.totalorder %s10, 0
    %p44 = por %p42, %p43
    %p45 = scmp.ne.s32.totalorder %s34, %s37
    %p46 = scmp.eq.s32.totalorder %s15, 1
    %p47 = por %p45, %p46
    %p48 = scmp.ne.s32.totalorder %s37, %s38
    %p49 = scmp.eq.s32.totalorder %s15, 0
    %p50 = por %p48, %p49
    %p51 = scmp.ne.s32.totalorder %s37, %s38
    %p52 = scmp.eq.s32.totalorder %s16, 1
    %p53 = por %p51, %p52
    %p55 = scmp.ne.s32.totalorder %s38, %s54
    %p56 = scmp.eq.s32.totalorder %s16, 0
    %p57 = por %p55, %p56
    %s59 = sadd.s32 %s58, 1
    %p62 = scmp.eq.s32.totalorder %s10, 1
    %p63 = scmp.ne.s32.totalorder %s58, %s60
    %p64 = scmp.eq.s32.totalorder %s10, 0
    %p65 = por %p63, %p64
    %p66 = scmp.ne.s32.totalorder %s58, %s60
    %p67 = scmp.eq.s32.totalorder %s15, 1
    %p68 = por %p66, %p67
    %p69 = scmp.ne.s32.totalorder %s60, %s61
    %p70 = scmp.eq.s32.totalorder %s15, 0
    %p71 = por %p69, %p70
    %p72 = scmp.ne.s32.totalorder %s60, %s61
    %p73 = scmp.eq.s32.totalorder %s16, 1
    %p74 = por %p72, %p73
    %p76 = scmp.ne.s32.totalorder %s61, %s75
    %p77 = scmp.eq.s32.totalorder %s16, 0
    %p78 = por %p76, %p77
    %s80 = sadd.s32 %s79, 1
    %p83 = scmp.eq.s32.totalorder %s10, 1
    %p84 = scmp.ne.s32.totalorder %s79, %s81
    %p85 = scmp.eq.s32.totalorder %s10, 0
    %p86 = por %p84, %p85
    %p87 = scmp.ne.s32.totalorder %s79, %s81
    %p88 = scmp.eq.s32.totalorder %s15, 1
    %p89 = por %p87, %p88
    %p90 = scmp.ne.s32.totalorder %s81, %s82
    %p91 = scmp.eq.s32.totalorder %s15, 0
    %p92 = por %p90, %p91
    %p93 = scmp.ne.s32.totalorder %s81, %s82
    %p94 = scmp.eq.s32.totalorder %s16, 1
    %p95 = por %p93, %p94
    %p97 = scmp.ne.s32.totalorder %s82, %s96
    %p98 = scmp.eq.s32.totalorder %s16, 0
    %p99 = por %p97, %p98
    %s100 = ssub.s32 %s17, %s29
    %s101 = ssub.s32 %s18, %s25
    %s102 = sor.u32 %s100, %s101
    %p103 = scmp.eq.s32.totalorder %s102, 0
    %s105 = sadd.s32 %s104, 1
    %s106 = scalar_select %p103, %s104, %s105
    %p109 = pneg %p103
    %p110 = scmp.eq.s32.totalorder %s10, 1
    %p111 = por %p109, %p110
    %p112 = scmp.ne.s32.totalorder %s104, %s107
    %p113 = scmp.eq.s32.totalorder %s10, 0
    %p114 = por %p112, %p113
    %p115 = scmp.ne.s32.totalorder %s104, %s107
    %p116 = scmp.eq.s32.totalorder %s15, 1
    %p117 = por %p115, %p116
    %p118 = scmp.ne.s32.totalorder %s107, %s108
    %p119 = scmp.eq.s32.totalorder %s15, 0
    %p120 = por %p118, %p119
    %p121 = scmp.ne.s32.totalorder %s107, %s108
    %p122 = scmp.eq.s32.totalorder %s16, 1
    %p123 = por %p121, %p122
    %p125 = scmp.ne.s32.totalorder %s108, %s124
    %p126 = scmp.eq.s32.totalorder %s16, 0
    %p127 = por %p125, %p126
    %s128 = ssub.s32 %s17, %s29
    %s129 = ssub.s32 %s18, %s25
    %s130 = sor.u32 %s128, %s129
    %p131 = scmp.eq.s32.totalorder %s130, 0
    %s133 = sadd.s32 %s132, 1
    %s134 = scalar_select %p131, %s132, %s133
    %p137 = pneg %p131
    %p138 = scmp.eq.s32.totalorder %s10, 1
    %p139 = por %p137, %p138
    %p140 = scmp.ne.s32.totalorder %s132, %s135
    %p141 = scmp.eq.s32.totalorder %s10, 0
    %p142 = por %p140, %p141
    %p143 = scmp.ne.s32.totalorder %s132, %s135
    %p144 = scmp.eq.s32.totalorder %s15, 1
    %p145 = por %p143, %p144
    %p146 = scmp.ne.s32.totalorder %s135, %s136
    %p147 = scmp.eq.s32.totalorder %s15, 0
    %p148 = por %p146, %p147
    %p149 = scmp.ne.s32.totalorder %s135, %s136
    %p150 = scmp.eq.s32.totalorder %s16, 1
    %p151 = por %p149, %p150
    %p153 = scmp.ne.s32.totalorder %s136, %s152
    %p154 = scmp.eq.s32.totalorder %s16, 0
    %p155 = por %p153, %p154
    %p156 = scmp.le.s32.totalorder 1, %s10
    %p157 = scmp.lt.s32.totalorder %s10, 3
    %p158 = pnand %p156, %p157
    %p159 = pneg %p158
    // Predicated region
    $region9: #{wdsrnet_forward.13} parent=5 // pred_check
      _
    $region10: #{wdsrnet_forward.13} parent=5 // pred_check_branch
      %161 = sbr.rel (%p158) target = $region12
    $region11: #{wdsrnet_forward.13} parent=5 // pred_region
      %s162 = ssub.s32 %s10, 1
      // Predicated region
      $region13: #{wdsrnet_forward.13} parent=11 // pred_check
        %p163 = pneg %p71
      $region14: #{wdsrnet_forward.13} parent=11 // pred_check_branch
        %165 = sbr.rel (%p163) target = $region16
      $region15: #{wdsrnet_forward.13} parent=11 // pred_region
        _
      $region16: #{wdsrnet_forward.13} parent=11 // pred_fallthru
        _
      // Predicated region
      $region17: #{wdsrnet_forward.13} parent=11 // pred_check
        %p166 = pneg %p92
      $region18: #{wdsrnet_forward.13} parent=11 // pred_check_branch
        %168 = sbr.rel (%p166) target = $region20
      $region19: #{wdsrnet_forward.13} parent=11 // pred_region
        _
      $region20: #{wdsrnet_forward.13} parent=11 // pred_fallthru
        _
    $region12: #{wdsrnet_forward.13} parent=5 // pred_fallthru
      _
    %p169 = scmp.lt.s32.totalorder %s10, 2
    // Predicated region
    $region21: #{wdsrnet_forward.13} parent=5 // pred_check
      %p170 = pneg %p169
    $region22: #{wdsrnet_forward.13} parent=5 // pred_check_branch
      %172 = sbr.rel (%p170) target = $region24
    $region23: #{wdsrnet_forward.13} parent=5 // pred_region
      // Predicated region
      $region25: #{wdsrnet_forward.13} parent=23 // pred_check
        %p173 = pneg %p44
      $region26: #{wdsrnet_forward.13} parent=23 // pred_check_branch
        %175 = sbr.rel (%p173) target = $region28
      $region27: #{wdsrnet_forward.13} parent=23 // pred_region
        %s176 = smul.u32 32, %s18
        %p177 = scmp.lt.s32.totalorder %s17, 1
        %s178 = scalar_select %p177, %s17, 1
        %p179 = scmp.lt.s32.totalorder %s176, 31
        %s180 = scalar_select %p179, %s176, 31
        %s181 = smul.addr %s180, 2
        %s182 = smul.addr %s178, 64
        %s183 = sadd.s32 %s181, %s182
        %s184 = smul.addr %s183, 4
        %s185 = scalar_lea.vmem %s0, %s184
        %s186 = smul.u32 32, %s18
      $region28: #{wdsrnet_forward.13} parent=23 // pred_fallthru
        _
      // Predicated region
      $region29: #{wdsrnet_forward.13} parent=23 // pred_check
        %p187 = pneg %p114
      $region30: #{wdsrnet_forward.13} parent=23 // pred_check_branch
        %189 = sbr.rel (%p187) target = $region32
      $region31: #{wdsrnet_forward.13} parent=23 // pred_region
        %s190 = smul.u32 32, %s18
        %p191 = scmp.lt.s32.totalorder %s17, 1
        %s192 = scalar_select %p191, %s17, 1
        %p193 = scmp.lt.s32.totalorder %s190, 31
        %s194 = scalar_select %p193, %s190, 31
        %s195 = smul.addr %s192, 32
        %s196 = sadd.s32 %s194, %s195
        %s197 = smul.addr %s196, 4
        %s198 = scalar_lea.vmem %s3, %s197
        %s199 = smul.u32 32, %s18
      $region32: #{wdsrnet_forward.13} parent=23 // pred_fallthru
        _
    $region24: #{wdsrnet_forward.13} parent=5 // pred_fallthru
      _
    %p200 = scmp.le.s32.totalorder 1, %s10
    %p201 = scmp.lt.s32.totalorder %s10, 3
    %p202 = pnand %p200, %p201
    %p203 = pneg %p202
    // Predicated region
    $region33: #{wdsrnet_forward.13} parent=5 // pred_check
      _
    $region34: #{wdsrnet_forward.13} parent=5 // pred_check_branch
      %205 = sbr.rel (%p202) target = $region36
    $region35: #{wdsrnet_forward.13} parent=5 // pred_region
      %s206 = ssub.s32 %s10, 1
      %s207 = smul.u32 32, %s20
      %p208 = scmp.lt.s32.totalorder %s19, 1
      %s209 = scalar_select %p208, %s19, 1
      %p210 = scmp.lt.s32.totalorder %s207, 31
      %s211 = scalar_select %p210, %s207, 31
      %s212 = smul.addr %s211, 2
      %s213 = smul.addr %s209, 64
      %s214 = sadd.s32 %s212, %s213
      %s215 = smul.addr %s214, 4
      %s216 = scalar_lea.vmem %s0, %s215
      %p217 = pneg %p50
      %p218 = pneg %p47
      %p219 = pneg %p71
      %p220 = pneg %p68
      %p221 = pneg %p92
      %p222 = pneg %p89
      %s223 = smul.u32 32, %s20
      %p224 = scmp.lt.s32.totalorder %s19, 1
      %s225 = scalar_select %p224, %s19, 1
      %p226 = scmp.lt.s32.totalorder %s223, 31
      %s227 = scalar_select %p226, %s223, 31
      %s228 = smul.addr %s225, 32
      %s229 = sadd.s32 %s227, %s228
      %s230 = smul.addr %s229, 4
      %s231 = scalar_lea.vmem %s3, %s230
      %p232 = pneg %p120
      %p233 = pneg %p117
      %p234 = pneg %p148
      %p235 = pneg %p145
      %s236 = smul.u32 32, %s20
      %p237 = scmp.lt.s32.totalorder %s19, 1
      %s238 = scalar_select %p237, %s19, 1
      %p239 = scmp.lt.s32.totalorder %s236, 31
      %s240 = scalar_select %p239, %s236, 31
      %s241 = smul.addr %s238, 32
      %s242 = sadd.s32 %s240, %s241
      %s243 = smul.addr %s242, 8
      %s244 = scalar_lea.vmem %s4, %s243
      %s245 = smul.u32 32, %s20
      %p246 = scmp.lt.s32.totalorder %s19, 1
      %s247 = scalar_select %p246, %s19, 1
      %p248 = scmp.lt.s32.totalorder %s245, 31
      %s249 = scalar_select %p248, %s245, 31
      %s250 = smul.addr %s249, 2
      %s251 = smul.addr %s247, 64
      %s252 = sadd.s32 %s250, %s251
      %s253 = smul.addr %s252, 4
      %s254 = scalar_lea.vmem %s0, %s253
      %s255 = smul.u32 32, %s20
      %s256 = smul.u32 32, %s20
      %p257 = scmp.lt.s32.totalorder %s19, 1
      %s258 = scalar_select %p257, %s19, 1
      %p259 = scmp.lt.s32.totalorder %s256, 31
      %s260 = scalar_select %p259, %s256, 31
      %s261 = smul.addr %s258, 32
      %s262 = sadd.s32 %s260, %s261
      %s263 = smul.addr %s262, 4
      %s264 = scalar_lea.vmem %s3, %s263
      %s265 = smul.u32 32, %s20
      %s266 = smul.u32 32, %s20
      %p267 = scmp.lt.s32.totalorder %s19, 1
      %s268 = scalar_select %p267, %s19, 1
      %p269 = scmp.lt.s32.totalorder %s266, 31
      %s270 = scalar_select %p269, %s266, 31
      %s271 = smul.addr %s268, 32
      %s272 = sadd.s32 %s270, %s271
      %s273 = smul.addr %s272, 8
      %s274 = scalar_lea.vmem %s4, %s273
      %s275 = smul.u32 32, %s20
      %v277 = vld [vmem:[%s254] sm:$0xff]
      %v278 = vld [vmem:[%s254 + $0x8] sm:$0xff]
      %v279 = vld [vmem:[%s254 + $0x10] sm:$0xff]
      %v280 = vld [vmem:[%s254 + $0x18] sm:$0xff]
      %v281 = vld [vmem:[%s254 + $0x20] sm:$0xff]
      %v282 = vld [vmem:[%s254 + $0x28] sm:$0xff]
      %v283 = vld [vmem:[%s254 + $0x30] sm:$0xff]
      %v284 = vld [vmem:[%s254 + $0x38] sm:$0xff]
      %v285 = vld [vmem:[%s254 + $0x40] sm:$0xff]
      %v286 = vld [vmem:[%s254 + $0x48] sm:$0xff]
      %v287 = vld [vmem:[%s254 + $0x50] sm:$0xff]
      %v288 = vld [vmem:[%s254 + $0x58] sm:$0xff]
      %v289 = vld [vmem:[%s254 + $0x60] sm:$0xff]
      %v290 = vld [vmem:[%s254 + $0x68] sm:$0xff]
      %v291 = vld [vmem:[%s254 + $0x70] sm:$0xff]
      %v292 = vld [vmem:[%s254 + $0x78] sm:$0xff]
      %v293 = vld [vmem:[%s254 + $0x80] sm:$0xff]
      %v294 = vld [vmem:[%s254 + $0x88] sm:$0xff]
      %v295 = vld [vmem:[%s254 + $0x90] sm:$0xff]
      %v296 = vld [vmem:[%s254 + $0x98] sm:$0xff]
      %v297 = vld [vmem:[%s254 + $0xa0] sm:$0xff]
      %v298 = vld [vmem:[%s254 + $0xa8] sm:$0xff]
      %v299 = vld [vmem:[%s254 + $0xb0] sm:$0xff]
      %v300 = vld [vmem:[%s254 + $0xb8] sm:$0xff]
      %v301 = vld [vmem:[%s254 + $0xc0] sm:$0xff]
      %v302 = vld [vmem:[%s254 + $0xc8] sm:$0xff]
      %v303 = vld [vmem:[%s254 + $0xd0] sm:$0xff]
      %v304 = vld [vmem:[%s254 + $0xd8] sm:$0xff]
      %v305 = vld [vmem:[%s254 + $0xe0] sm:$0xff]
      %v306 = vld [vmem:[%s254 + $0xe8] sm:$0xff]
      %v307 = vld [vmem:[%s254 + $0xf0] sm:$0xff]
      %v308 = vld [vmem:[%s254 + $0xf8] sm:$0xff]
      %v309 = vld [vmem:[%s1] sm:$0xf]
      %v310 = vld [vmem:[%s1 + $0x4] sm:$0xf]
      %v311 = vld [vmem:[%s1 + $0x8] sm:$0xf]
      %v312 = vld [vmem:[%s1 + $0xc] sm:$0xf]
      %v313 = vld [vmem:[%s1 + $0x10] sm:$0xf]
      %v314 = vld [vmem:[%s1 + $0x14] sm:$0xf]
      %v315 = vld [vmem:[%s1 + $0x18] sm:$0xf]
      %v316 = vld [vmem:[%s1 + $0x1c] sm:$0xf]
      %v317 = vld [vmem:[%s1 + $0x20] sm:$0xf]
      %v318 = vld [vmem:[%s1 + $0x24] sm:$0xf]
      %v319 = vld [vmem:[%s1 + $0x28] sm:$0xf]
      %v320 = vld [vmem:[%s1 + $0x2c] sm:$0xf]
      %v321 = vld [vmem:[%s1 + $0x30] sm:$0xf]
      %v322 = vld [vmem:[%s1 + $0x34] sm:$0xf]
      %v323 = vld [vmem:[%s1 + $0x38] sm:$0xf]
      %v324 = vld [vmem:[%s1 + $0x3c] sm:$0xf]
      %v325 = vld [vmem:[%s1 + $0x40] sm:$0xf]
      %v326 = vld [vmem:[%s1 + $0x44] sm:$0xf]
      %v327 = vld [vmem:[%s2] sm:$0x1]
      %v329 = vlaneseq
      %v330 = vshrl.u32 %v329, 7
      %v331 = vsub.s32 0, %v330
      %v332 = vrot.slane %v327, %v331
      %v366 = vunpack.c.l.b16 %v277
      %v367 = vunpack.c.h.b16 %v277
      %v368 = vunpack.c.l.b16 %v278
      %v369 = vunpack.c.h.b16 %v278
      %v370 = vunpack.c.l.b16 %v279
      %v371 = vunpack.c.h.b16 %v279
      %v372 = vunpack.c.l.b16 %v280
      %v373 = vunpack.c.h.b16 %v280
      %v374 = vunpack.c.l.b16 %v281
      %v375 = vunpack.c.h.b16 %v281
      %v376 = vunpack.c.l.b16 %v282
      %v377 = vunpack.c.h.b16 %v282
      %v378 = vunpack.c.l.b16 %v283
      %v379 = vunpack.c.h.b16 %v283
      %v380 = vunpack.c.l.b16 %v284
      %v381 = vunpack.c.h.b16 %v284
      %v382 = vunpack.c.l.b16 %v285
      %v383 = vunpack.c.h.b16 %v285
      %v384 = vunpack.c.l.b16 %v286
      %v385 = vunpack.c.h.b16 %v286
      %v386 = vunpack.c.l.b16 %v287
      %v387 = vunpack.c.h.b16 %v287
      %v388 = vunpack.c.l.b16 %v288
      %v389 = vunpack.c.h.b16 %v288
      %v390 = vunpack.c.l.b16 %v289
      %v391 = vunpack.c.h.b16 %v289
      %v392 = vunpack.c.l.b16 %v290
      %v393 = vunpack.c.h.b16 %v290
      %v394 = vunpack.c.l.b16 %v291
      %v395 = vunpack.c.h.b16 %v291
      %v396 = vunpack.c.l.b16 %v292
      %v397 = vunpack.c.h.b16 %v292
      %v398 = vunpack.c.l.b16 %v293
      %v399 = vunpack.c.h.b16 %v293
      %v400 = vunpack.c.l.b16 %v294
      %v401 = vunpack.c.h.b16 %v294
      %v402 = vunpack.c.l.b16 %v295
      %v403 = vunpack.c.h.b16 %v295
      %v404 = vunpack.c.l.b16 %v296
      %v405 = vunpack.c.h.b16 %v296
      %v406 = vunpack.c.l.b16 %v297
      %v407 = vunpack.c.h.b16 %v297
      %v408 = vunpack.c.l.b16 %v298
      %v409 = vunpack.c.h.b16 %v298
      %v410 = vunpack.c.l.b16 %v299
      %v411 = vunpack.c.h.b16 %v299
      %v412 = vunpack.c.l.b16 %v300
      %v413 = vunpack.c.h.b16 %v300
      %v414 = vunpack.c.l.b16 %v301
      %v415 = vunpack.c.h.b16 %v301
      %v416 = vunpack.c.l.b16 %v302
      %v417 = vunpack.c.h.b16 %v302
      %v418 = vunpack.c.l.b16 %v303
      %v419 = vunpack.c.h.b16 %v303
      %v420 = vunpack.c.l.b16 %v304
      %v421 = vunpack.c.h.b16 %v304
      %v422 = vunpack.c.l.b16 %v305
      %v423 = vunpack.c.h.b16 %v305
      %v424 = vunpack.c.l.b16 %v306
      %v425 = vunpack.c.h.b16 %v306
      %v426 = vunpack.c.l.b16 %v307
      %v427 = vunpack.c.h.b16 %v307
      %v428 = vunpack.c.l.b16 %v308
      %v429 = vunpack.c.h.b16 %v308
      %v430 = vpack.c.b16 %v368, %v366
      %v431 = vpack.c.b16 %v369, %v367
      %v432 = vpack.c.b16 %v372, %v370
      %v433 = vpack.c.b16 %v373, %v371
      %v434 = vpack.c.b16 %v376, %v374
      %v435 = vpack.c.b16 %v377, %v375
      %v436 = vpack.c.b16 %v380, %v378
      %v437 = vpack.c.b16 %v381, %v379
      %v438 = vpack.c.b16 %v384, %v382
      %v439 = vpack.c.b16 %v385, %v383
      %v440 = vpack.c.b16 %v388, %v386
      %v441 = vpack.c.b16 %v389, %v387
      %v442 = vpack.c.b16 %v392, %v390
      %v443 = vpack.c.b16 %v393, %v391
      %v444 = vpack.c.b16 %v396, %v394
      %v445 = vpack.c.b16 %v397, %v395
      %v446 = vpack.c.b16 %v400, %v398
      %v447 = vpack.c.b16 %v401, %v399
      %v448 = vpack.c.b16 %v404, %v402
      %v449 = vpack.c.b16 %v405, %v403
      %v450 = vpack.c.b16 %v408, %v406
      %v451 = vpack.c.b16 %v409, %v407
      %v452 = vpack.c.b16 %v412, %v410
      %v453 = vpack.c.b16 %v413, %v411
      %v454 = vpack.c.b16 %v416, %v414
      %v455 = vpack.c.b16 %v417, %v415
      %v456 = vpack.c.b16 %v420, %v418
      %v457 = vpack.c.b16 %v421, %v419
      %v458 = vpack.c.b16 %v424, %v422
      %v459 = vpack.c.b16 %v425, %v423
      %v460 = vpack.c.b16 %v428, %v426
      %v461 = vpack.c.b16 %v429, %v427
      %v496 = vunpack.c.l.b16 %v309
      %v497 = vunpack.c.l.b16 %v310
      %v498 = vunpack.c.l.b16 %v311
      %v499 = vunpack.c.l.b16 %v312
      %v500 = vunpack.c.l.b16 %v313
      %v501 = vunpack.c.l.b16 %v314
      %v502 = vunpack.c.l.b16 %v315
      %v503 = vunpack.c.l.b16 %v316
      %v504 = vunpack.c.l.b16 %v317
      %v505 = vunpack.c.l.b16 %v318
      %v506 = vunpack.c.l.b16 %v319
      %v507 = vunpack.c.l.b16 %v320
      %v508 = vunpack.c.l.b16 %v321
      %v509 = vunpack.c.l.b16 %v322
      %v510 = vunpack.c.l.b16 %v323
      %v511 = vunpack.c.l.b16 %v324
      %v512 = vunpack.c.l.b16 %v325
      %v513 = vunpack.c.l.b16 %v326
      %v514 = vpack.c.b16 %v497, %v496
      %v515 = vpack.c.b16 %v499, %v498
      %v516 = vpack.c.b16 %v501, %v500
      %v517 = vpack.c.b16 %v503, %v502
      %v518 = vpack.c.b16 %v505, %v504
      %v519 = vpack.c.b16 %v507, %v506
      %v520 = vpack.c.b16 %v509, %v508
      %v521 = vpack.c.b16 %v511, %v510
      %v522 = vpack.c.b16 %v513, %v512
      %vm532 = vcmask 130048
      %v534 = vsel %vm532, %v431, 0
      %v537 = vsel %vm532, %v433, 0
      %v540 = vsel %vm532, %v435, 0
      %v543 = vsel %vm532, %v437, 0
      %v546 = vsel %vm532, %v439, 0
      %v549 = vsel %vm532, %v441, 0
      %v552 = vsel %vm532, %v443, 0
      %v555 = vsel %vm532, %v445, 0
      %v558 = vsel %vm532, %v447, 0
      %v561 = vsel %vm532, %v449, 0
      %v564 = vsel %vm532, %v451, 0
      %v567 = vsel %vm532, %v453, 0
      %v570 = vsel %vm532, %v455, 0
      %v573 = vsel %vm532, %v457, 0
      %v576 = vsel %vm532, %v459, 0
      %v579 = vsel %vm532, %v461, 0
      %581 = vmatprep.subr.bf16.mxu0 0
      %582 = vmatpush1.bf16.msra.mxu0 %v521
      %583 = vmatprep.subr.bf16.mxu0 0
      %584 = vmatpush1.bf16.msra.mxu0 %v520
      %585 = vmatprep.subr.bf16.mxu0 0
      %586 = vmatpush1.bf16.msra.mxu0 %v519
      %587 = vmatprep.subr.bf16.mxu0 0
      %588 = vmatpush1.bf16.msra.mxu0 %v518
      %589 = vmatprep.subr.bf16.mxu0 0
      %590 = vmatpush1.bf16.msra.mxu0 %v517
      %591 = vmatprep.subr.bf16.mxu0 0
      %592 = vmatpush1.bf16.msra.mxu0 %v516
      %593 = vmatprep.subr.bf16.mxu0 0
      %594 = vmatpush1.bf16.msra.mxu0 %v515
      %595 = vmatprep.subr.bf16.mxu0 0
      %596 = vmatpush1.bf16.msra.mxu0 %v514
      %597 = vmatprep.subr.bf16.mxu0 0
      %598 = vmatpush2.bf16.msra.mxu0 0
      %599 = vmatprep.subr.bf16.mxu0 0
      %600 = vmatpush2.bf16.msra.mxu0 0
      %601 = vmatprep.subr.bf16.mxu0 0
      %602 = vmatpush2.bf16.msra.mxu0 0
      %603 = vmatprep.subr.bf16.mxu0 0
      %604 = vmatpush2.bf16.msra.mxu0 0
      %605 = vmatprep.subr.bf16.mxu0 0
      %606 = vmatpush2.bf16.msra.mxu0 0
      %607 = vmatprep.subr.bf16.mxu0 0
      %608 = vmatpush2.bf16.msra.mxu0 0
      %609 = vmatprep.subr.bf16.mxu0 0
      %610 = vmatpush2.bf16.msra.mxu0 0
      %611 = vmatprep.subr.bf16.mxu0 0
      %612 = vmatpush2.bf16.msra.mxu0 %v522
      %613 = vmatprep.mubr.bf16.mxu0 %v534
      %614 = vmatmul.mubr.bf16.gmra.mxu0 %v430
      %v615 = vpop.f32.mrf.mxu0
      %v616 = vadd.f32 %v332, %v615
      %v617 = vpop.f32.mrf.mxu0
      %v618 = vpop.f32.mrf.mxu0
      %v619 = vadd.f32 %v332, %v618
      %v620 = vpop.f32.mrf.mxu0
      %621 = vmatprep.mubr.bf16.mxu0 %v537
      %622 = vmatmul.mubr.bf16.gmra.mxu0 %v432
      %v623 = vpop.f32.mrf.mxu0
      %v624 = vadd.f32 %v332, %v623
      %v625 = vpop.f32.mrf.mxu0
      %v626 = vpop.f32.mrf.mxu0
      %v627 = vadd.f32 %v332, %v626
      %v628 = vpop.f32.mrf.mxu0
      %629 = vmatprep.mubr.bf16.mxu0 %v540
      %630 = vmatmul.mubr.bf16.gmra.mxu0 %v434
      %v631 = vpop.f32.mrf.mxu0
      %v632 = vadd.f32 %v332, %v631
      %v633 = vpop.f32.mrf.mxu0
      %v634 = vpop.f32.mrf.mxu0
      %v635 = vadd.f32 %v332, %v634
      %v636 = vpop.f32.mrf.mxu0
      %637 = vmatprep.mubr.bf16.mxu0 %v543
      %638 = vmatmul.mubr.bf16.gmra.mxu0 %v436
      %v639 = vpop.f32.mrf.mxu0
      %v640 = vadd.f32 %v332, %v639
      %v641 = vpop.f32.mrf.mxu0
      %v642 = vpop.f32.mrf.mxu0
      %v643 = vadd.f32 %v332, %v642
      %v644 = vpop.f32.mrf.mxu0
      %645 = vmatprep.mubr.bf16.mxu0 %v546
      %646 = vmatmul.mubr.bf16.gmra.mxu0 %v438
      %v647 = vpop.f32.mrf.mxu0
      %v648 = vadd.f32 %v332, %v647
      %v649 = vpop.f32.mrf.mxu0
      %v650 = vpop.f32.mrf.mxu0
      %v651 = vadd.f32 %v332, %v650
      %v652 = vpop.f32.mrf.mxu0
      %653 = vmatprep.mubr.bf16.mxu0 %v549
      %654 = vmatmul.mubr.bf16.gmra.mxu0 %v440
      %v655 = vpop.f32.mrf.mxu0
      %v656 = vadd.f32 %v332, %v655
      %v657 = vpop.f32.mrf.mxu0
      %v658 = vpop.f32.mrf.mxu0
      %v659 = vadd.f32 %v332, %v658
      %v660 = vpop.f32.mrf.mxu0
      %661 = vmatprep.mubr.bf16.mxu0 %v552
      %662 = vmatmul.mubr.bf16.gmra.mxu0 %v442
      %v663 = vpop.f32.mrf.mxu0
      %v664 = vadd.f32 %v332, %v663
      %v665 = vpop.f32.mrf.mxu0
      %v666 = vpop.f32.mrf.mxu0
      %v667 = vadd.f32 %v332, %v666
      %v668 = vpop.f32.mrf.mxu0
      %669 = vmatprep.mubr.bf16.mxu0 %v555
      %670 = vmatmul.mubr.bf16.gmra.mxu0 %v444
      %v671 = vpop.f32.mrf.mxu0
      %v672 = vadd.f32 %v332, %v671
      %v673 = vpop.f32.mrf.mxu0
      %v674 = vpop.f32.mrf.mxu0
      %v675 = vadd.f32 %v332, %v674
      %v676 = vpop.f32.mrf.mxu0
      %677 = vmatprep.mubr.bf16.mxu0 %v558
      %678 = vmatmul.mubr.bf16.gmra.mxu0 %v446
      %v679 = vpop.f32.mrf.mxu0
      %v680 = vadd.f32 %v332, %v679
      %v681 = vpop.f32.mrf.mxu0
      %v682 = vpop.f32.mrf.mxu0
      %v683 = vadd.f32 %v332, %v682
      %v684 = vpop.f32.mrf.mxu0
      %685 = vmatprep.mubr.bf16.mxu0 %v561
      %686 = vmatmul.mubr.bf16.gmra.mxu0 %v448
      %v687 = vpop.f32.mrf.mxu0
      %v688 = vadd.f32 %v332, %v687
      %v689 = vpop.f32.mrf.mxu0
      %v690 = vpop.f32.mrf.mxu0
      %v691 = vadd.f32 %v332, %v690
      %v692 = vpop.f32.mrf.mxu0
      %693 = vmatprep.mubr.bf16.mxu0 %v564
      %694 = vmatmul.mubr.bf16.gmra.mxu0 %v450
      %v695 = vpop.f32.mrf.mxu0
      %v696 = vadd.f32 %v332, %v695
      %v697 = vpop.f32.mrf.mxu0
      %v698 = vpop.f32.mrf.mxu0
      %v699 = vadd.f32 %v332, %v698
      %v700 = vpop.f32.mrf.mxu0
      %701 = vmatprep.mubr.bf16.mxu0 %v567
      %702 = vmatmul.mubr.bf16.gmra.mxu0 %v452
      %v703 = vpop.f32.mrf.mxu0
      %v704 = vadd.f32 %v332, %v703
      %v705 = vpop.f32.mrf.mxu0
      %v706 = vpop.f32.mrf.mxu0
      %v707 = vadd.f32 %v332, %v706
      %v708 = vpop.f32.mrf.mxu0
      %709 = vmatprep.mubr.bf16.mxu0 %v570
      %710 = vmatmul.mubr.bf16.gmra.mxu0 %v454
      %v711 = vpop.f32.mrf.mxu0
      %v712 = vadd.f32 %v332, %v711
      %v713 = vpop.f32.mrf.mxu0
      %v714 = vpop.f32.mrf.mxu0
      %v715 = vadd.f32 %v332, %v714
      %v716 = vpop.f32.mrf.mxu0
      %717 = vmatprep.mubr.bf16.mxu0 %v573
      %718 = vmatmul.mubr.bf16.gmra.mxu0 %v456
      %v719 = vpop.f32.mrf.mxu0
      %v720 = vadd.f32 %v332, %v719
      %v721 = vpop.f32.mrf.mxu0
      %v722 = vpop.f32.mrf.mxu0
      %v723 = vadd.f32 %v332, %v722
      %v724 = vpop.f32.mrf.mxu0
      %725 = vmatprep.mubr.bf16.mxu0 %v576
      %726 = vmatmul.mubr.bf16.gmra.mxu0 %v458
      %v727 = vpop.f32.mrf.mxu0
      %v728 = vadd.f32 %v332, %v727
      %v729 = vpop.f32.mrf.mxu0
      %v730 = vpop.f32.mrf.mxu0
      %v731 = vadd.f32 %v332, %v730
      %v732 = vpop.f32.mrf.mxu0
      %733 = vmatprep.mubr.bf16.mxu0 %v579
      %734 = vmatmul.mubr.bf16.gmra.mxu0 %v460
      %v735 = vpop.f32.mrf.mxu0
      %v736 = vadd.f32 %v332, %v735
      %v737 = vpop.f32.mrf.mxu0
      %v738 = vpop.f32.mrf.mxu0
      %v739 = vadd.f32 %v332, %v738
      %v740 = vpop.f32.mrf.mxu0
      %741 = vdwg.mxu0
      %v742 = vld [vmem:[%s264] sm:$0xf]
      %v743 = vld [vmem:[%s264 + $0x4] sm:$0xf]
      %v744 = vld [vmem:[%s264 + $0x8] sm:$0xf]
      %v745 = vld [vmem:[%s264 + $0xc] sm:$0xf]
      %v746 = vld [vmem:[%s264 + $0x10] sm:$0xf]
      %v747 = vld [vmem:[%s264 + $0x14] sm:$0xf]
      %v748 = vld [vmem:[%s264 + $0x18] sm:$0xf]
      %v749 = vld [vmem:[%s264 + $0x1c] sm:$0xf]
      %v750 = vld [vmem:[%s264 + $0x20] sm:$0xf]
      %v751 = vld [vmem:[%s264 + $0x24] sm:$0xf]
      %v752 = vld [vmem:[%s264 + $0x28] sm:$0xf]
      %v753 = vld [vmem:[%s264 + $0x2c] sm:$0xf]
      %v754 = vld [vmem:[%s264 + $0x30] sm:$0xf]
      %v755 = vld [vmem:[%s264 + $0x34] sm:$0xf]
      %v756 = vld [vmem:[%s264 + $0x38] sm:$0xf]
      %v757 = vld [vmem:[%s264 + $0x3c] sm:$0xf]
      %v758 = vld [vmem:[%s264 + $0x40] sm:$0xf]
      %v759 = vld [vmem:[%s264 + $0x44] sm:$0xf]
      %v760 = vld [vmem:[%s264 + $0x48] sm:$0xf]
      %v761 = vld [vmem:[%s264 + $0x4c] sm:$0xf]
      %v762 = vld [vmem:[%s264 + $0x50] sm:$0xf]
      %v763 = vld [vmem:[%s264 + $0x54] sm:$0xf]
      %v764 = vld [vmem:[%s264 + $0x58] sm:$0xf]
      %v765 = vld [vmem:[%s264 + $0x5c] sm:$0xf]
      %v766 = vld [vmem:[%s264 + $0x60] sm:$0xf]
      %v767 = vld [vmem:[%s264 + $0x64] sm:$0xf]
      %v768 = vld [vmem:[%s264 + $0x68] sm:$0xf]
      %v769 = vld [vmem:[%s264 + $0x6c] sm:$0xf]
      %v770 = vld [vmem:[%s264 + $0x70] sm:$0xf]
      %v771 = vld [vmem:[%s264 + $0x74] sm:$0xf]
      %v772 = vld [vmem:[%s264 + $0x78] sm:$0xf]
      %v773 = vld [vmem:[%s264 + $0x7c] sm:$0xf]
      %v774 = vunpack.c.l.bf16 %v742
      %v775 = vunpack.c.l.bf16 %v743
      %v776 = vunpack.c.l.bf16 %v744
      %v777 = vunpack.c.l.bf16 %v745
      %v778 = vunpack.c.l.bf16 %v746
      %v779 = vunpack.c.l.bf16 %v747
      %v780 = vunpack.c.l.bf16 %v748
      %v781 = vunpack.c.l.bf16 %v749
      %v782 = vunpack.c.l.bf16 %v750
      %v783 = vunpack.c.l.bf16 %v751
      %v784 = vunpack.c.l.bf16 %v752
      %v785 = vunpack.c.l.bf16 %v753
      %v786 = vunpack.c.l.bf16 %v754
      %v787 = vunpack.c.l.bf16 %v755
      %v788 = vunpack.c.l.bf16 %v756
      %v789 = vunpack.c.l.bf16 %v757
      %v790 = vunpack.c.l.bf16 %v758
      %v791 = vunpack.c.l.bf16 %v759
      %v792 = vunpack.c.l.bf16 %v760
      %v793 = vunpack.c.l.bf16 %v761
      %v794 = vunpack.c.l.bf16 %v762
      %v795 = vunpack.c.l.bf16 %v763
      %v796 = vunpack.c.l.bf16 %v764
      %v797 = vunpack.c.l.bf16 %v765
      %v798 = vunpack.c.l.bf16 %v766
      %v799 = vunpack.c.l.bf16 %v767
      %v800 = vunpack.c.l.bf16 %v768
      %v801 = vunpack.c.l.bf16 %v769
      %v802 = vunpack.c.l.bf16 %v770
      %v803 = vunpack.c.l.bf16 %v771
      %v804 = vunpack.c.l.bf16 %v772
      %v805 = vunpack.c.l.bf16 %v773
      %v806 = vadd.f32 %v616, %v774
      %v807 = vadd.f32 %v619, %v775
      %v808 = vadd.f32 %v624, %v776
      %v809 = vadd.f32 %v627, %v777
      %v810 = vadd.f32 %v632, %v778
      %v811 = vadd.f32 %v635, %v779
      %v812 = vadd.f32 %v640, %v780
      %v813 = vadd.f32 %v643, %v781
      %v814 = vadd.f32 %v648, %v782
      %v815 = vadd.f32 %v651, %v783
      %v816 = vadd.f32 %v656, %v784
      %v817 = vadd.f32 %v659, %v785
      %v818 = vadd.f32 %v664, %v786
      %v819 = vadd.f32 %v667, %v787
      %v820 = vadd.f32 %v672, %v788
      %v821 = vadd.f32 %v675, %v789
      %v822 = vadd.f32 %v680, %v790
      %v823 = vadd.f32 %v683, %v791
      %v824 = vadd.f32 %v688, %v792
      %v825 = vadd.f32 %v691, %v793
      %v826 = vadd.f32 %v696, %v794
      %v827 = vadd.f32 %v699, %v795
      %v828 = vadd.f32 %v704, %v796
      %v829 = vadd.f32 %v707, %v797
      %v830 = vadd.f32 %v712, %v798
      %v831 = vadd.f32 %v715, %v799
      %v832 = vadd.f32 %v720, %v800
      %v833 = vadd.f32 %v723, %v801
      %v834 = vadd.f32 %v728, %v802
      %v835 = vadd.f32 %v731, %v803
      %v836 = vadd.f32 %v736, %v804
      %v837 = vadd.f32 %v739, %v805
      %vm838 = vcmask 392192
      %839 = vst.msk [vmem:[%s274] sm:$0xff] %vm838, %v806
      %840 = vst.msk [vmem:[%s274 + $0x8] sm:$0xff] %vm838, %v807
      %841 = vst.msk [vmem:[%s274 + $0x10] sm:$0xff] %vm838, %v808
      %842 = vst.msk [vmem:[%s274 + $0x18] sm:$0xff] %vm838, %v809
      %843 = vst.msk [vmem:[%s274 + $0x20] sm:$0xff] %vm838, %v810
      %844 = vst.msk [vmem:[%s274 + $0x28] sm:$0xff] %vm838, %v811
      %845 = vst.msk [vmem:[%s274 + $0x30] sm:$0xff] %vm838, %v812
      %846 = vst.msk [vmem:[%s274 + $0x38] sm:$0xff] %vm838, %v813
      %847 = vst.msk [vmem:[%s274 + $0x40] sm:$0xff] %vm838, %v814
      %848 = vst.msk [vmem:[%s274 + $0x48] sm:$0xff] %vm838, %v815
      %849 = vst.msk [vmem:[%s274 + $0x50] sm:$0xff] %vm838, %v816
      %850 = vst.msk [vmem:[%s274 + $0x58] sm:$0xff] %vm838, %v817
      %851 = vst.msk [vmem:[%s274 + $0x60] sm:$0xff] %vm838, %v818
      %852 = vst.msk [vmem:[%s274 + $0x68] sm:$0xff] %vm838, %v819
      %853 = vst.msk [vmem:[%s274 + $0x70] sm:$0xff] %vm838, %v820
      %854 = vst.msk [vmem:[%s274 + $0x78] sm:$0xff] %vm838, %v821
      %855 = vst.msk [vmem:[%s274 + $0x80] sm:$0xff] %vm838, %v822
      %856 = vst.msk [vmem:[%s274 + $0x88] sm:$0xff] %vm838, %v823
      %857 = vst.msk [vmem:[%s274 + $0x90] sm:$0xff] %vm838, %v824
      %858 = vst.msk [vmem:[%s274 + $0x98] sm:$0xff] %vm838, %v825
      %859 = vst.msk [vmem:[%s274 + $0xa0] sm:$0xff] %vm838, %v826
      %860 = vst.msk [vmem:[%s274 + $0xa8] sm:$0xff] %vm838, %v827
      %861 = vst.msk [vmem:[%s274 + $0xb0] sm:$0xff] %vm838, %v828
      %862 = vst.msk [vmem:[%s274 + $0xb8] sm:$0xff] %vm838, %v829
      %863 = vst.msk [vmem:[%s274 + $0xc0] sm:$0xff] %vm838, %v830
      %864 = vst.msk [vmem:[%s274 + $0xc8] sm:$0xff] %vm838, %v831
      %865 = vst.msk [vmem:[%s274 + $0xd0] sm:$0xff] %vm838, %v832
      %866 = vst.msk [vmem:[%s274 + $0xd8] sm:$0xff] %vm838, %v833
      %867 = vst.msk [vmem:[%s274 + $0xe0] sm:$0xff] %vm838, %v834
      %868 = vst.msk [vmem:[%s274 + $0xe8] sm:$0xff] %vm838, %v835
      %869 = vst.msk [vmem:[%s274 + $0xf0] sm:$0xff] %vm838, %v836
      %870 = vst.msk [vmem:[%s274 + $0xf8] sm:$0xff] %vm838, %v837
      %s871 = smul.u32 32, %s20
      %p872 = scmp.lt.s32.totalorder %s19, 1
      %s873 = scalar_select %p872, %s19, 1
      %p874 = scmp.lt.s32.totalorder %s871, 31
      %s875 = scalar_select %p874, %s871, 31
      %s876 = smul.addr %s873, 32
      %s877 = sadd.s32 %s875, %s876
      %s878 = smul.addr %s877, 8
      %s879 = scalar_lea.vmem %s4, %s878
      // Predicated region
      $region37: #{wdsrnet_forward.13} parent=35 // pred_check
        %p880 = pneg %p145
      $region38: #{wdsrnet_forward.13} parent=35 // pred_check_branch
        %882 = sbr.rel (%p880) target = $region40
      $region39: #{wdsrnet_forward.13} parent=35 // pred_region
        %s883 = smul.u32 32, %s20
      $region40: #{wdsrnet_forward.13} parent=35 // pred_fallthru
        _
    $region36: #{wdsrnet_forward.13} parent=5 // pred_fallthru
      _
    %p884 = scmp.le.s32.totalorder 2, %s10
    // Predicated region
    $region41: #{wdsrnet_forward.13} parent=5 // pred_check
      %p885 = pneg %p884
    $region42: #{wdsrnet_forward.13} parent=5 // pred_check_branch
      %887 = sbr.rel (%p885) target = $region44
    $region43: #{wdsrnet_forward.13} parent=5 // pred_region
      %s888 = ssub.s32 %s10, 2
      // Predicated region
      $region45: #{wdsrnet_forward.13} parent=43 // pred_check
        %p889 = pneg %p151
      $region46: #{wdsrnet_forward.13} parent=43 // pred_check_branch
        %891 = sbr.rel (%p889) target = $region48
      $region47: #{wdsrnet_forward.13} parent=43 // pred_region
        %s892 = smul.u32 32, %s22
        %p893 = scmp.lt.s32.totalorder %s21, 1
        %s894 = scalar_select %p893, %s21, 1
        %p895 = scmp.lt.s32.totalorder %s892, 31
        %s896 = scalar_select %p895, %s892, 31
        %s897 = smul.addr %s894, 32
        %s898 = sadd.s32 %s896, %s897
        %s899 = smul.addr %s898, 8
        %s900 = scalar_lea.vmem %s4, %s899
      $region48: #{wdsrnet_forward.13} parent=43 // pred_fallthru
        _
    $region44: #{wdsrnet_forward.13} parent=5 // pred_fallthru
      _
  $region6: #{wdsrnet_forward.13} parent=0 // loop_footer
    %s14 = sadd.s32 1, %s10
  $region7: #{wdsrnet_forward.13} parent=0 // loop_footer_branch
    %9 = sbr.rel target = $region3
  $region8: #{wdsrnet_forward.13} parent=0 // loop_exit
    _

// kernel: wdsrnet_forward.10
$region0: #{wdsrnet_forward.10}
  #allocation0 [shape = 'u32[]', space=smem, size = 0x4, offset = 0x4, fixed_abs, tag = 'smem constant byte address 0x4 - core index']
  #allocation1 [shape = 'u32[144,128]{1,0:T(1,128)}', space=vmem, size = 0x12000, scoped, tag = 'internal scratch']
  %s0 = inlined_call_operand.vmem [shape: bf16[2,256,864], index: 0, kind: input, shape index: {}]
  %s1 = inlined_call_operand.vmem [shape: bf16[864,16], index: 1, kind: input, shape index: {}]
  %s2 = inlined_call_operand.vmem [shape: f32[1,16], index: 2, kind: input, shape index: {}]
  %s3 = inlined_call_operand.vmem [shape: bf16[2,256,16], index: 3, kind: input, shape index: {}]
  %s4 = inlined_call_operand.vmem [shape: bf16[2,256,16], index: 4, kind: output, shape index: {}]
  %s5 = sld [smem:[#allocation0]]
  $region49: #{wdsrnet_forward.10} parent=0
    _
  %s7 = ssub.s32 1, %s5
  %s8 = scalar_select 0, %s7, %s5
  loop: start=0, step=1, limit=4
  $region2: #{wdsrnet_forward.10} parent=0 // loop_pre_header
    _
  $region3: #{wdsrnet_forward.10} parent=0 // loop_header
    %s10 = sphi 0, %s14
    %p11 = scmp.ge.s32.totalorder %s10, 4
    %s17 = sphi 0, %s29
    %s18 = sphi 0, %s25
    %s19 = sphi 0, %s17
    %s20 = sphi 0, %s18
    %s21 = sphi 0, %s19
    %s22 = sphi 0, %s20
    %s34 = sphi 0, %s36
    %s37 = sphi 0, %s34
    %s38 = sphi 0, %s37
    %s54 = sphi 0, %s38
    %s58 = sphi 0, %s58
    %s60 = sphi 0, %s58
    %s61 = sphi 0, %s60
    %s75 = sphi 0, %s61
    %s79 = sphi 0, %s79
    %s81 = sphi 0, %s79
    %s82 = sphi 0, %s81
    %s96 = sphi 0, %s82
    %s104 = sphi 0, %s106
    %s107 = sphi 0, %s104
    %s108 = sphi 0, %s107
    %s124 = sphi 0, %s108
    %s132 = sphi 0, %s134
    %s135 = sphi 0, %s132
    %s136 = sphi 0, %s135
    %s152 = sphi 0, %s136
  $region4: #{wdsrnet_forward.10} parent=0 // loop_header_branch
    %13 = sbr.rel (%p11) target = $region8
  $region5: #{wdsrnet_forward.10} parent=0 // loop_body
    %s15 = ssub.s32 %s10, 1
    %s16 = ssub.s32 %s10, 2
    %s23 = sadd.s32 1, %s18
    %p24 = scmp.ge.s32.totalorder %s23, 1
    %s25 = scalar_select %p24, 0, %s23
    %s26 = sadd.s32 1, %s17
    %s27 = scalar_select %p24, %s26, %s17
    %p28 = scmp.ge.s32.totalorder %s27, 2
    %s29 = scalar_select %p28, 0, %s27
    %s30 = ssub.s32 %s17, %s29
    %s31 = ssub.s32 %s18, %s25
    %s32 = sor.u32 %s30, %s31
    %p33 = scmp.eq.s32.totalorder %s32, 0
    %s35 = sadd.s32 %s34, 1
    %s36 = scalar_select %p33, %s34, %s35
    %p39 = pneg %p33
    %p40 = scmp.eq.s32.totalorder %s10, 1
    %p41 = por %p39, %p40
    %p42 = scmp.ne.s32.totalorder %s34, %s37
    %p43 = scmp.eq.s32.totalorder %s10, 0
    %p44 = por %p42, %p43
    %p45 = scmp.ne.s32.totalorder %s34, %s37
    %p46 = scmp.eq.s32.totalorder %s15, 1
    %p47 = por %p45, %p46
    %p48 = scmp.ne.s32.totalorder %s37, %s38
    %p49 = scmp.eq.s32.totalorder %s15, 0
    %p50 = por %p48, %p49
    %p51 = scmp.ne.s32.totalorder %s37, %s38
    %p52 = scmp.eq.s32.totalorder %s16, 1
    %p53 = por %p51, %p52
    %p55 = scmp.ne.s32.totalorder %s38, %s54
    %p56 = scmp.eq.s32.totalorder %s16, 0
    %p57 = por %p55, %p56
    %s59 = sadd.s32 %s58, 1
    %p62 = scmp.eq.s32.totalorder %s10, 1
    %p63 = scmp.ne.s32.totalorder %s58, %s60
    %p64 = scmp.eq.s32.totalorder %s10, 0
    %p65 = por %p63, %p64
    %p66 = scmp.ne.s32.totalorder %s58, %s60
    %p67 = scmp.eq.s32.totalorder %s15, 1
    %p68 = por %p66, %p67
    %p69 = scmp.ne.s32.totalorder %s60, %s61
    %p70 = scmp.eq.s32.totalorder %s15, 0
    %p71 = por %p69, %p70
    %p72 = scmp.ne.s32.totalorder %s60, %s61
    %p73 = scmp.eq.s32.totalorder %s16, 1
    %p74 = por %p72, %p73
    %p76 = scmp.ne.s32.totalorder %s61, %s75
    %p77 = scmp.eq.s32.totalorder %s16, 0
    %p78 = por %p76, %p77
    %s80 = sadd.s32 %s79, 1
    %p83 = scmp.eq.s32.totalorder %s10, 1
    %p84 = scmp.ne.s32.totalorder %s79, %s81
    %p85 = scmp.eq.s32.totalorder %s10, 0
    %p86 = por %p84, %p85
    %p87 = scmp.ne.s32.totalorder %s79, %s81
    %p88 = scmp.eq.s32.totalorder %s15, 1
    %p89 = por %p87, %p88
    %p90 = scmp.ne.s32.totalorder %s81, %s82
    %p91 = scmp.eq.s32.totalorder %s15, 0
    %p92 = por %p90, %p91
    %p93 = scmp.ne.s32.totalorder %s81, %s82
    %p94 = scmp.eq.s32.totalorder %s16, 1
    %p95 = por %p93, %p94
    %p97 = scmp.ne.s32.totalorder %s82, %s96
    %p98 = scmp.eq.s32.totalorder %s16, 0
    %p99 = por %p97, %p98
    %s100 = ssub.s32 %s17, %s29
    %s101 = ssub.s32 %s18, %s25
    %s102 = sor.u32 %s100, %s101
    %p103 = scmp.eq.s32.totalorder %s102, 0
    %s105 = sadd.s32 %s104, 1
    %s106 = scalar_select %p103, %s104, %s105
    %p109 = pneg %p103
    %p110 = scmp.eq.s32.totalorder %s10, 1
    %p111 = por %p109, %p110
    %p112 = scmp.ne.s32.totalorder %s104, %s107
    %p113 = scmp.eq.s32.totalorder %s10, 0
    %p114 = por %p112, %p113
    %p115 = scmp.ne.s32.totalorder %s104, %s107
    %p116 = scmp.eq.s32.totalorder %s15, 1
    %p117 = por %p115, %p116
    %p118 = scmp.ne.s32.totalorder %s107, %s108
    %p119 = scmp.eq.s32.totalorder %s15, 0
    %p120 = por %p118, %p119
    %p121 = scmp.ne.s32.totalorder %s107, %s108
    %p122 = scmp.eq.s32.totalorder %s16, 1
    %p123 = por %p121, %p122
    %p125 = scmp.ne.s32.totalorder %s108, %s124
    %p126 = scmp.eq.s32.totalorder %s16, 0
    %p127 = por %p125, %p126
    %s128 = ssub.s32 %s17, %s29
    %s129 = ssub.s32 %s18, %s25
    %s130 = sor.u32 %s128, %s129
    %p131 = scmp.eq.s32.totalorder %s130, 0
    %s133 = sadd.s32 %s132, 1
    %s134 = scalar_select %p131, %s132, %s133
    %p137 = pneg %p131
    %p138 = scmp.eq.s32.totalorder %s10, 1
    %p139 = por %p137, %p138
    %p140 = scmp.ne.s32.totalorder %s132, %s135
    %p141 = scmp.eq.s32.totalorder %s10, 0
    %p142 = por %p140, %p141
    %p143 = scmp.ne.s32.totalorder %s132, %s135
    %p144 = scmp.eq.s32.totalorder %s15, 1
    %p145 = por %p143, %p144
    %p146 = scmp.ne.s32.totalorder %s135, %s136
    %p147 = scmp.eq.s32.totalorder %s15, 0
    %p148 = por %p146, %p147
    %p149 = scmp.ne.s32.totalorder %s135, %s136
    %p150 = scmp.eq.s32.totalorder %s16, 1
    %p151 = por %p149, %p150
    %p153 = scmp.ne.s32.totalorder %s136, %s152
    %p154 = scmp.eq.s32.totalorder %s16, 0
    %p155 = por %p153, %p154
    %p156 = scmp.le.s32.totalorder 1, %s10
    %p157 = scmp.lt.s32.totalorder %s10, 3
    %p158 = pnand %p156, %p157
    %p159 = pneg %p158
    // Predicated region
    $region9: #{wdsrnet_forward.10} parent=5 // pred_check
      _
    $region10: #{wdsrnet_forward.10} parent=5 // pred_check_branch
      %161 = sbr.rel (%p158) target = $region12
    $region11: #{wdsrnet_forward.10} parent=5 // pred_region
      %s162 = ssub.s32 %s10, 1
      // Predicated region
      $region13: #{wdsrnet_forward.10} parent=11 // pred_check
        %p163 = pneg %p71
      $region14: #{wdsrnet_forward.10} parent=11 // pred_check_branch
        %165 = sbr.rel (%p163) target = $region16
      $region15: #{wdsrnet_forward.10} parent=11 // pred_region
        _
      $region16: #{wdsrnet_forward.10} parent=11 // pred_fallthru
        _
      // Predicated region
      $region17: #{wdsrnet_forward.10} parent=11 // pred_check
        %p166 = pneg %p92
      $region18: #{wdsrnet_forward.10} parent=11 // pred_check_branch
        %168 = sbr.rel (%p166) target = $region20
      $region19: #{wdsrnet_forward.10} parent=11 // pred_region
        _
      $region20: #{wdsrnet_forward.10} parent=11 // pred_fallthru
        _
    $region12: #{wdsrnet_forward.10} parent=5 // pred_fallthru
      _
    %p169 = scmp.lt.s32.totalorder %s10, 2
    // Predicated region
    $region21: #{wdsrnet_forward.10} parent=5 // pred_check
      %p170 = pneg %p169
    $region22: #{wdsrnet_forward.10} parent=5 // pred_check_branch
      %172 = sbr.rel (%p170) target = $region24
    $region23: #{wdsrnet_forward.10} parent=5 // pred_region
      // Predicated region
      $region25: #{wdsrnet_forward.10} parent=23 // pred_check
        %p173 = pneg %p44
      $region26: #{wdsrnet_forward.10} parent=23 // pred_check_branch
        %175 = sbr.rel (%p173) target = $region28
      $region27: #{wdsrnet_forward.10} parent=23 // pred_region
        %s176 = smul.u32 32, %s18
        %p177 = scmp.lt.s32.totalorder %s17, 1
        %s178 = scalar_select %p177, %s17, 1
        %p179 = scmp.lt.s32.totalorder %s176, 31
        %s180 = scalar_select %p179, %s176, 31
        %s181 = smul.addr %s180, 7
        %s182 = smul.addr %s178, 224
        %s183 = sadd.s32 %s181, %s182
        %s184 = smul.addr %s183, 4
        %s185 = scalar_lea.vmem %s0, %s184
        %s186 = smul.u32 32, %s18
      $region28: #{wdsrnet_forward.10} parent=23 // pred_fallthru
        _
      // Predicated region
      $region29: #{wdsrnet_forward.10} parent=23 // pred_check
        %p187 = pneg %p114
      $region30: #{wdsrnet_forward.10} parent=23 // pred_check_branch
        %189 = sbr.rel (%p187) target = $region32
      $region31: #{wdsrnet_forward.10} parent=23 // pred_region
        %s190 = smul.u32 32, %s18
        %p191 = scmp.lt.s32.totalorder %s17, 1
        %s192 = scalar_select %p191, %s17, 1
        %p193 = scmp.lt.s32.totalorder %s190, 31
        %s194 = scalar_select %p193, %s190, 31
        %s195 = smul.addr %s192, 32
        %s196 = sadd.s32 %s194, %s195
        %s197 = smul.addr %s196, 4
        %s198 = scalar_lea.vmem %s3, %s197
        %s199 = smul.u32 32, %s18
      $region32: #{wdsrnet_forward.10} parent=23 // pred_fallthru
        _
    $region24: #{wdsrnet_forward.10} parent=5 // pred_fallthru
      _
    %p200 = scmp.le.s32.totalorder 1, %s10
    %p201 = scmp.lt.s32.totalorder %s10, 3
    %p202 = pnand %p200, %p201
    %p203 = pneg %p202
    // Predicated region
    $region33: #{wdsrnet_forward.10} parent=5 // pred_check
      _
    $region34: #{wdsrnet_forward.10} parent=5 // pred_check_branch
      %205 = sbr.rel (%p202) target = $region36
    $region35: #{wdsrnet_forward.10} parent=5 // pred_region
      %s206 = ssub.s32 %s10, 1
      %s207 = smul.u32 32, %s20
      %p208 = scmp.lt.s32.totalorder %s19, 1
      %s209 = scalar_select %p208, %s19, 1
      %p210 = scmp.lt.s32.totalorder %s207, 31
      %s211 = scalar_select %p210, %s207, 31
      %s212 = smul.addr %s211, 7
      %s213 = smul.addr %s209, 224
      %s214 = sadd.s32 %s212, %s213
      %s215 = smul.addr %s214, 4
      %s216 = scalar_lea.vmem %s0, %s215
      %p217 = pneg %p50
      %p218 = pneg %p47
      %p219 = pneg %p71
      %p220 = pneg %p68
      %p221 = pneg %p92
      %p222 = pneg %p89
      %s223 = smul.u32 32, %s20
      %p224 = scmp.lt.s32.totalorder %s19, 1
      %s225 = scalar_select %p224, %s19, 1
      %p226 = scmp.lt.s32.totalorder %s223, 31
      %s227 = scalar_select %p226, %s223, 31
      %s228 = smul.addr %s225, 32
      %s229 = sadd.s32 %s227, %s228
      %s230 = smul.addr %s229, 4
      %s231 = scalar_lea.vmem %s3, %s230
      %p232 = pneg %p120
      %p233 = pneg %p117
      %p234 = pneg %p148
      %p235 = pneg %p145
      %s236 = smul.u32 32, %s20
      %p237 = scmp.lt.s32.totalorder %s19, 1
      %s238 = scalar_select %p237, %s19, 1
      %p239 = scmp.lt.s32.totalorder %s236, 31
      %s240 = scalar_select %p239, %s236, 31
      %s241 = smul.addr %s238, 32
      %s242 = sadd.s32 %s240, %s241
      %s243 = smul.addr %s242, 4
      %s244 = scalar_lea.vmem %s4, %s243
      %s245 = smul.u32 32, %s20
      %p246 = scmp.lt.s32.totalorder %s19, 1
      %s247 = scalar_select %p246, %s19, 1
      %p248 = scmp.lt.s32.totalorder %s245, 31
      %s249 = scalar_select %p248, %s245, 31
      %s250 = smul.addr %s249, 7
      %s251 = smul.addr %s247, 224
      %s252 = sadd.s32 %s250, %s251
      %s253 = smul.addr %s252, 4
      %s254 = scalar_lea.vmem %s0, %s253
      %s255 = smul.u32 32, %s20
      %s256 = smul.u32 32, %s20
      %p257 = scmp.lt.s32.totalorder %s19, 1
      %s258 = scalar_select %p257, %s19, 1
      %p259 = scmp.lt.s32.totalorder %s256, 31
      %s260 = scalar_select %p259, %s256, 31
      %s261 = smul.addr %s258, 32
      %s262 = sadd.s32 %s260, %s261
      %s263 = smul.addr %s262, 4
      %s264 = scalar_lea.vmem %s3, %s263
      %s265 = smul.u32 32, %s20
      %s266 = smul.u32 32, %s20
      %p267 = scmp.lt.s32.totalorder %s19, 1
      %s268 = scalar_select %p267, %s19, 1
      %p269 = scmp.lt.s32.totalorder %s266, 31
      %s270 = scalar_select %p269, %s266, 31
      %s271 = smul.addr %s268, 32
      %s272 = sadd.s32 %s270, %s271
      %s273 = smul.addr %s272, 4
      %s274 = scalar_lea.vmem %s4, %s273
      %s275 = smul.u32 32, %s20
      %v277 = vld [vmem:[%s254] sm:$0xff]
      %v278 = vld [vmem:[%s254 + $0x8] sm:$0xff]
      %v279 = vld [vmem:[%s254 + $0x10] sm:$0xff]
      %v280 = vld [vmem:[%s254 + $0x18] sm:$0xf]
      %v281 = vld [vmem:[%s254 + $0x1c] sm:$0xff]
      %v282 = vld [vmem:[%s254 + $0x24] sm:$0xff]
      %v283 = vld [vmem:[%s254 + $0x2c] sm:$0xff]
      %v284 = vld [vmem:[%s254 + $0x34] sm:$0xf]
      %v285 = vld [vmem:[%s254 + $0x38] sm:$0xff]
      %v286 = vld [vmem:[%s254 + $0x40] sm:$0xff]
      %v287 = vld [vmem:[%s254 + $0x48] sm:$0xff]
      %v288 = vld [vmem:[%s254 + $0x50] sm:$0xf]
      %v289 = vld [vmem:[%s254 + $0x54] sm:$0xff]
      %v290 = vld [vmem:[%s254 + $0x5c] sm:$0xff]
      %v291 = vld [vmem:[%s254 + $0x64] sm:$0xff]
      %v292 = vld [vmem:[%s254 + $0x6c] sm:$0xf]
      %v293 = vld [vmem:[%s254 + $0x70] sm:$0xff]
      %v294 = vld [vmem:[%s254 + $0x78] sm:$0xff]
      %v295 = vld [vmem:[%s254 + $0x80] sm:$0xff]
      %v296 = vld [vmem:[%s254 + $0x88] sm:$0xf]
      %v297 = vld [vmem:[%s254 + $0x8c] sm:$0xff]
      %v298 = vld [vmem:[%s254 + $0x94] sm:$0xff]
      %v299 = vld [vmem:[%s254 + $0x9c] sm:$0xff]
      %v300 = vld [vmem:[%s254 + $0xa4] sm:$0xf]
      %v301 = vld [vmem:[%s254 + $0xa8] sm:$0xff]
      %v302 = vld [vmem:[%s254 + $0xb0] sm:$0xff]
      %v303 = vld [vmem:[%s254 + $0xb8] sm:$0xff]
      %v304 = vld [vmem:[%s254 + $0xc0] sm:$0xf]
      %v305 = vld [vmem:[%s254 + $0xc4] sm:$0xff]
      %v306 = vld [vmem:[%s254 + $0xcc] sm:$0xff]
      %v307 = vld [vmem:[%s254 + $0xd4] sm:$0xff]
      %v308 = vld [vmem:[%s254 + $0xdc] sm:$0xf]
      %v309 = vld [vmem:[%s254 + $0xe0] sm:$0xff]
      %v310 = vld [vmem:[%s254 + $0xe8] sm:$0xff]
      %v311 = vld [vmem:[%s254 + $0xf0] sm:$0xff]
      %v312 = vld [vmem:[%s254 + $0xf8] sm:$0xf]
      %v313 = vld [vmem:[%s254 + $0xfc] sm:$0xff]
      %v314 = vld [vmem:[%s254 + $0x104] sm:$0xff]
      %v315 = vld [vmem:[%s254 + $0x10c] sm:$0xff]
      %v316 = vld [vmem:[%s254 + $0x114] sm:$0xf]
      %v317 = vld [vmem:[%s254 + $0x118] sm:$0xff]
      %v318 = vld [vmem:[%s254 + $0x120] sm:$0xff]
      %v319 = vld [vmem:[%s254 + $0x128] sm:$0xff]
      %v320 = vld [vmem:[%s254 + $0x130] sm:$0xf]
      %v321 = vld [vmem:[%s254 + $0x134] sm:$0xff]
      %v322 = vld [vmem:[%s254 + $0x13c] sm:$0xff]
      %v323 = vld [vmem:[%s254 + $0x144] sm:$0xff]
      %v324 = vld [vmem:[%s254 + $0x14c] sm:$0xf]
      %v325 = vld [vmem:[%s254 + $0x150] sm:$0xff]
      %v326 = vld [vmem:[%s254 + $0x158] sm:$0xff]
      %v327 = vld [vmem:[%s254 + $0x160] sm:$0xff]
      %v328 = vld [vmem:[%s254 + $0x168] sm:$0xf]
      %v329 = vld [vmem:[%s254 + $0x16c] sm:$0xff]
      %v330 = vld [vmem:[%s254 + $0x174] sm:$0xff]
      %v331 = vld [vmem:[%s254 + $0x17c] sm:$0xff]
      %v332 = vld [vmem:[%s254 + $0x184] sm:$0xf]
      %v333 = vld [vmem:[%s254 + $0x188] sm:$0xff]
      %v334 = vld [vmem:[%s254 + $0x190] sm:$0xff]
      %v335 = vld [vmem:[%s254 + $0x198] sm:$0xff]
      %v336 = vld [vmem:[%s254 + $0x1a0] sm:$0xf]
      %v337 = vld [vmem:[%s254 + $0x1a4] sm:$0xff]
      %v338 = vld [vmem:[%s254 + $0x1ac] sm:$0xff]
      %v339 = vld [vmem:[%s254 + $0x1b4] sm:$0xff]
      %v340 = vld [vmem:[%s254 + $0x1bc] sm:$0xf]
      %v341 = vld [vmem:[%s254 + $0x1c0] sm:$0xff]
      %v342 = vld [vmem:[%s254 + $0x1c8] sm:$0xff]
      %v343 = vld [vmem:[%s254 + $0x1d0] sm:$0xff]
      %v344 = vld [vmem:[%s254 + $0x1d8] sm:$0xf]
      %v345 = vld [vmem:[%s254 + $0x1dc] sm:$0xff]
      %v346 = vld [vmem:[%s254 + $0x1e4] sm:$0xff]
      %v347 = vld [vmem:[%s254 + $0x1ec] sm:$0xff]
      %v348 = vld [vmem:[%s254 + $0x1f4] sm:$0xf]
      %v349 = vld [vmem:[%s254 + $0x1f8] sm:$0xff]
      %v350 = vld [vmem:[%s254 + $0x200] sm:$0xff]
      %v351 = vld [vmem:[%s254 + $0x208] sm:$0xff]
      %v352 = vld [vmem:[%s254 + $0x210] sm:$0xf]
      %v353 = vld [vmem:[%s254 + $0x214] sm:$0xff]
      %v354 = vld [vmem:[%s254 + $0x21c] sm:$0xff]
      %v355 = vld [vmem:[%s254 + $0x224] sm:$0xff]
      %v356 = vld [vmem:[%s254 + $0x22c] sm:$0xf]
      %v357 = vld [vmem:[%s254 + $0x230] sm:$0xff]
      %v358 = vld [vmem:[%s254 + $0x238] sm:$0xff]
      %v359 = vld [vmem:[%s254 + $0x240] sm:$0xff]
      %v360 = vld [vmem:[%s254 + $0x248] sm:$0xf]
      %v361 = vld [vmem:[%s254 + $0x24c] sm:$0xff]
      %v362 = vld [vmem:[%s254 + $0x254] sm:$0xff]
      %v363 = vld [vmem:[%s254 + $0x25c] sm:$0xff]
      %v364 = vld [vmem:[%s254 + $0x264] sm:$0xf]
      %v365 = vld [vmem:[%s254 + $0x268] sm:$0xff]
      %v366 = vld [vmem:[%s254 + $0x270] sm:$0xff]
      %v367 = vld [vmem:[%s254 + $0x278] sm:$0xff]
      %v368 = vld [vmem:[%s254 + $0x280] sm:$0xf]
      %v369 = vld [vmem:[%s254 + $0x284] sm:$0xff]
      %v370 = vld [vmem:[%s254 + $0x28c] sm:$0xff]
      %v371 = vld [vmem:[%s254 + $0x294] sm:$0xff]
      %v372 = vld [vmem:[%s254 + $0x29c] sm:$0xf]
      %v373 = vld [vmem:[%s254 + $0x2a0] sm:$0xff]
      %v374 = vld [vmem:[%s254 + $0x2a8] sm:$0xff]
      %v375 = vld [vmem:[%s254 + $0x2b0] sm:$0xff]
      %v376 = vld [vmem:[%s254 + $0x2b8] sm:$0xf]
      %v377 = vld [vmem:[%s254 + $0x2bc] sm:$0xff]
      %v378 = vld [vmem:[%s254 + $0x2c4] sm:$0xff]
      %v379 = vld [vmem:[%s254 + $0x2cc] sm:$0xff]
      %v380 = vld [vmem:[%s254 + $0x2d4] sm:$0xf]
      %v381 = vld [vmem:[%s254 + $0x2d8] sm:$0xff]
      %v382 = vld [vmem:[%s254 + $0x2e0] sm:$0xff]
      %v383 = vld [vmem:[%s254 + $0x2e8] sm:$0xff]
      %v384 = vld [vmem:[%s254 + $0x2f0] sm:$0xf]
      %v385 = vld [vmem:[%s254 + $0x2f4] sm:$0xff]
      %v386 = vld [vmem:[%s254 + $0x2fc] sm:$0xff]
      %v387 = vld [vmem:[%s254 + $0x304] sm:$0xff]
      %v388 = vld [vmem:[%s254 + $0x30c] sm:$0xf]
      %v389 = vld [vmem:[%s254 + $0x310] sm:$0xff]
      %v390 = vld [vmem:[%s254 + $0x318] sm:$0xff]
      %v391 = vld [vmem:[%s254 + $0x320] sm:$0xff]
      %v392 = vld [vmem:[%s254 + $0x328] sm:$0xf]
      %v393 = vld [vmem:[%s254 + $0x32c] sm:$0xff]
      %v394 = vld [vmem:[%s254 + $0x334] sm:$0xff]
      %v395 = vld [vmem:[%s254 + $0x33c] sm:$0xff]
      %v396 = vld [vmem:[%s254 + $0x344] sm:$0xf]
      %v397 = vld [vmem:[%s254 + $0x348] sm:$0xff]
      %v398 = vld [vmem:[%s254 + $0x350] sm:$0xff]
      %v399 = vld [vmem:[%s254 + $0x358] sm:$0xff]
      %v400 = vld [vmem:[%s254 + $0x360] sm:$0xf]
      %v401 = vld [vmem:[%s254 + $0x364] sm:$0xff]
      %v402 = vld [vmem:[%s254 + $0x36c] sm:$0xff]
      %v403 = vld [vmem:[%s254 + $0x374] sm:$0xff]
      %v404 = vld [vmem:[%s254 + $0x37c] sm:$0xf]
      %v405 = vld [vmem:[%s1] sm:$0xf]
      %v406 = vld [vmem:[%s1 + $0x4] sm:$0xf]
      %v407 = vld [vmem:[%s1 + $0x8] sm:$0xf]
      %v408 = vld [vmem:[%s1 + $0xc] sm:$0xf]
      %v409 = vld [vmem:[%s1 + $0x10] sm:$0xf]
      %v410 = vld [vmem:[%s1 + $0x14] sm:$0xf]
      %v411 = vld [vmem:[%s1 + $0x18] sm:$0xf]
      %v412 = vld [vmem:[%s1 + $0x1c] sm:$0xf]
      %v413 = vld [vmem:[%s1 + $0x20] sm:$0xf]
      %v414 = vld [vmem:[%s1 + $0x24] sm:$0xf]
      %v415 = vld [vmem:[%s1 + $0x28] sm:$0xf]
      %v416 = vld [vmem:[%s1 + $0x2c] sm:$0xf]
      %v417 = vld [vmem:[%s1 + $0x30] sm:$0xf]
      %v418 = vld [vmem:[%s1 + $0x34] sm:$0xf]
      %v419 = vld [vmem:[%s1 + $0x38] sm:$0xf]
      %v420 = vld [vmem:[%s1 + $0x3c] sm:$0xf]
      %v421 = vld [vmem:[%s1 + $0x40] sm:$0xf]
      %v422 = vld [vmem:[%s1 + $0x44] sm:$0xf]
      %v423 = vld [vmem:[%s1 + $0x48] sm:$0xf]
      %v424 = vld [vmem:[%s1 + $0x4c] sm:$0xf]
      %v425 = vld [vmem:[%s1 + $0x50] sm:$0xf]
      %v426 = vld [vmem:[%s1 + $0x54] sm:$0xf]
      %v427 = vld [vmem:[%s1 + $0x58] sm:$0xf]
      %v428 = vld [vmem:[%s1 + $0x5c] sm:$0xf]
      %v429 = vld [vmem:[%s1 + $0x60] sm:$0xf]
      %v430 = vld [vmem:[%s1 + $0x64] sm:$0xf]
      %v431 = vld [vmem:[%s1 + $0x68] sm:$0xf]
      %v432 = vld [vmem:[%s1 + $0x6c] sm:$0xf]
      %v433 = vld [vmem:[%s1 + $0x70] sm:$0xf]
      %v434 = vld [vmem:[%s1 + $0x74] sm:$0xf]
      %v435 = vld [vmem:[%s1 + $0x78] sm:$0xf]
      %v436 = vld [vmem:[%s1 + $0x7c] sm:$0xf]
      %v437 = vld [vmem:[%s1 + $0x80] sm:$0xf]
      %v438 = vld [vmem:[%s1 + $0x84] sm:$0xf]
      %v439 = vld [vmem:[%s1 + $0x88] sm:$0xf]
      %v440 = vld [vmem:[%s1 + $0x8c] sm:$0xf]
      %v441 = vld [vmem:[%s1 + $0x90] sm:$0xf]
      %v442 = vld [vmem:[%s1 + $0x94] sm:$0xf]
      %v443 = vld [vmem:[%s1 + $0x98] sm:$0xf]
      %v444 = vld [vmem:[%s1 + $0x9c] sm:$0xf]
      %v445 = vld [vmem:[%s1 + $0xa0] sm:$0xf]
      %v446 = vld [vmem:[%s1 + $0xa4] sm:$0xf]
      %v447 = vld [vmem:[%s1 + $0xa8] sm:$0xf]
      %v448 = vld [vmem:[%s1 + $0xac] sm:$0xf]
      %v449 = vld [vmem:[%s1 + $0xb0] sm:$0xf]
      %v450 = vld [vmem:[%s1 + $0xb4] sm:$0xf]
      %v451 = vld [vmem:[%s1 + $0xb8] sm:$0xf]
      %v452 = vld [vmem:[%s1 + $0xbc] sm:$0xf]
      %v453 = vld [vmem:[%s1 + $0xc0] sm:$0xf]
      %v454 = vld [vmem:[%s1 + $0xc4] sm:$0xf]
      %v455 = vld [vmem:[%s1 + $0xc8] sm:$0xf]
      %v456 = vld [vmem:[%s1 + $0xcc] sm:$0xf]
      %v457 = vld [vmem:[%s1 + $0xd0] sm:$0xf]
      %v458 = vld [vmem:[%s1 + $0xd4] sm:$0xf]
      %v459 = vld [vmem:[%s1 + $0xd8] sm:$0xf]
      %v460 = vld [vmem:[%s1 + $0xdc] sm:$0xf]
      %v461 = vld [vmem:[%s1 + $0xe0] sm:$0xf]
      %v462 = vld [vmem:[%s1 + $0xe4] sm:$0xf]
      %v463 = vld [vmem:[%s1 + $0xe8] sm:$0xf]
      %v464 = vld [vmem:[%s1 + $0xec] sm:$0xf]
      %v465 = vld [vmem:[%s1 + $0xf0] sm:$0xf]
      %v466 = vld [vmem:[%s1 + $0xf4] sm:$0xf]
      %v467 = vld [vmem:[%s1 + $0xf8] sm:$0xf]
      %v468 = vld [vmem:[%s1 + $0xfc] sm:$0xf]
      %v469 = vld [vmem:[%s1 + $0x100] sm:$0xf]
      %v470 = vld [vmem:[%s1 + $0x104] sm:$0xf]
      %v471 = vld [vmem:[%s1 + $0x108] sm:$0xf]
      %v472 = vld [vmem:[%s1 + $0x10c] sm:$0xf]
      %v473 = vld [vmem:[%s1 + $0x110] sm:$0xf]
      %v474 = vld [vmem:[%s1 + $0x114] sm:$0xf]
      %v475 = vld [vmem:[%s1 + $0x118] sm:$0xf]
      %v476 = vld [vmem:[%s1 + $0x11c] sm:$0xf]
      %v477 = vld [vmem:[%s1 + $0x120] sm:$0xf]
      %v478 = vld [vmem:[%s1 + $0x124] sm:$0xf]
      %v479 = vld [vmem:[%s1 + $0x128] sm:$0xf]
      %v480 = vld [vmem:[%s1 + $0x12c] sm:$0xf]
      %v481 = vld [vmem:[%s1 + $0x130] sm:$0xf]
      %v482 = vld [vmem:[%s1 + $0x134] sm:$0xf]
      %v483 = vld [vmem:[%s1 + $0x138] sm:$0xf]
      %v484 = vld [vmem:[%s1 + $0x13c] sm:$0xf]
      %v485 = vld [vmem:[%s1 + $0x140] sm:$0xf]
      %v486 = vld [vmem:[%s1 + $0x144] sm:$0xf]
      %v487 = vld [vmem:[%s1 + $0x148] sm:$0xf]
      %v488 = vld [vmem:[%s1 + $0x14c] sm:$0xf]
      %v489 = vld [vmem:[%s1 + $0x150] sm:$0xf]
      %v490 = vld [vmem:[%s1 + $0x154] sm:$0xf]
      %v491 = vld [vmem:[%s1 + $0x158] sm:$0xf]
      %v492 = vld [vmem:[%s1 + $0x15c] sm:$0xf]
      %v493 = vld [vmem:[%s1 + $0x160] sm:$0xf]
      %v494 = vld [vmem:[%s1 + $0x164] sm:$0xf]
      %v495 = vld [vmem:[%s1 + $0x168] sm:$0xf]
      %v496 = vld [vmem:[%s1 + $0x16c] sm:$0xf]
      %v497 = vld [vmem:[%s1 + $0x170] sm:$0xf]
      %v498 = vld [vmem:[%s1 + $0x174] sm:$0xf]
      %v499 = vld [vmem:[%s1 + $0x178] sm:$0xf]
      %v500 = vld [vmem:[%s1 + $0x17c] sm:$0xf]
      %v501 = vld [vmem:[%s1 + $0x180] sm:$0xf]
      %v502 = vld [vmem:[%s1 + $0x184] sm:$0xf]
      %v503 = vld [vmem:[%s1 + $0x188] sm:$0xf]
      %v504 = vld [vmem:[%s1 + $0x18c] sm:$0xf]
      %v505 = vld [vmem:[%s1 + $0x190] sm:$0xf]
      %v506 = vld [vmem:[%s1 + $0x194] sm:$0xf]
      %v507 = vld [vmem:[%s1 + $0x198] sm:$0xf]
      %v508 = vld [vmem:[%s1 + $0x19c] sm:$0xf]
      %v509 = vld [vmem:[%s1 + $0x1a0] sm:$0xf]
      %v510 = vld [vmem:[%s1 + $0x1a4] sm:$0xf]
      %v511 = vld [vmem:[%s1 + $0x1a8] sm:$0xf]
      %v512 = vld [vmem:[%s1 + $0x1ac] sm:$0xf]
      %v513 = vld [vmem:[%s2] sm:$0x1]
      %v515 = vlaneseq
      %v516 = vshrl.u32 %v515, 7
      %v517 = vsub.s32 0, %v516
      %v518 = vrot.slane %v513, %v517
      %v648 = vunpack.c.l.b16 %v277
      %v649 = vunpack.c.h.b16 %v277
      %v650 = vunpack.c.l.b16 %v278
      %v651 = vunpack.c.h.b16 %v278
      %v652 = vunpack.c.l.b16 %v279
      %v653 = vunpack.c.h.b16 %v279
      %v654 = vunpack.c.l.b16 %v280
      %v655 = vunpack.c.l.b16 %v281
      %v656 = vunpack.c.h.b16 %v281
      %v657 = vunpack.c.l.b16 %v282
      %v658 = vunpack.c.h.b16 %v282
      %v659 = vunpack.c.l.b16 %v283
      %v660 = vunpack.c.h.b16 %v283
      %v661 = vunpack.c.l.b16 %v284
      %v662 = vunpack.c.l.b16 %v285
      %v663 = vunpack.c.h.b16 %v285
      %v664 = vunpack.c.l.b16 %v286
      %v665 = vunpack.c.h.b16 %v286
      %v666 = vunpack.c.l.b16 %v287
      %v667 = vunpack.c.h.b16 %v287
      %v668 = vunpack.c.l.b16 %v288
      %v669 = vunpack.c.l.b16 %v289
      %v670 = vunpack.c.h.b16 %v289
      %v671 = vunpack.c.l.b16 %v290
      %v672 = vunpack.c.h.b16 %v290
      %v673 = vunpack.c.l.b16 %v291
      %v674 = vunpack.c.h.b16 %v291
      %v675 = vunpack.c.l.b16 %v292
      %v676 = vunpack.c.l.b16 %v293
      %v677 = vunpack.c.h.b16 %v293
      %v678 = vunpack.c.l.b16 %v294
      %v679 = vunpack.c.h.b16 %v294
      %v680 = vunpack.c.l.b16 %v295
      %v681 = vunpack.c.h.b16 %v295
      %v682 = vunpack.c.l.b16 %v296
      %v683 = vunpack.c.l.b16 %v297
      %v684 = vunpack.c.h.b16 %v297
      %v685 = vunpack.c.l.b16 %v298
      %v686 = vunpack.c.h.b16 %v298
      %v687 = vunpack.c.l.b16 %v299
      %v688 = vunpack.c.h.b16 %v299
      %v689 = vunpack.c.l.b16 %v300
      %v690 = vunpack.c.l.b16 %v301
      %v691 = vunpack.c.h.b16 %v301
      %v692 = vunpack.c.l.b16 %v302
      %v693 = vunpack.c.h.b16 %v302
      %v694 = vunpack.c.l.b16 %v303
      %v695 = vunpack.c.h.b16 %v303
      %v696 = vunpack.c.l.b16 %v304
      %v697 = vunpack.c.l.b16 %v305
      %v698 = vunpack.c.h.b16 %v305
      %v699 = vunpack.c.l.b16 %v306
      %v700 = vunpack.c.h.b16 %v306
      %v701 = vunpack.c.l.b16 %v307
      %v702 = vunpack.c.h.b16 %v307
      %v703 = vunpack.c.l.b16 %v308
      %v704 = vunpack.c.l.b16 %v309
      %v705 = vunpack.c.h.b16 %v309
      %v706 = vunpack.c.l.b16 %v310
      %v707 = vunpack.c.h.b16 %v310
      %v708 = vunpack.c.l.b16 %v311
      %v709 = vunpack.c.h.b16 %v311
      %v710 = vunpack.c.l.b16 %v312
      %v711 = vunpack.c.l.b16 %v313
      %v712 = vunpack.c.h.b16 %v313
      %v713 = vunpack.c.l.b16 %v314
      %v714 = vunpack.c.h.b16 %v314
      %v715 = vunpack.c.l.b16 %v315
      %v716 = vunpack.c.h.b16 %v315
      %v717 = vunpack.c.l.b16 %v316
      %v718 = vunpack.c.l.b16 %v317
      %v719 = vunpack.c.h.b16 %v317
      %v720 = vunpack.c.l.b16 %v318
      %v721 = vunpack.c.h.b16 %v318
      %v722 = vunpack.c.l.b16 %v319
      %v723 = vunpack.c.h.b16 %v319
      %v724 = vunpack.c.l.b16 %v320
      %v725 = vunpack.c.l.b16 %v321
      %v726 = vunpack.c.h.b16 %v321
      %v727 = vunpack.c.l.b16 %v322
      %v728 = vunpack.c.h.b16 %v322
      %v729 = vunpack.c.l.b16 %v323
      %v730 = vunpack.c.h.b16 %v323
      %v731 = vunpack.c.l.b16 %v324
      %v732 = vunpack.c.l.b16 %v325
      %v733 = vunpack.c.h.b16 %v325
      %v734 = vunpack.c.l.b16 %v326
      %v735 = vunpack.c.h.b16 %v326
      %v736 = vunpack.c.l.b16 %v327
      %v737 = vunpack.c.h.b16 %v327
      %v738 = vunpack.c.l.b16 %v328
      %v739 = vunpack.c.l.b16 %v329
      %v740 = vunpack.c.h.b16 %v329
      %v741 = vunpack.c.l.b16 %v330
      %v742 = vunpack.c.h.b16 %v330
      %v743 = vunpack.c.l.b16 %v331
      %v744 = vunpack.c.h.b16 %v331
      %v745 = vunpack.c.l.b16 %v332
      %v746 = vunpack.c.l.b16 %v333
      %v747 = vunpack.c.h.b16 %v333
      %v748 = vunpack.c.l.b16 %v334
      %v749 = vunpack.c.h.b16 %v334
      %v750 = vunpack.c.l.b16 %v335
      %v751 = vunpack.c.h.b16 %v335
      %v752 = vunpack.c.l.b16 %v336
      %v753 = vunpack.c.l.b16 %v337
      %v754 = vunpack.c.h.b16 %v337
      %v755 = vunpack.c.l.b16 %v338
      %v756 = vunpack.c.h.b16 %v338
      %v757 = vunpack.c.l.b16 %v339
      %v758 = vunpack.c.h.b16 %v339
      %v759 = vunpack.c.l.b16 %v340
      %v760 = vunpack.c.l.b16 %v341
      %v761 = vunpack.c.h.b16 %v341
      %v762 = vunpack.c.l.b16 %v342
      %v763 = vunpack.c.h.b16 %v342
      %v764 = vunpack.c.l.b16 %v343
      %v765 = vunpack.c.h.b16 %v343
      %v766 = vunpack.c.l.b16 %v344
      %v767 = vunpack.c.l.b16 %v345
      %v768 = vunpack.c.h.b16 %v345
      %v769 = vunpack.c.l.b16 %v346
      %v770 = vunpack.c.h.b16 %v346
      %v771 = vunpack.c.l.b16 %v347
      %v772 = vunpack.c.h.b16 %v347
      %v773 = vunpack.c.l.b16 %v348
      %v774 = vunpack.c.l.b16 %v349
      %v775 = vunpack.c.h.b16 %v349
      %v776 = vunpack.c.l.b16 %v350
      %v777 = vunpack.c.h.b16 %v350
      %v778 = vunpack.c.l.b16 %v351
      %v779 = vunpack.c.h.b16 %v351
      %v780 = vunpack.c.l.b16 %v352
      %v781 = vunpack.c.l.b16 %v353
      %v782 = vunpack.c.h.b16 %v353
      %v783 = vunpack.c.l.b16 %v354
      %v784 = vunpack.c.h.b16 %v354
      %v785 = vunpack.c.l.b16 %v355
      %v786 = vunpack.c.h.b16 %v355
      %v787 = vunpack.c.l.b16 %v356
      %v788 = vunpack.c.l.b16 %v357
      %v789 = vunpack.c.h.b16 %v357
      %v790 = vunpack.c.l.b16 %v358
      %v791 = vunpack.c.h.b16 %v358
      %v792 = vunpack.c.l.b16 %v359
      %v793 = vunpack.c.h.b16 %v359
      %v794 = vunpack.c.l.b16 %v360
      %v795 = vunpack.c.l.b16 %v361
      %v796 = vunpack.c.h.b16 %v361
      %v797 = vunpack.c.l.b16 %v362
      %v798 = vunpack.c.h.b16 %v362
      %v799 = vunpack.c.l.b16 %v363
      %v800 = vunpack.c.h.b16 %v363
      %v801 = vunpack.c.l.b16 %v364
      %v802 = vunpack.c.l.b16 %v365
      %v803 = vunpack.c.h.b16 %v365
      %v804 = vunpack.c.l.b16 %v366
      %v805 = vunpack.c.h.b16 %v366
      %v806 = vunpack.c.l.b16 %v367
      %v807 = vunpack.c.h.b16 %v367
      %v808 = vunpack.c.l.b16 %v368
      %v809 = vunpack.c.l.b16 %v369
      %v810 = vunpack.c.h.b16 %v369
      %v811 = vunpack.c.l.b16 %v370
      %v812 = vunpack.c.h.b16 %v370
      %v813 = vunpack.c.l.b16 %v371
      %v814 = vunpack.c.h.b16 %v371
      %v815 = vunpack.c.l.b16 %v372
      %v816 = vunpack.c.l.b16 %v373
      %v817 = vunpack.c.h.b16 %v373
      %v818 = vunpack.c.l.b16 %v374
      %v819 = vunpack.c.h.b16 %v374
      %v820 = vunpack.c.l.b16 %v375
      %v821 = vunpack.c.h.b16 %v375
      %v822 = vunpack.c.l.b16 %v376
      %v823 = vunpack.c.l.b16 %v377
      %v824 = vunpack.c.h.b16 %v377
      %v825 = vunpack.c.l.b16 %v378
      %v826 = vunpack.c.h.b16 %v378
      %v827 = vunpack.c.l.b16 %v379
      %v828 = vunpack.c.h.b16 %v379
      %v829 = vunpack.c.l.b16 %v380
      %v830 = vunpack.c.l.b16 %v381
      %v831 = vunpack.c.h.b16 %v381
      %v832 = vunpack.c.l.b16 %v382
      %v833 = vunpack.c.h.b16 %v382
      %v834 = vunpack.c.l.b16 %v383
      %v835 = vunpack.c.h.b16 %v383
      %v836 = vunpack.c.l.b16 %v384
      %v837 = vunpack.c.l.b16 %v385
      %v838 = vunpack.c.h.b16 %v385
      %v839 = vunpack.c.l.b16 %v386
      %v840 = vunpack.c.h.b16 %v386
      %v841 = vunpack.c.l.b16 %v387
      %v842 = vunpack.c.h.b16 %v387
      %v843 = vunpack.c.l.b16 %v388
      %v844 = vunpack.c.l.b16 %v389
      %v845 = vunpack.c.h.b16 %v389
      %v846 = vunpack.c.l.b16 %v390
      %v847 = vunpack.c.h.b16 %v390
      %v848 = vunpack.c.l.b16 %v391
      %v849 = vunpack.c.h.b16 %v391
      %v850 = vunpack.c.l.b16 %v392
      %v851 = vunpack.c.l.b16 %v393
      %v852 = vunpack.c.h.b16 %v393
      %v853 = vunpack.c.l.b16 %v394
      %v854 = vunpack.c.h.b16 %v394
      %v855 = vunpack.c.l.b16 %v395
      %v856 = vunpack.c.h.b16 %v395
      %v857 = vunpack.c.l.b16 %v396
      %v858 = vunpack.c.l.b16 %v397
      %v859 = vunpack.c.h.b16 %v397
      %v860 = vunpack.c.l.b16 %v398
      %v861 = vunpack.c.h.b16 %v398
      %v862 = vunpack.c.l.b16 %v399
      %v863 = vunpack.c.h.b16 %v399
      %v864 = vunpack.c.l.b16 %v400
      %v865 = vunpack.c.l.b16 %v401
      %v866 = vunpack.c.h.b16 %v401
      %v867 = vunpack.c.l.b16 %v402
      %v868 = vunpack.c.h.b16 %v402
      %v869 = vunpack.c.l.b16 %v403
      %v870 = vunpack.c.h.b16 %v403
      %v871 = vunpack.c.l.b16 %v404
      %v872 = vpack.c.b16 %v655, %v648
      %v873 = vpack.c.b16 %v656, %v649
      %v874 = vpack.c.b16 %v657, %v650
      %v875 = vpack.c.b16 %v658, %v651
      %v876 = vpack.c.b16 %v659, %v652
      %v877 = vpack.c.b16 %v660, %v653
      %v878 = vpack.c.b16 %v661, %v654
      %v879 = vpack.c.b16 %v669, %v662
      %v880 = vpack.c.b16 %v670, %v663
      %v881 = vpack.c.b16 %v671, %v664
      %v882 = vpack.c.b16 %v672, %v665
      %v883 = vpack.c.b16 %v673, %v666
      %v884 = vpack.c.b16 %v674, %v667
      %v885 = vpack.c.b16 %v675, %v668
      %v886 = vpack.c.b16 %v683, %v676
      %v887 = vpack.c.b16 %v684, %v677
      %v888 = vpack.c.b16 %v685, %v678
      %v889 = vpack.c.b16 %v686, %v679
      %v890 = vpack.c.b16 %v687, %v680
      %v891 = vpack.c.b16 %v688, %v681
      %v892 = vpack.c.b16 %v689, %v682
      %v893 = vpack.c.b16 %v697, %v690
      %v894 = vpack.c.b16 %v698, %v691
      %v895 = vpack.c.b16 %v699, %v692
      %v896 = vpack.c.b16 %v700, %v693
      %v897 = vpack.c.b16 %v701, %v694
      %v898 = vpack.c.b16 %v702, %v695
      %v899 = vpack.c.b16 %v703, %v696
      %v900 = vpack.c.b16 %v711, %v704
      %v901 = vpack.c.b16 %v712, %v705
      %v902 = vpack.c.b16 %v713, %v706
      %v903 = vpack.c.b16 %v714, %v707
      %v904 = vpack.c.b16 %v715, %v708
      %v905 = vpack.c.b16 %v716, %v709
      %v906 = vpack.c.b16 %v717, %v710
      %v907 = vpack.c.b16 %v725, %v718
      %v908 = vpack.c.b16 %v726, %v719
      %v909 = vpack.c.b16 %v727, %v720
      %v910 = vpack.c.b16 %v728, %v721
      %v911 = vpack.c.b16 %v729, %v722
      %v912 = vpack.c.b16 %v730, %v723
      %v913 = vpack.c.b16 %v731, %v724
      %v914 = vpack.c.b16 %v739, %v732
      %v915 = vpack.c.b16 %v740, %v733
      %v916 = vpack.c.b16 %v741, %v734
      %v917 = vpack.c.b16 %v742, %v735
      %v918 = vpack.c.b16 %v743, %v736
      %v919 = vpack.c.b16 %v744, %v737
      %v920 = vpack.c.b16 %v745, %v738
      %v921 = vpack.c.b16 %v753, %v746
      %v922 = vpack.c.b16 %v754, %v747
      %v923 = vpack.c.b16 %v755, %v748
      %v924 = vpack.c.b16 %v756, %v749
      %v925 = vpack.c.b16 %v757, %v750
      %v926 = vpack.c.b16 %v758, %v751
      %v927 = vpack.c.b16 %v759, %v752
      %v928 = vpack.c.b16 %v767, %v760
      %v929 = vpack.c.b16 %v768, %v761
      %v930 = vpack.c.b16 %v769, %v762
      %v931 = vpack.c.b16 %v770, %v763
      %v932 = vpack.c.b16 %v771, %v764
      %v933 = vpack.c.b16 %v772, %v765
      %v934 = vpack.c.b16 %v773, %v766
      %v935 = vpack.c.b16 %v781, %v774
      %v936 = vpack.c.b16 %v782, %v775
      %v937 = vpack.c.b16 %v783, %v776
      %v938 = vpack.c.b16 %v784, %v777
      %v939 = vpack.c.b16 %v785, %v778
      %v940 = vpack.c.b16 %v786, %v779
      %v941 = vpack.c.b16 %v787, %v780
      %v942 = vpack.c.b16 %v795, %v788
      %v943 = vpack.c.b16 %v796, %v789
      %v944 = vpack.c.b16 %v797, %v790
      %v945 = vpack.c.b16 %v798, %v791
      %v946 = vpack.c.b16 %v799, %v792
      %v947 = vpack.c.b16 %v800, %v793
      %v948 = vpack.c.b16 %v801, %v794
      %v949 = vpack.c.b16 %v809, %v802
      %v950 = vpack.c.b16 %v810, %v803
      %v951 = vpack.c.b16 %v811, %v804
      %v952 = vpack.c.b16 %v812, %v805
      %v953 = vpack.c.b16 %v813, %v806
      %v954 = vpack.c.b16 %v814, %v807
      %v955 = vpack.c.b16 %v815, %v808
      %v956 = vpack.c.b16 %v823, %v816
      %v957 = vpack.c.b16 %v824, %v817
      %v958 = vpack.c.b16 %v825, %v818
      %v959 = vpack.c.b16 %v826, %v819
      %v960 = vpack.c.b16 %v827, %v820
      %v961 = vpack.c.b16 %v828, %v821
      %v962 = vpack.c.b16 %v829, %v822
      %v963 = vpack.c.b16 %v837, %v830
      %v964 = vpack.c.b16 %v838, %v831
      %v965 = vpack.c.b16 %v839, %v832
      %v966 = vpack.c.b16 %v840, %v833
      %v967 = vpack.c.b16 %v841, %v834
      %v968 = vpack.c.b16 %v842, %v835
      %v969 = vpack.c.b16 %v843, %v836
      %v970 = vpack.c.b16 %v851, %v844
      %v971 = vpack.c.b16 %v852, %v845
      %v972 = vpack.c.b16 %v853, %v846
      %v973 = vpack.c.b16 %v854, %v847
      %v974 = vpack.c.b16 %v855, %v848
      %v975 = vpack.c.b16 %v856, %v849
      %v976 = vpack.c.b16 %v857, %v850
      %v977 = vpack.c.b16 %v865, %v858
      %v978 = vpack.c.b16 %v866, %v859
      %v979 = vpack.c.b16 %v867, %v860
      %v980 = vpack.c.b16 %v868, %v861
      %v981 = vpack.c.b16 %v869, %v862
      %v982 = vpack.c.b16 %v870, %v863
      %v983 = vpack.c.b16 %v871, %v864
      %v1188 = vunpack.c.l.b16 %v405
      %v1189 = vunpack.c.l.b16 %v406
      %v1190 = vunpack.c.l.b16 %v407
      %v1191 = vunpack.c.l.b16 %v408
      %v1192 = vunpack.c.l.b16 %v409
      %v1193 = vunpack.c.l.b16 %v410
      %v1194 = vunpack.c.l.b16 %v411
      %v1195 = vunpack.c.l.b16 %v412
      %v1196 = vunpack.c.l.b16 %v413
      %v1197 = vunpack.c.l.b16 %v414
      %v1198 = vunpack.c.l.b16 %v415
      %v1199 = vunpack.c.l.b16 %v416
      %v1200 = vunpack.c.l.b16 %v417
      %v1201 = vunpack.c.l.b16 %v418
      %v1202 = vunpack.c.l.b16 %v419
      %v1203 = vunpack.c.l.b16 %v420
      %v1204 = vunpack.c.l.b16 %v421
      %v1205 = vunpack.c.l.b16 %v422
      %v1206 = vunpack.c.l.b16 %v423
      %v1207 = vunpack.c.l.b16 %v424
      %v1208 = vunpack.c.l.b16 %v425
      %v1209 = vunpack.c.l.b16 %v426
      %v1210 = vunpack.c.l.b16 %v427
      %v1211 = vunpack.c.l.b16 %v428
      %v1212 = vunpack.c.l.b16 %v429
      %v1213 = vunpack.c.l.b16 %v430
      %v1214 = vunpack.c.l.b16 %v431
      %v1215 = vunpack.c.l.b16 %v432
      %v1216 = vunpack.c.l.b16 %v433
      %v1217 = vunpack.c.l.b16 %v434
      %v1218 = vunpack.c.l.b16 %v435
      %v1219 = vunpack.c.l.b16 %v436
      %v1220 = vunpack.c.l.b16 %v437
      %v1221 = vunpack.c.l.b16 %v438
      %v1222 = vunpack.c.l.b16 %v439
      %v1223 = vunpack.c.l.b16 %v440
      %v1224 = vunpack.c.l.b16 %v441
      %v1225 = vunpack.c.l.b16 %v442
      %v1226 = vunpack.c.l.b16 %v443
      %v1227 = vunpack.c.l.b16 %v444
      %v1228 = vunpack.c.l.b16 %v445
      %v1229 = vunpack.c.l.b16 %v446
      %v1230 = vunpack.c.l.b16 %v447
      %v1231 = vunpack.c.l.b16 %v448
      %v1232 = vunpack.c.l.b16 %v449
      %v1233 = vunpack.c.l.b16 %v450
      %v1234 = vunpack.c.l.b16 %v451
      %v1235 = vunpack.c.l.b16 %v452
      %v1236 = vunpack.c.l.b16 %v453
      %v1237 = vunpack.c.l.b16 %v454
      %v1238 = vunpack.c.l.b16 %v455
      %v1239 = vunpack.c.l.b16 %v456
      %v1240 = vunpack.c.l.b16 %v457
      %v1241 = vunpack.c.l.b16 %v458
      %v1242 = vunpack.c.l.b16 %v459
      %v1243 = vunpack.c.l.b16 %v460
      %v1244 = vunpack.c.l.b16 %v461
      %v1245 = vunpack.c.l.b16 %v462
      %v1246 = vunpack.c.l.b16 %v463
      %v1247 = vunpack.c.l.b16 %v464
      %v1248 = vunpack.c.l.b16 %v465
      %v1249 = vunpack.c.l.b16 %v466
      %v1250 = vunpack.c.l.b16 %v467
      %v1251 = vunpack.c.l.b16 %v468
      %v1252 = vunpack.c.l.b16 %v469
      %v1253 = vunpack.c.l.b16 %v470
      %v1254 = vunpack.c.l.b16 %v471
      %v1255 = vunpack.c.l.b16 %v472
      %v1256 = vunpack.c.l.b16 %v473
      %v1257 = vunpack.c.l.b16 %v474
      %v1258 = vunpack.c.l.b16 %v475
      %v1259 = vunpack.c.l.b16 %v476
      %v1260 = vunpack.c.l.b16 %v477
      %v1261 = vunpack.c.l.b16 %v478
      %v1262 = vunpack.c.l.b16 %v479
      %v1263 = vunpack.c.l.b16 %v480
      %v1264 = vunpack.c.l.b16 %v481
      %v1265 = vunpack.c.l.b16 %v482
      %v1266 = vunpack.c.l.b16 %v483
      %v1267 = vunpack.c.l.b16 %v484
      %v1268 = vunpack.c.l.b16 %v485
      %v1269 = vunpack.c.l.b16 %v486
      %v1270 = vunpack.c.l.b16 %v487
      %v1271 = vunpack.c.l.b16 %v488
      %v1272 = vunpack.c.l.b16 %v489
      %v1273 = vunpack.c.l.b16 %v490
      %v1274 = vunpack.c.l.b16 %v491
      %v1275 = vunpack.c.l.b16 %v492
      %v1276 = vunpack.c.l.b16 %v493
      %v1277 = vunpack.c.l.b16 %v494
      %v1278 = vunpack.c.l.b16 %v495
      %v1279 = vunpack.c.l.b16 %v496
      %v1280 = vunpack.c.l.b16 %v497
      %v1281 = vunpack.c.l.b16 %v498
      %v1282 = vunpack.c.l.b16 %v499
      %v1283 = vunpack.c.l.b16 %v500
      %v1284 = vunpack.c.l.b16 %v501
      %v1285 = vunpack.c.l.b16 %v502
      %v1286 = vunpack.c.l.b16 %v503
      %v1287 = vunpack.c.l.b16 %v504
      %v1288 = vunpack.c.l.b16 %v505
      %v1289 = vunpack.c.l.b16 %v506
      %v1290 = vunpack.c.l.b16 %v507
      %v1291 = vunpack.c.l.b16 %v508
      %v1292 = vunpack.c.l.b16 %v509
      %v1293 = vunpack.c.l.b16 %v510
      %v1294 = vunpack.c.l.b16 %v511
      %v1295 = vunpack.c.l.b16 %v512
      %v1296 = vpack.c.b16 %v1189, %v1188
      %v1297 = vpack.c.b16 %v1191, %v1190
      %v1298 = vpack.c.b16 %v1193, %v1192
      %v1299 = vpack.c.b16 %v1195, %v1194
      %v1300 = vpack.c.b16 %v1197, %v1196
      %v1301 = vpack.c.b16 %v1199, %v1198
      %v1302 = vpack.c.b16 %v1201, %v1200
      %v1303 = vpack.c.b16 %v1203, %v1202
      %v1304 = vpack.c.b16 %v1205, %v1204
      %v1305 = vpack.c.b16 %v1207, %v1206
      %v1306 = vpack.c.b16 %v1209, %v1208
      %v1307 = vpack.c.b16 %v1211, %v1210
      %v1308 = vpack.c.b16 %v1213, %v1212
      %v1309 = vpack.c.b16 %v1215, %v1214
      %v1310 = vpack.c.b16 %v1217, %v1216
      %v1311 = vpack.c.b16 %v1219, %v1218
      %v1312 = vpack.c.b16 %v1221, %v1220
      %v1313 = vpack.c.b16 %v1223, %v1222
      %v1314 = vpack.c.b16 %v1225, %v1224
      %v1315 = vpack.c.b16 %v1227, %v1226
      %v1316 = vpack.c.b16 %v1229, %v1228
      %v1317 = vpack.c.b16 %v1231, %v1230
      %v1318 = vpack.c.b16 %v1233, %v1232
      %v1319 = vpack.c.b16 %v1235, %v1234
      %v1320 = vpack.c.b16 %v1237, %v1236
      %v1321 = vpack.c.b16 %v1239, %v1238
      %v1322 = vpack.c.b16 %v1241, %v1240
      %v1323 = vpack.c.b16 %v1243, %v1242
      %v1324 = vpack.c.b16 %v1245, %v1244
      %v1325 = vpack.c.b16 %v1247, %v1246
      %v1326 = vpack.c.b16 %v1249, %v1248
      %v1327 = vpack.c.b16 %v1251, %v1250
      %v1328 = vpack.c.b16 %v1253, %v1252
      %v1329 = vpack.c.b16 %v1255, %v1254
      %v1330 = vpack.c.b16 %v1257, %v1256
      %v1331 = vpack.c.b16 %v1259, %v1258
      %v1332 = vpack.c.b16 %v1261, %v1260
      %v1333 = vpack.c.b16 %v1263, %v1262
      %v1334 = vpack.c.b16 %v1265, %v1264
      %v1335 = vpack.c.b16 %v1267, %v1266
      %v1336 = vpack.c.b16 %v1269, %v1268
      %v1337 = vpack.c.b16 %v1271, %v1270
      %v1338 = vpack.c.b16 %v1273, %v1272
      %v1339 = vpack.c.b16 %v1275, %v1274
      %v1340 = vpack.c.b16 %v1277, %v1276
      %v1341 = vpack.c.b16 %v1279, %v1278
      %v1342 = vpack.c.b16 %v1281, %v1280
      %v1343 = vpack.c.b16 %v1283, %v1282
      %v1344 = vpack.c.b16 %v1285, %v1284
      %v1345 = vpack.c.b16 %v1287, %v1286
      %v1346 = vpack.c.b16 %v1289, %v1288
      %v1347 = vpack.c.b16 %v1291, %v1290
      %v1348 = vpack.c.b16 %v1293, %v1292
      %v1349 = vpack.c.b16 %v1295, %v1294
      %vm1404 = vcmask 785408
      %v1406 = vsel %vm1404, %v878, 0
      %v1409 = vsel %vm1404, %v885, 0
      %v1412 = vsel %vm1404, %v892, 0
      %v1415 = vsel %vm1404, %v899, 0
      %v1418 = vsel %vm1404, %v906, 0
      %v1421 = vsel %vm1404, %v913, 0
      %v1424 = vsel %vm1404, %v920, 0
      %v1427 = vsel %vm1404, %v927, 0
      %v1430 = vsel %vm1404, %v934, 0
      %v1433 = vsel %vm1404, %v941, 0
      %v1436 = vsel %vm1404, %v948, 0
      %v1439 = vsel %vm1404, %v955, 0
      %v1442 = vsel %vm1404, %v962, 0
      %v1445 = vsel %vm1404, %v969, 0
      %v1448 = vsel %vm1404, %v976, 0
      %v1451 = vsel %vm1404, %v983, 0
      %1453 = vmatprep.subr.bf16.mxu0 0
      %1454 = vmatpush1.bf16.msra.mxu0 %v1303
      %1455 = vmatprep.subr.bf16.mxu0 0
      %1456 = vmatpush1.bf16.msra.mxu0 %v1302
      %1457 = vmatprep.subr.bf16.mxu0 0
      %1458 = vmatpush1.bf16.msra.mxu0 %v1301
      %1459 = vmatprep.subr.bf16.mxu0 0
      %1460 = vmatpush1.bf16.msra.mxu0 %v1300
      %1461 = vmatprep.subr.bf16.mxu0 0
      %1462 = vmatpush1.bf16.msra.mxu0 %v1299
      %1463 = vmatprep.subr.bf16.mxu0 0
      %1464 = vmatpush1.bf16.msra.mxu0 %v1298
      %1465 = vmatprep.subr.bf16.mxu0 0
      %1466 = vmatpush1.bf16.msra.mxu0 %v1297
      %1467 = vmatprep.subr.bf16.mxu0 0
      %1468 = vmatpush1.bf16.msra.mxu0 %v1296
      %1469 = vmatprep.subr.bf16.mxu0 0
      %1470 = vmatpush2.bf16.msra.mxu0 %v1311
      %1471 = vmatprep.subr.bf16.mxu0 0
      %1472 = vmatpush2.bf16.msra.mxu0 %v1310
      %1473 = vmatprep.subr.bf16.mxu0 0
      %1474 = vmatpush2.bf16.msra.mxu0 %v1309
      %1475 = vmatprep.subr.bf16.mxu0 0
      %1476 = vmatpush2.bf16.msra.mxu0 %v1308
      %1477 = vmatprep.subr.bf16.mxu0 0
      %1478 = vmatpush2.bf16.msra.mxu0 %v1307
      %1479 = vmatprep.subr.bf16.mxu0 0
      %1480 = vmatpush2.bf16.msra.mxu0 %v1306
      %1481 = vmatprep.subr.bf16.mxu0 0
      %1482 = vmatpush2.bf16.msra.mxu0 %v1305
      %1483 = vmatprep.subr.bf16.mxu0 0
      %1484 = vmatpush2.bf16.msra.mxu0 %v1304
      %1485 = vmatprep.mubr.bf16.mxu0 %v873
      %1486 = vmatmul.mubr.bf16.gmra.mxu0 %v872
      %v1487 = vpop.f32.mrf.mxu0
      %v1488 = vadd.f32 %v518, %v1487
      %v1489 = vpop.f32.mrf.mxu0
      %v1490 = vpop.f32.mrf.mxu0
      %v1491 = vadd.f32 %v518, %v1490
      %v1492 = vpop.f32.mrf.mxu0
      %1493 = vmatprep.mubr.bf16.mxu0 %v880
      %1494 = vmatmul.mubr.bf16.gmra.mxu0 %v879
      %v1495 = vpop.f32.mrf.mxu0
      %v1496 = vadd.f32 %v518, %v1495
      %v1497 = vpop.f32.mrf.mxu0
      %v1498 = vpop.f32.mrf.mxu0
      %v1499 = vadd.f32 %v518, %v1498
      %v1500 = vpop.f32.mrf.mxu0
      %1501 = vmatprep.mubr.bf16.mxu0 %v887
      %1502 = vmatmul.mubr.bf16.gmra.mxu0 %v886
      %v1503 = vpop.f32.mrf.mxu0
      %v1504 = vadd.f32 %v518, %v1503
      %v1505 = vpop.f32.mrf.mxu0
      %v1506 = vpop.f32.mrf.mxu0
      %v1507 = vadd.f32 %v518, %v1506
      %v1508 = vpop.f32.mrf.mxu0
      %1509 = vmatprep.mubr.bf16.mxu0 %v894
      %1510 = vmatmul.mubr.bf16.gmra.mxu0 %v893
      %v1511 = vpop.f32.mrf.mxu0
      %v1512 = vadd.f32 %v518, %v1511
      %v1513 = vpop.f32.mrf.mxu0
      %v1514 = vpop.f32.mrf.mxu0
      %v1515 = vadd.f32 %v518, %v1514
      %v1516 = vpop.f32.mrf.mxu0
      %1517 = vmatprep.mubr.bf16.mxu0 %v901
      %1518 = vmatmul.mubr.bf16.gmra.mxu0 %v900
      %v1519 = vpop.f32.mrf.mxu0
      %v1520 = vadd.f32 %v518, %v1519
      %v1521 = vpop.f32.mrf.mxu0
      %v1522 = vpop.f32.mrf.mxu0
      %v1523 = vadd.f32 %v518, %v1522
      %v1524 = vpop.f32.mrf.mxu0
      %1525 = vmatprep.mubr.bf16.mxu0 %v908
      %1526 = vmatmul.mubr.bf16.gmra.mxu0 %v907
      %v1527 = vpop.f32.mrf.mxu0
      %v1528 = vadd.f32 %v518, %v1527
      %v1529 = vpop.f32.mrf.mxu0
      %v1530 = vpop.f32.mrf.mxu0
      %v1531 = vadd.f32 %v518, %v1530
      %v1532 = vpop.f32.mrf.mxu0
      %1533 = vmatprep.mubr.bf16.mxu0 %v915
      %1534 = vmatmul.mubr.bf16.gmra.mxu0 %v914
      %v1535 = vpop.f32.mrf.mxu0
      %v1536 = vadd.f32 %v518, %v1535
      %v1537 = vpop.f32.mrf.mxu0
      %v1538 = vpop.f32.mrf.mxu0
      %v1539 = vadd.f32 %v518, %v1538
      %v1540 = vpop.f32.mrf.mxu0
      %1541 = vmatprep.mubr.bf16.mxu0 %v922
      %1542 = vmatmul.mubr.bf16.gmra.mxu0 %v921
      %v1543 = vpop.f32.mrf.mxu0
      %v1544 = vadd.f32 %v518, %v1543
      %v1545 = vpop.f32.mrf.mxu0
      %v1546 = vpop.f32.mrf.mxu0
      %v1547 = vadd.f32 %v518, %v1546
      %v1548 = vpop.f32.mrf.mxu0
      %1549 = vmatprep.mubr.bf16.mxu0 %v929
      %1550 = vmatmul.mubr.bf16.gmra.mxu0 %v928
      %v1551 = vpop.f32.mrf.mxu0
      %v1552 = vadd.f32 %v518, %v1551
      %v1553 = vpop.f32.mrf.mxu0
      %v1554 = vpop.f32.mrf.mxu0
      %v1555 = vadd.f32 %v518, %v1554
      %v1556 = vpop.f32.mrf.mxu0
      %1557 = vmatprep.mubr.bf16.mxu0 %v936
      %1558 = vmatmul.mubr.bf16.gmra.mxu0 %v935
      %v1559 = vpop.f32.mrf.mxu0
      %v1560 = vadd.f32 %v518, %v1559
      %v1561 = vpop.f32.mrf.mxu0
      %v1562 = vpop.f32.mrf.mxu0
      %v1563 = vadd.f32 %v518, %v1562
      %v1564 = vpop.f32.mrf.mxu0
      %1565 = vmatprep.mubr.bf16.mxu0 %v943
      %1566 = vmatmul.mubr.bf16.gmra.mxu0 %v942
      %v1567 = vpop.f32.mrf.mxu0
      %v1568 = vadd.f32 %v518, %v1567
      %v1569 = vpop.f32.mrf.mxu0
      %v1570 = vpop.f32.mrf.mxu0
      %v1571 = vadd.f32 %v518, %v1570
      %v1572 = vpop.f32.mrf.mxu0
      %1573 = vmatprep.mubr.bf16.mxu0 %v950
      %1574 = vmatmul.mubr.bf16.gmra.mxu0 %v949
      %v1575 = vpop.f32.mrf.mxu0
      %v1576 = vadd.f32 %v518, %v1575
      %v1577 = vpop.f32.mrf.mxu0
      %v1578 = vpop.f32.mrf.mxu0
      %v1579 = vadd.f32 %v518, %v1578
      %v1580 = vpop.f32.mrf.mxu0
      %1581 = vmatprep.mubr.bf16.mxu0 %v957
      %1582 = vmatmul.mubr.bf16.gmra.mxu0 %v956
      %v1583 = vpop.f32.mrf.mxu0
      %v1584 = vadd.f32 %v518, %v1583
      %v1585 = vpop.f32.mrf.mxu0
      %v1586 = vpop.f32.mrf.mxu0
      %v1587 = vadd.f32 %v518, %v1586
      %v1588 = vpop.f32.mrf.mxu0
      %1589 = vmatprep.mubr.bf16.mxu0 %v964
      %1590 = vmatmul.mubr.bf16.gmra.mxu0 %v963
      %v1591 = vpop.f32.mrf.mxu0
      %v1592 = vadd.f32 %v518, %v1591
      %v1593 = vpop.f32.mrf.mxu0
      %v1594 = vpop.f32.mrf.mxu0
      %v1595 = vadd.f32 %v518, %v1594
      %v1596 = vpop.f32.mrf.mxu0
      %1597 = vmatprep.mubr.bf16.mxu0 %v971
      %1598 = vmatmul.mubr.bf16.gmra.mxu0 %v970
      %v1599 = vpop.f32.mrf.mxu0
      %v1600 = vadd.f32 %v518, %v1599
      %v1601 = vpop.f32.mrf.mxu0
      %v1602 = vpop.f32.mrf.mxu0
      %v1603 = vadd.f32 %v518, %v1602
      %v1604 = vpop.f32.mrf.mxu0
      %1605 = vmatprep.mubr.bf16.mxu0 %v978
      %1606 = vmatmul.mubr.bf16.gmra.mxu0 %v977
      %v1607 = vpop.f32.mrf.mxu0
      %v1608 = vadd.f32 %v518, %v1607
      %v1609 = vpop.f32.mrf.mxu0
      %v1610 = vpop.f32.mrf.mxu0
      %v1611 = vadd.f32 %v518, %v1610
      %v1612 = vpop.f32.mrf.mxu0
      %1613 = vdwg.mxu0
      %1614 = vmatprep.subr.bf16.mxu0 0
      %1615 = vmatpush1.bf16.msra.mxu0 %v1319
      %1616 = vmatprep.subr.bf16.mxu0 0
      %1617 = vmatpush1.bf16.msra.mxu0 %v1318
      %1618 = vmatprep.subr.bf16.mxu0 0
      %1619 = vmatpush1.bf16.msra.mxu0 %v1317
      %1620 = vmatprep.subr.bf16.mxu0 0
      %1621 = vmatpush1.bf16.msra.mxu0 %v1316
      %1622 = vmatprep.subr.bf16.mxu0 0
      %1623 = vmatpush1.bf16.msra.mxu0 %v1315
      %1624 = vmatprep.subr.bf16.mxu0 0
      %1625 = vmatpush1.bf16.msra.mxu0 %v1314
      %1626 = vmatprep.subr.bf16.mxu0 0
      %1627 = vmatpush1.bf16.msra.mxu0 %v1313
      %1628 = vmatprep.subr.bf16.mxu0 0
      %1629 = vmatpush1.bf16.msra.mxu0 %v1312
      %1630 = vmatprep.subr.bf16.mxu0 0
      %1631 = vmatpush2.bf16.msra.mxu0 %v1327
      %1632 = vmatprep.subr.bf16.mxu0 0
      %1633 = vmatpush2.bf16.msra.mxu0 %v1326
      %1634 = vmatprep.subr.bf16.mxu0 0
      %1635 = vmatpush2.bf16.msra.mxu0 %v1325
      %1636 = vmatprep.subr.bf16.mxu0 0
      %1637 = vmatpush2.bf16.msra.mxu0 %v1324
      %1638 = vmatprep.subr.bf16.mxu0 0
      %1639 = vmatpush2.bf16.msra.mxu0 %v1323
      %1640 = vmatprep.subr.bf16.mxu0 0
      %1641 = vmatpush2.bf16.msra.mxu0 %v1322
      %1642 = vmatprep.subr.bf16.mxu0 0
      %1643 = vmatpush2.bf16.msra.mxu0 %v1321
      %1644 = vmatprep.subr.bf16.mxu0 0
      %1645 = vmatpush2.bf16.msra.mxu0 %v1320
      %1646 = vmatprep.mubr.bf16.mxu0 %v875
      %1647 = vmatmul.mubr.bf16.gmra.mxu0 %v874
      %v1648 = vpop.f32.mrf.mxu0
      %v1649 = vadd.f32 %v1488, %v1648
      %v1650 = vpop.f32.mrf.mxu0
      %v1651 = vpop.f32.mrf.mxu0
      %v1652 = vadd.f32 %v1491, %v1651
      %v1653 = vpop.f32.mrf.mxu0
      %1654 = vmatprep.mubr.bf16.mxu0 %v882
      %1655 = vmatmul.mubr.bf16.gmra.mxu0 %v881
      %v1656 = vpop.f32.mrf.mxu0
      %v1657 = vadd.f32 %v1496, %v1656
      %v1658 = vpop.f32.mrf.mxu0
      %v1659 = vpop.f32.mrf.mxu0
      %v1660 = vadd.f32 %v1499, %v1659
      %v1661 = vpop.f32.mrf.mxu0
      %1662 = vmatprep.mubr.bf16.mxu0 %v889
      %1663 = vmatmul.mubr.bf16.gmra.mxu0 %v888
      %v1664 = vpop.f32.mrf.mxu0
      %v1665 = vadd.f32 %v1504, %v1664
      %v1666 = vpop.f32.mrf.mxu0
      %v1667 = vpop.f32.mrf.mxu0
      %v1668 = vadd.f32 %v1507, %v1667
      %v1669 = vpop.f32.mrf.mxu0
      %1670 = vmatprep.mubr.bf16.mxu0 %v896
      %1671 = vmatmul.mubr.bf16.gmra.mxu0 %v895
      %v1672 = vpop.f32.mrf.mxu0
      %v1673 = vadd.f32 %v1512, %v1672
      %v1674 = vpop.f32.mrf.mxu0
      %v1675 = vpop.f32.mrf.mxu0
      %v1676 = vadd.f32 %v1515, %v1675
      %v1677 = vpop.f32.mrf.mxu0
      %1678 = vmatprep.mubr.bf16.mxu0 %v903
      %1679 = vmatmul.mubr.bf16.gmra.mxu0 %v902
      %v1680 = vpop.f32.mrf.mxu0
      %v1681 = vadd.f32 %v1520, %v1680
      %v1682 = vpop.f32.mrf.mxu0
      %v1683 = vpop.f32.mrf.mxu0
      %v1684 = vadd.f32 %v1523, %v1683
      %v1685 = vpop.f32.mrf.mxu0
      %1686 = vmatprep.mubr.bf16.mxu0 %v910
      %1687 = vmatmul.mubr.bf16.gmra.mxu0 %v909
      %v1688 = vpop.f32.mrf.mxu0
      %v1689 = vadd.f32 %v1528, %v1688
      %v1690 = vpop.f32.mrf.mxu0
      %v1691 = vpop.f32.mrf.mxu0
      %v1692 = vadd.f32 %v1531, %v1691
      %v1693 = vpop.f32.mrf.mxu0
      %1694 = vmatprep.mubr.bf16.mxu0 %v917
      %1695 = vmatmul.mubr.bf16.gmra.mxu0 %v916
      %v1696 = vpop.f32.mrf.mxu0
      %v1697 = vadd.f32 %v1536, %v1696
      %v1698 = vpop.f32.mrf.mxu0
      %v1699 = vpop.f32.mrf.mxu0
      %v1700 = vadd.f32 %v1539, %v1699
      %v1701 = vpop.f32.mrf.mxu0
      %1702 = vmatprep.mubr.bf16.mxu0 %v924
      %1703 = vmatmul.mubr.bf16.gmra.mxu0 %v923
      %v1704 = vpop.f32.mrf.mxu0
      %v1705 = vadd.f32 %v1544, %v1704
      %v1706 = vpop.f32.mrf.mxu0
      %v1707 = vpop.f32.mrf.mxu0
      %v1708 = vadd.f32 %v1547, %v1707
      %v1709 = vpop.f32.mrf.mxu0
      %1710 = vmatprep.mubr.bf16.mxu0 %v931
      %1711 = vmatmul.mubr.bf16.gmra.mxu0 %v930
      %v1712 = vpop.f32.mrf.mxu0
      %v1713 = vadd.f32 %v1552, %v1712
      %v1714 = vpop.f32.mrf.mxu0
      %v1715 = vpop.f32.mrf.mxu0
      %v1716 = vadd.f32 %v1555, %v1715
      %v1717 = vpop.f32.mrf.mxu0
      %1718 = vmatprep.mubr.bf16.mxu0 %v938
      %1719 = vmatmul.mubr.bf16.gmra.mxu0 %v937
      %v1720 = vpop.f32.mrf.mxu0
      %v1721 = vadd.f32 %v1560, %v1720
      %v1722 = vpop.f32.mrf.mxu0
      %v1723 = vpop.f32.mrf.mxu0
      %v1724 = vadd.f32 %v1563, %v1723
      %v1725 = vpop.f32.mrf.mxu0
      %1726 = vmatprep.mubr.bf16.mxu0 %v945
      %1727 = vmatmul.mubr.bf16.gmra.mxu0 %v944
      %v1728 = vpop.f32.mrf.mxu0
      %v1729 = vadd.f32 %v1568, %v1728
      %v1730 = vpop.f32.mrf.mxu0
      %v1731 = vpop.f32.mrf.mxu0
      %v1732 = vadd.f32 %v1571, %v1731
      %v1733 = vpop.f32.mrf.mxu0
      %1734 = vmatprep.mubr.bf16.mxu0 %v952
      %1735 = vmatmul.mubr.bf16.gmra.mxu0 %v951
      %v1736 = vpop.f32.mrf.mxu0
      %v1737 = vadd.f32 %v1576, %v1736
      %v1738 = vpop.f32.mrf.mxu0
      %v1739 = vpop.f32.mrf.mxu0
      %v1740 = vadd.f32 %v1579, %v1739
      %v1741 = vpop.f32.mrf.mxu0
      %1742 = vmatprep.mubr.bf16.mxu0 %v959
      %1743 = vmatmul.mubr.bf16.gmra.mxu0 %v958
      %v1744 = vpop.f32.mrf.mxu0
      %v1745 = vadd.f32 %v1584, %v1744
      %v1746 = vpop.f32.mrf.mxu0
      %v1747 = vpop.f32.mrf.mxu0
      %v1748 = vadd.f32 %v1587, %v1747
      %v1749 = vpop.f32.mrf.mxu0
      %1750 = vmatprep.mubr.bf16.mxu0 %v966
      %1751 = vmatmul.mubr.bf16.gmra.mxu0 %v965
      %v1752 = vpop.f32.mrf.mxu0
      %v1753 = vadd.f32 %v1592, %v1752
      %v1754 = vpop.f32.mrf.mxu0
      %v1755 = vpop.f32.mrf.mxu0
      %v1756 = vadd.f32 %v1595, %v1755
      %v1757 = vpop.f32.mrf.mxu0
      %1758 = vmatprep.mubr.bf16.mxu0 %v973
      %1759 = vmatmul.mubr.bf16.gmra.mxu0 %v972
      %v1760 = vpop.f32.mrf.mxu0
      %v1761 = vadd.f32 %v1600, %v1760
      %v1762 = vpop.f32.mrf.mxu0
      %v1763 = vpop.f32.mrf.mxu0
      %v1764 = vadd.f32 %v1603, %v1763
      %v1765 = vpop.f32.mrf.mxu0
      %1766 = vmatprep.mubr.bf16.mxu0 %v980
      %1767 = vmatmul.mubr.bf16.gmra.mxu0 %v979
      %v1768 = vpop.f32.mrf.mxu0
      %v1769 = vadd.f32 %v1608, %v1768
      %v1770 = vpop.f32.mrf.mxu0
      %v1771 = vpop.f32.mrf.mxu0
      %v1772 = vadd.f32 %v1611, %v1771
      %v1773 = vpop.f32.mrf.mxu0
      %1774 = vdwg.mxu0
      %1775 = vmatprep.subr.bf16.mxu0 0
      %1776 = vmatpush1.bf16.msra.mxu0 %v1335
      %1777 = vmatprep.subr.bf16.mxu0 0
      %1778 = vmatpush1.bf16.msra.mxu0 %v1334
      %1779 = vmatprep.subr.bf16.mxu0 0
      %1780 = vmatpush1.bf16.msra.mxu0 %v1333
      %1781 = vmatprep.subr.bf16.mxu0 0
      %1782 = vmatpush1.bf16.msra.mxu0 %v1332
      %1783 = vmatprep.subr.bf16.mxu0 0
      %1784 = vmatpush1.bf16.msra.mxu0 %v1331
      %1785 = vmatprep.subr.bf16.mxu0 0
      %1786 = vmatpush1.bf16.msra.mxu0 %v1330
      %1787 = vmatprep.subr.bf16.mxu0 0
      %1788 = vmatpush1.bf16.msra.mxu0 %v1329
      %1789 = vmatprep.subr.bf16.mxu0 0
      %1790 = vmatpush1.bf16.msra.mxu0 %v1328
      %1791 = vmatprep.subr.bf16.mxu0 0
      %1792 = vmatpush2.bf16.msra.mxu0 %v1343
      %1793 = vmatprep.subr.bf16.mxu0 0
      %1794 = vmatpush2.bf16.msra.mxu0 %v1342
      %1795 = vmatprep.subr.bf16.mxu0 0
      %1796 = vmatpush2.bf16.msra.mxu0 %v1341
      %1797 = vmatprep.subr.bf16.mxu0 0
      %1798 = vmatpush2.bf16.msra.mxu0 %v1340
      %1799 = vmatprep.subr.bf16.mxu0 0
      %1800 = vmatpush2.bf16.msra.mxu0 %v1339
      %1801 = vmatprep.subr.bf16.mxu0 0
      %1802 = vmatpush2.bf16.msra.mxu0 %v1338
      %1803 = vmatprep.subr.bf16.mxu0 0
      %1804 = vmatpush2.bf16.msra.mxu0 %v1337
      %1805 = vmatprep.subr.bf16.mxu0 0
      %1806 = vmatpush2.bf16.msra.mxu0 %v1336
      %1807 = vmatprep.mubr.bf16.mxu0 %v877
      %1808 = vmatmul.mubr.bf16.gmra.mxu0 %v876
      %v1809 = vpop.f32.mrf.mxu0
      %v1810 = vadd.f32 %v1649, %v1809
      %v1811 = vpop.f32.mrf.mxu0
      %v1812 = vpop.f32.mrf.mxu0
      %v1813 = vadd.f32 %v1652, %v1812
      %v1814 = vpop.f32.mrf.mxu0
      %1815 = vmatprep.mubr.bf16.mxu0 %v884
      %1816 = vmatmul.mubr.bf16.gmra.mxu0 %v883
      %v1817 = vpop.f32.mrf.mxu0
      %v1818 = vadd.f32 %v1657, %v1817
      %v1819 = vpop.f32.mrf.mxu0
      %v1820 = vpop.f32.mrf.mxu0
      %v1821 = vadd.f32 %v1660, %v1820
      %v1822 = vpop.f32.mrf.mxu0
      %1823 = vmatprep.mubr.bf16.mxu0 %v891
      %1824 = vmatmul.mubr.bf16.gmra.mxu0 %v890
      %v1825 = vpop.f32.mrf.mxu0
      %v1826 = vadd.f32 %v1665, %v1825
      %v1827 = vpop.f32.mrf.mxu0
      %v1828 = vpop.f32.mrf.mxu0
      %v1829 = vadd.f32 %v1668, %v1828
      %v1830 = vpop.f32.mrf.mxu0
      %1831 = vmatprep.mubr.bf16.mxu0 %v898
      %1832 = vmatmul.mubr.bf16.gmra.mxu0 %v897
      %v1833 = vpop.f32.mrf.mxu0
      %v1834 = vadd.f32 %v1673, %v1833
      %v1835 = vpop.f32.mrf.mxu0
      %v1836 = vpop.f32.mrf.mxu0
      %v1837 = vadd.f32 %v1676, %v1836
      %v1838 = vpop.f32.mrf.mxu0
      %1839 = vmatprep.mubr.bf16.mxu0 %v905
      %1840 = vmatmul.mubr.bf16.gmra.mxu0 %v904
      %v1841 = vpop.f32.mrf.mxu0
      %v1842 = vadd.f32 %v1681, %v1841
      %v1843 = vpop.f32.mrf.mxu0
      %v1844 = vpop.f32.mrf.mxu0
      %v1845 = vadd.f32 %v1684, %v1844
      %v1846 = vpop.f32.mrf.mxu0
      %1847 = vmatprep.mubr.bf16.mxu0 %v912
      %1848 = vmatmul.mubr.bf16.gmra.mxu0 %v911
      %v1849 = vpop.f32.mrf.mxu0
      %v1850 = vadd.f32 %v1689, %v1849
      %v1851 = vpop.f32.mrf.mxu0
      %v1852 = vpop.f32.mrf.mxu0
      %v1853 = vadd.f32 %v1692, %v1852
      %v1854 = vpop.f32.mrf.mxu0
      %1855 = vmatprep.mubr.bf16.mxu0 %v919
      %1856 = vmatmul.mubr.bf16.gmra.mxu0 %v918
      %v1857 = vpop.f32.mrf.mxu0
      %v1858 = vadd.f32 %v1697, %v1857
      %v1859 = vpop.f32.mrf.mxu0
      %v1860 = vpop.f32.mrf.mxu0
      %v1861 = vadd.f32 %v1700, %v1860
      %v1862 = vpop.f32.mrf.mxu0
      %1863 = vmatprep.mubr.bf16.mxu0 %v926
      %1864 = vmatmul.mubr.bf16.gmra.mxu0 %v925
      %v1865 = vpop.f32.mrf.mxu0
      %v1866 = vadd.f32 %v1705, %v1865
      %v1867 = vpop.f32.mrf.mxu0
      %v1868 = vpop.f32.mrf.mxu0
      %v1869 = vadd.f32 %v1708, %v1868
      %v1870 = vpop.f32.mrf.mxu0
      %1871 = vmatprep.mubr.bf16.mxu0 %v933
      %1872 = vmatmul.mubr.bf16.gmra.mxu0 %v932
      %v1873 = vpop.f32.mrf.mxu0
      %v1874 = vadd.f32 %v1713, %v1873
      %v1875 = vpop.f32.mrf.mxu0
      %v1876 = vpop.f32.mrf.mxu0
      %v1877 = vadd.f32 %v1716, %v1876
      %v1878 = vpop.f32.mrf.mxu0
      %1879 = vmatprep.mubr.bf16.mxu0 %v940
      %1880 = vmatmul.mubr.bf16.gmra.mxu0 %v939
      %v1881 = vpop.f32.mrf.mxu0
      %v1882 = vadd.f32 %v1721, %v1881
      %v1883 = vpop.f32.mrf.mxu0
      %v1884 = vpop.f32.mrf.mxu0
      %v1885 = vadd.f32 %v1724, %v1884
      %v1886 = vpop.f32.mrf.mxu0
      %1887 = vmatprep.mubr.bf16.mxu0 %v947
      %1888 = vmatmul.mubr.bf16.gmra.mxu0 %v946
      %v1889 = vpop.f32.mrf.mxu0
      %v1890 = vadd.f32 %v1729, %v1889
      %v1891 = vpop.f32.mrf.mxu0
      %v1892 = vpop.f32.mrf.mxu0
      %v1893 = vadd.f32 %v1732, %v1892
      %v1894 = vpop.f32.mrf.mxu0
      %1895 = vmatprep.mubr.bf16.mxu0 %v954
      %1896 = vmatmul.mubr.bf16.gmra.mxu0 %v953
      %v1897 = vpop.f32.mrf.mxu0
      %v1898 = vadd.f32 %v1737, %v1897
      %v1899 = vpop.f32.mrf.mxu0
      %v1900 = vpop.f32.mrf.mxu0
      %v1901 = vadd.f32 %v1740, %v1900
      %v1902 = vpop.f32.mrf.mxu0
      %1903 = vmatprep.mubr.bf16.mxu0 %v961
      %1904 = vmatmul.mubr.bf16.gmra.mxu0 %v960
      %v1905 = vpop.f32.mrf.mxu0
      %v1906 = vadd.f32 %v1745, %v1905
      %v1907 = vpop.f32.mrf.mxu0
      %v1908 = vpop.f32.mrf.mxu0
      %v1909 = vadd.f32 %v1748, %v1908
      %v1910 = vpop.f32.mrf.mxu0
      %1911 = vmatprep.mubr.bf16.mxu0 %v968
      %1912 = vmatmul.mubr.bf16.gmra.mxu0 %v967
      %v1913 = vpop.f32.mrf.mxu0
      %v1914 = vadd.f32 %v1753, %v1913
      %v1915 = vpop.f32.mrf.mxu0
      %v1916 = vpop.f32.mrf.mxu0
      %v1917 = vadd.f32 %v1756, %v1916
      %v1918 = vpop.f32.mrf.mxu0
      %1919 = vmatprep.mubr.bf16.mxu0 %v975
      %1920 = vmatmul.mubr.bf16.gmra.mxu0 %v974
      %v1921 = vpop.f32.mrf.mxu0
      %v1922 = vadd.f32 %v1761, %v1921
      %v1923 = vpop.f32.mrf.mxu0
      %v1924 = vpop.f32.mrf.mxu0
      %v1925 = vadd.f32 %v1764, %v1924
      %v1926 = vpop.f32.mrf.mxu0
      %1927 = vmatprep.mubr.bf16.mxu0 %v982
      %1928 = vmatmul.mubr.bf16.gmra.mxu0 %v981
      %v1929 = vpop.f32.mrf.mxu0
      %v1930 = vadd.f32 %v1769, %v1929
      %v1931 = vpop.f32.mrf.mxu0
      %v1932 = vpop.f32.mrf.mxu0
      %v1933 = vadd.f32 %v1772, %v1932
      %v1934 = vpop.f32.mrf.mxu0
      %1935 = vdwg.mxu0
      %1936 = vmatprep.subr.bf16.mxu0 0
      %1937 = vmatpush1.bf16.msra.mxu0 0
      %1938 = vmatprep.subr.bf16.mxu0 0
      %1939 = vmatpush1.bf16.msra.mxu0 0
      %1940 = vmatprep.subr.bf16.mxu0 0
      %1941 = vmatpush1.bf16.msra.mxu0 %v1349
      %1942 = vmatprep.subr.bf16.mxu0 0
      %1943 = vmatpush1.bf16.msra.mxu0 %v1348
      %1944 = vmatprep.subr.bf16.mxu0 0
      %1945 = vmatpush1.bf16.msra.mxu0 %v1347
      %1946 = vmatprep.subr.bf16.mxu0 0
      %1947 = vmatpush1.bf16.msra.mxu0 %v1346
      %1948 = vmatprep.subr.bf16.mxu0 0
      %1949 = vmatpush1.bf16.msra.mxu0 %v1345
      %1950 = vmatprep.subr.bf16.mxu0 0
      %1951 = vmatpush1.bf16.msra.mxu0 %v1344
      %1952 = vmatprep.subr.bf16.mxu0 0
      %1953 = vmatpush2.bf16.msra.mxu0 0
      %1954 = vmatprep.subr.bf16.mxu0 0
      %1955 = vmatpush2.bf16.msra.mxu0 0
      %1956 = vmatprep.subr.bf16.mxu0 0
      %1957 = vmatpush2.bf16.msra.mxu0 0
      %1958 = vmatprep.subr.bf16.mxu0 0
      %1959 = vmatpush2.bf16.msra.mxu0 0
      %1960 = vmatprep.subr.bf16.mxu0 0
      %1961 = vmatpush2.bf16.msra.mxu0 0
      %1962 = vmatprep.subr.bf16.mxu0 0
      %1963 = vmatpush2.bf16.msra.mxu0 0
      %1964 = vmatprep.subr.bf16.mxu0 0
      %1965 = vmatpush2.bf16.msra.mxu0 0
      %1966 = vmatprep.subr.bf16.mxu0 0
      %1967 = vmatpush2.bf16.msra.mxu0 0
      %1968 = vmatprep.mubr.bf16.mxu0 0
      %1969 = vmatmul.mubr.bf16.gmra.mxu0 %v1406
      %v1970 = vpop.f32.mrf.mxu0
      %v1971 = vadd.f32 %v1810, %v1970
      %v1972 = vpop.f32.mrf.mxu0
      %v1973 = vpop.f32.mrf.mxu0
      %v1974 = vadd.f32 %v1813, %v1973
      %v1975 = vpop.f32.mrf.mxu0
      %1976 = vmatprep.mubr.bf16.mxu0 0
      %1977 = vmatmul.mubr.bf16.gmra.mxu0 %v1409
      %v1978 = vpop.f32.mrf.mxu0
      %v1979 = vadd.f32 %v1818, %v1978
      %v1980 = vpop.f32.mrf.mxu0
      %v1981 = vpop.f32.mrf.mxu0
      %v1982 = vadd.f32 %v1821, %v1981
      %v1983 = vpop.f32.mrf.mxu0
      %1984 = vmatprep.mubr.bf16.mxu0 0
      %1985 = vmatmul.mubr.bf16.gmra.mxu0 %v1412
      %v1986 = vpop.f32.mrf.mxu0
      %v1987 = vadd.f32 %v1826, %v1986
      %v1988 = vpop.f32.mrf.mxu0
      %v1989 = vpop.f32.mrf.mxu0
      %v1990 = vadd.f32 %v1829, %v1989
      %v1991 = vpop.f32.mrf.mxu0
      %1992 = vmatprep.mubr.bf16.mxu0 0
      %1993 = vmatmul.mubr.bf16.gmra.mxu0 %v1415
      %v1994 = vpop.f32.mrf.mxu0
      %v1995 = vadd.f32 %v1834, %v1994
      %v1996 = vpop.f32.mrf.mxu0
      %v1997 = vpop.f32.mrf.mxu0
      %v1998 = vadd.f32 %v1837, %v1997
      %v1999 = vpop.f32.mrf.mxu0
      %2000 = vmatprep.mubr.bf16.mxu0 0
      %2001 = vmatmul.mubr.bf16.gmra.mxu0 %v1418
      %v2002 = vpop.f32.mrf.mxu0
      %v2003 = vadd.f32 %v1842, %v2002
      %v2004 = vpop.f32.mrf.mxu0
      %v2005 = vpop.f32.mrf.mxu0
      %v2006 = vadd.f32 %v1845, %v2005
      %v2007 = vpop.f32.mrf.mxu0
      %2008 = vmatprep.mubr.bf16.mxu0 0
      %2009 = vmatmul.mubr.bf16.gmra.mxu0 %v1421
      %v2010 = vpop.f32.mrf.mxu0
      %v2011 = vadd.f32 %v1850, %v2010
      %v2012 = vpop.f32.mrf.mxu0
      %v2013 = vpop.f32.mrf.mxu0
      %v2014 = vadd.f32 %v1853, %v2013
      %v2015 = vpop.f32.mrf.mxu0
      %2016 = vmatprep.mubr.bf16.mxu0 0
      %2017 = vmatmul.mubr.bf16.gmra.mxu0 %v1424
      %v2018 = vpop.f32.mrf.mxu0
      %v2019 = vadd.f32 %v1858, %v2018
      %v2020 = vpop.f32.mrf.mxu0
      %v2021 = vpop.f32.mrf.mxu0
      %v2022 = vadd.f32 %v1861, %v2021
      %v2023 = vpop.f32.mrf.mxu0
      %2024 = vmatprep.mubr.bf16.mxu0 0
      %2025 = vmatmul.mubr.bf16.gmra.mxu0 %v1427
      %v2026 = vpop.f32.mrf.mxu0
      %v2027 = vadd.f32 %v1866, %v2026
      %v2028 = vpop.f32.mrf.mxu0
      %v2029 = vpop.f32.mrf.mxu0
      %v2030 = vadd.f32 %v1869, %v2029
      %v2031 = vpop.f32.mrf.mxu0
      %2032 = vmatprep.mubr.bf16.mxu0 0
      %2033 = vmatmul.mubr.bf16.gmra.mxu0 %v1430
      %v2034 = vpop.f32.mrf.mxu0
      %v2035 = vadd.f32 %v1874, %v2034
      %v2036 = vpop.f32.mrf.mxu0
      %v2037 = vpop.f32.mrf.mxu0
      %v2038 = vadd.f32 %v1877, %v2037
      %v2039 = vpop.f32.mrf.mxu0
      %2040 = vmatprep.mubr.bf16.mxu0 0
      %2041 = vmatmul.mubr.bf16.gmra.mxu0 %v1433
      %v2042 = vpop.f32.mrf.mxu0
      %v2043 = vadd.f32 %v1882, %v2042
      %v2044 = vpop.f32.mrf.mxu0
      %v2045 = vpop.f32.mrf.mxu0
      %v2046 = vadd.f32 %v1885, %v2045
      %v2047 = vpop.f32.mrf.mxu0
      %2048 = vmatprep.mubr.bf16.mxu0 0
      %2049 = vmatmul.mubr.bf16.gmra.mxu0 %v1436
      %v2050 = vpop.f32.mrf.mxu0
      %v2051 = vadd.f32 %v1890, %v2050
      %v2052 = vpop.f32.mrf.mxu0
      %v2053 = vpop.f32.mrf.mxu0
      %v2054 = vadd.f32 %v1893, %v2053
      %v2055 = vpop.f32.mrf.mxu0
      %2056 = vmatprep.mubr.bf16.mxu0 0
      %2057 = vmatmul.mubr.bf16.gmra.mxu0 %v1439
      %v2058 = vpop.f32.mrf.mxu0
      %v2059 = vadd.f32 %v1898, %v2058
      %v2060 = vpop.f32.mrf.mxu0
      %v2061 = vpop.f32.mrf.mxu0
      %v2062 = vadd.f32 %v1901, %v2061
      %v2063 = vpop.f32.mrf.mxu0
      %2064 = vmatprep.mubr.bf16.mxu0 0
      %2065 = vmatmul.mubr.bf16.gmra.mxu0 %v1442
      %v2066 = vpop.f32.mrf.mxu0
      %v2067 = vadd.f32 %v1906, %v2066
      %v2068 = vpop.f32.mrf.mxu0
      %v2069 = vpop.f32.mrf.mxu0
      %v2070 = vadd.f32 %v1909, %v2069
      %v2071 = vpop.f32.mrf.mxu0
      %2072 = vmatprep.mubr.bf16.mxu0 0
      %2073 = vmatmul.mubr.bf16.gmra.mxu0 %v1445
      %v2074 = vpop.f32.mrf.mxu0
      %v2075 = vadd.f32 %v1914, %v2074
      %v2076 = vpop.f32.mrf.mxu0
      %v2077 = vpop.f32.mrf.mxu0
      %v2078 = vadd.f32 %v1917, %v2077
      %v2079 = vpop.f32.mrf.mxu0
      %2080 = vmatprep.mubr.bf16.mxu0 0
      %2081 = vmatmul.mubr.bf16.gmra.mxu0 %v1448
      %v2082 = vpop.f32.mrf.mxu0
      %v2083 = vadd.f32 %v1922, %v2082
      %v2084 = vpop.f32.mrf.mxu0
      %v2085 = vpop.f32.mrf.mxu0
      %v2086 = vadd.f32 %v1925, %v2085
      %v2087 = vpop.f32.mrf.mxu0
      %2088 = vmatprep.mubr.bf16.mxu0 0
      %2089 = vmatmul.mubr.bf16.gmra.mxu0 %v1451
      %v2090 = vpop.f32.mrf.mxu0
      %v2091 = vadd.f32 %v1930, %v2090
      %v2092 = vpop.f32.mrf.mxu0
      %v2093 = vpop.f32.mrf.mxu0
      %v2094 = vadd.f32 %v1933, %v2093
      %v2095 = vpop.f32.mrf.mxu0
      %2096 = vdwg.mxu0
      %v2097 = vld [vmem:[%s264] sm:$0xf]
      %v2098 = vld [vmem:[%s264 + $0x4] sm:$0xf]
      %v2099 = vld [vmem:[%s264 + $0x8] sm:$0xf]
      %v2100 = vld [vmem:[%s264 + $0xc] sm:$0xf]
      %v2101 = vld [vmem:[%s264 + $0x10] sm:$0xf]
      %v2102 = vld [vmem:[%s264 + $0x14] sm:$0xf]
      %v2103 = vld [vmem:[%s264 + $0x18] sm:$0xf]
      %v2104 = vld [vmem:[%s264 + $0x1c] sm:$0xf]
      %v2105 = vld [vmem:[%s264 + $0x20] sm:$0xf]
      %v2106 = vld [vmem:[%s264 + $0x24] sm:$0xf]
      %v2107 = vld [vmem:[%s264 + $0x28] sm:$0xf]
      %v2108 = vld [vmem:[%s264 + $0x2c] sm:$0xf]
      %v2109 = vld [vmem:[%s264 + $0x30] sm:$0xf]
      %v2110 = vld [vmem:[%s264 + $0x34] sm:$0xf]
      %v2111 = vld [vmem:[%s264 + $0x38] sm:$0xf]
      %v2112 = vld [vmem:[%s264 + $0x3c] sm:$0xf]
      %v2113 = vld [vmem:[%s264 + $0x40] sm:$0xf]
      %v2114 = vld [vmem:[%s264 + $0x44] sm:$0xf]
      %v2115 = vld [vmem:[%s264 + $0x48] sm:$0xf]
      %v2116 = vld [vmem:[%s264 + $0x4c] sm:$0xf]
      %v2117 = vld [vmem:[%s264 + $0x50] sm:$0xf]
      %v2118 = vld [vmem:[%s264 + $0x54] sm:$0xf]
      %v2119 = vld [vmem:[%s264 + $0x58] sm:$0xf]
      %v2120 = vld [vmem:[%s264 + $0x5c] sm:$0xf]
      %v2121 = vld [vmem:[%s264 + $0x60] sm:$0xf]
      %v2122 = vld [vmem:[%s264 + $0x64] sm:$0xf]
      %v2123 = vld [vmem:[%s264 + $0x68] sm:$0xf]
      %v2124 = vld [vmem:[%s264 + $0x6c] sm:$0xf]
      %v2125 = vld [vmem:[%s264 + $0x70] sm:$0xf]
      %v2126 = vld [vmem:[%s264 + $0x74] sm:$0xf]
      %v2127 = vld [vmem:[%s264 + $0x78] sm:$0xf]
      %v2128 = vld [vmem:[%s264 + $0x7c] sm:$0xf]
      %v2129 = vunpack.c.l.bf16 %v2097
      %v2130 = vunpack.c.l.bf16 %v2098
      %v2131 = vunpack.c.l.bf16 %v2099
      %v2132 = vunpack.c.l.bf16 %v2100
      %v2133 = vunpack.c.l.bf16 %v2101
      %v2134 = vunpack.c.l.bf16 %v2102
      %v2135 = vunpack.c.l.bf16 %v2103
      %v2136 = vunpack.c.l.bf16 %v2104
      %v2137 = vunpack.c.l.bf16 %v2105
      %v2138 = vunpack.c.l.bf16 %v2106
      %v2139 = vunpack.c.l.bf16 %v2107
      %v2140 = vunpack.c.l.bf16 %v2108
      %v2141 = vunpack.c.l.bf16 %v2109
      %v2142 = vunpack.c.l.bf16 %v2110
      %v2143 = vunpack.c.l.bf16 %v2111
      %v2144 = vunpack.c.l.bf16 %v2112
      %v2145 = vunpack.c.l.bf16 %v2113
      %v2146 = vunpack.c.l.bf16 %v2114
      %v2147 = vunpack.c.l.bf16 %v2115
      %v2148 = vunpack.c.l.bf16 %v2116
      %v2149 = vunpack.c.l.bf16 %v2117
      %v2150 = vunpack.c.l.bf16 %v2118
      %v2151 = vunpack.c.l.bf16 %v2119
      %v2152 = vunpack.c.l.bf16 %v2120
      %v2153 = vunpack.c.l.bf16 %v2121
      %v2154 = vunpack.c.l.bf16 %v2122
      %v2155 = vunpack.c.l.bf16 %v2123
      %v2156 = vunpack.c.l.bf16 %v2124
      %v2157 = vunpack.c.l.bf16 %v2125
      %v2158 = vunpack.c.l.bf16 %v2126
      %v2159 = vunpack.c.l.bf16 %v2127
      %v2160 = vunpack.c.l.bf16 %v2128
      %v2161 = vadd.f32 %v1971, %v2129
      %v2162 = vadd.f32 %v1974, %v2130
      %v2163 = vadd.f32 %v1979, %v2131
      %v2164 = vadd.f32 %v1982, %v2132
      %v2165 = vadd.f32 %v1987, %v2133
      %v2166 = vadd.f32 %v1990, %v2134
      %v2167 = vadd.f32 %v1995, %v2135
      %v2168 = vadd.f32 %v1998, %v2136
      %v2169 = vadd.f32 %v2003, %v2137
      %v2170 = vadd.f32 %v2006, %v2138
      %v2171 = vadd.f32 %v2011, %v2139
      %v2172 = vadd.f32 %v2014, %v2140
      %v2173 = vadd.f32 %v2019, %v2141
      %v2174 = vadd.f32 %v2022, %v2142
      %v2175 = vadd.f32 %v2027, %v2143
      %v2176 = vadd.f32 %v2030, %v2144
      %v2177 = vadd.f32 %v2035, %v2145
      %v2178 = vadd.f32 %v2038, %v2146
      %v2179 = vadd.f32 %v2043, %v2147
      %v2180 = vadd.f32 %v2046, %v2148
      %v2181 = vadd.f32 %v2051, %v2149
      %v2182 = vadd.f32 %v2054, %v2150
      %v2183 = vadd.f32 %v2059, %v2151
      %v2184 = vadd.f32 %v2062, %v2152
      %v2185 = vadd.f32 %v2067, %v2153
      %v2186 = vadd.f32 %v2070, %v2154
      %v2187 = vadd.f32 %v2075, %v2155
      %v2188 = vadd.f32 %v2078, %v2156
      %v2189 = vadd.f32 %v2083, %v2157
      %v2190 = vadd.f32 %v2086, %v2158
      %v2191 = vadd.f32 %v2091, %v2159
      %v2192 = vadd.f32 %v2094, %v2160
      %v2193 = vpack.c.bf16 %v2162, %v2161
      %v2194 = vpack.c.bf16 %v2164, %v2163
      %v2195 = vpack.c.bf16 %v2166, %v2165
      %v2196 = vpack.c.bf16 %v2168, %v2167
      %v2197 = vpack.c.bf16 %v2170, %v2169
      %v2198 = vpack.c.bf16 %v2172, %v2171
      %v2199 = vpack.c.bf16 %v2174, %v2173
      %v2200 = vpack.c.bf16 %v2176, %v2175
      %v2201 = vpack.c.bf16 %v2178, %v2177
      %v2202 = vpack.c.bf16 %v2180, %v2179
      %v2203 = vpack.c.bf16 %v2182, %v2181
      %v2204 = vpack.c.bf16 %v2184, %v2183
      %v2205 = vpack.c.bf16 %v2186, %v2185
      %v2206 = vpack.c.bf16 %v2188, %v2187
      %v2207 = vpack.c.bf16 %v2190, %v2189
      %v2208 = vpack.c.bf16 %v2192, %v2191
      %v2225 = vunpack.c.l.b16 %v2193
      %v2226 = vunpack.c.h.b16 %v2193
      %v2227 = vunpack.c.l.b16 %v2194
      %v2228 = vunpack.c.h.b16 %v2194
      %v2229 = vunpack.c.l.b16 %v2195
      %v2230 = vunpack.c.h.b16 %v2195
      %v2231 = vunpack.c.l.b16 %v2196
      %v2232 = vunpack.c.h.b16 %v2196
      %v2233 = vunpack.c.l.b16 %v2197
      %v2234 = vunpack.c.h.b16 %v2197
      %v2235 = vunpack.c.l.b16 %v2198
      %v2236 = vunpack.c.h.b16 %v2198
      %v2237 = vunpack.c.l.b16 %v2199
      %v2238 = vunpack.c.h.b16 %v2199
      %v2239 = vunpack.c.l.b16 %v2200
      %v2240 = vunpack.c.h.b16 %v2200
      %v2241 = vunpack.c.l.b16 %v2201
      %v2242 = vunpack.c.h.b16 %v2201
      %v2243 = vunpack.c.l.b16 %v2202
      %v2244 = vunpack.c.h.b16 %v2202
      %v2245 = vunpack.c.l.b16 %v2203
      %v2246 = vunpack.c.h.b16 %v2203
      %v2247 = vunpack.c.l.b16 %v2204
      %v2248 = vunpack.c.h.b16 %v2204
      %v2249 = vunpack.c.l.b16 %v2205
      %v2250 = vunpack.c.h.b16 %v2205
      %v2251 = vunpack.c.l.b16 %v2206
      %v2252 = vunpack.c.h.b16 %v2206
      %v2253 = vunpack.c.l.b16 %v2207
      %v2254 = vunpack.c.h.b16 %v2207
      %v2255 = vunpack.c.l.b16 %v2208
      %v2256 = vunpack.c.h.b16 %v2208
      %v2257 = vpack.c.b16 %v2225, %v2225
      %v2258 = vpack.c.b16 %v2226, %v2226
      %v2259 = vpack.c.b16 %v2227, %v2227
      %v2260 = vpack.c.b16 %v2228, %v2228
      %v2261 = vpack.c.b16 %v2229, %v2229
      %v2262 = vpack.c.b16 %v2230, %v2230
      %v2263 = vpack.c.b16 %v2231, %v2231
      %v2264 = vpack.c.b16 %v2232, %v2232
      %v2265 = vpack.c.b16 %v2233, %v2233
      %v2266 = vpack.c.b16 %v2234, %v2234
      %v2267 = vpack.c.b16 %v2235, %v2235
      %v2268 = vpack.c.b16 %v2236, %v2236
      %v2269 = vpack.c.b16 %v2237, %v2237
      %v2270 = vpack.c.b16 %v2238, %v2238
      %v2271 = vpack.c.b16 %v2239, %v2239
      %v2272 = vpack.c.b16 %v2240, %v2240
      %v2273 = vpack.c.b16 %v2241, %v2241
      %v2274 = vpack.c.b16 %v2242, %v2242
      %v2275 = vpack.c.b16 %v2243, %v2243
      %v2276 = vpack.c.b16 %v2244, %v2244
      %v2277 = vpack.c.b16 %v2245, %v2245
      %v2278 = vpack.c.b16 %v2246, %v2246
      %v2279 = vpack.c.b16 %v2247, %v2247
      %v2280 = vpack.c.b16 %v2248, %v2248
      %v2281 = vpack.c.b16 %v2249, %v2249
      %v2282 = vpack.c.b16 %v2250, %v2250
      %v2283 = vpack.c.b16 %v2251, %v2251
      %v2284 = vpack.c.b16 %v2252, %v2252
      %v2285 = vpack.c.b16 %v2253, %v2253
      %v2286 = vpack.c.b16 %v2254, %v2254
      %v2287 = vpack.c.b16 %v2255, %v2255
      %v2288 = vpack.c.b16 %v2256, %v2256
      %vm2321 = vcmask 125952
      %2322 = vst.msk [vmem:[%s274] sm:$0xf] %vm2321, %v2257
      %2323 = vst.msk [vmem:[%s274 + $0x4] sm:$0xf] %vm2321, %v2258
      %2324 = vst.msk [vmem:[%s274 + $0x8] sm:$0xf] %vm2321, %v2259
      %2325 = vst.msk [vmem:[%s274 + $0xc] sm:$0xf] %vm2321, %v2260
      %2326 = vst.msk [vmem:[%s274 + $0x10] sm:$0xf] %vm2321, %v2261
      %2327 = vst.msk [vmem:[%s274 + $0x14] sm:$0xf] %vm2321, %v2262
      %2328 = vst.msk [vmem:[%s274 + $0x18] sm:$0xf] %vm2321, %v2263
      %2329 = vst.msk [vmem:[%s274 + $0x1c] sm:$0xf] %vm2321, %v2264
      %2330 = vst.msk [vmem:[%s274 + $0x20] sm:$0xf] %vm2321, %v2265
      %2331 = vst.msk [vmem:[%s274 + $0x24] sm:$0xf] %vm2321, %v2266
      %2332 = vst.msk [vmem:[%s274 + $0x28] sm:$0xf] %vm2321, %v2267
      %2333 = vst.msk [vmem:[%s274 + $0x2c] sm:$0xf] %vm2321, %v2268
      %2334 = vst.msk [vmem:[%s274 + $0x30] sm:$0xf] %vm2321, %v2269
      %2335 = vst.msk [vmem:[%s274 + $0x34] sm:$0xf] %vm2321, %v2270
      %2336 = vst.msk [vmem:[%s274 + $0x38] sm:$0xf] %vm2321, %v2271
      %2337 = vst.msk [vmem:[%s274 + $0x3c] sm:$0xf] %vm2321, %v2272
      %2338 = vst.msk [vmem:[%s274 + $0x40] sm:$0xf] %vm2321, %v2273
      %2339 = vst.msk [vmem:[%s274 + $0x44] sm:$0xf] %vm2321, %v2274
      %2340 = vst.msk [vmem:[%s274 + $0x48] sm:$0xf] %vm2321, %v2275
      %2341 = vst.msk [vmem:[%s274 + $0x4c] sm:$0xf] %vm2321, %v2276
      %2342 = vst.msk [vmem:[%s274 + $0x50] sm:$0xf] %vm2321, %v2277
      %2343 = vst.msk [vmem:[%s274 + $0x54] sm:$0xf] %vm2321, %v2278
      %2344 = vst.msk [vmem:[%s274 + $0x58] sm:$0xf] %vm2321, %v2279
      %2345 = vst.msk [vmem:[%s274 + $0x5c] sm:$0xf] %vm2321, %v2280
      %2346 = vst.msk [vmem:[%s274 + $0x60] sm:$0xf] %vm2321, %v2281
      %2347 = vst.msk [vmem:[%s274 + $0x64] sm:$0xf] %vm2321, %v2282
      %2348 = vst.msk [vmem:[%s274 + $0x68] sm:$0xf] %vm2321, %v2283
      %2349 = vst.msk [vmem:[%s274 + $0x6c] sm:$0xf] %vm2321, %v2284
      %2350 = vst.msk [vmem:[%s274 + $0x70] sm:$0xf] %vm2321, %v2285
      %2351 = vst.msk [vmem:[%s274 + $0x74] sm:$0xf] %vm2321, %v2286
      %2352 = vst.msk [vmem:[%s274 + $0x78] sm:$0xf] %vm2321, %v2287
      %2353 = vst.msk [vmem:[%s274 + $0x7c] sm:$0xf] %vm2321, %v2288
      %s2354 = smul.u32 32, %s20
      %p2355 = scmp.lt.s32.totalorder %s19, 1
      %s2356 = scalar_select %p2355, %s19, 1
      %p2357 = scmp.lt.s32.totalorder %s2354, 31
      %s2358 = scalar_select %p2357, %s2354, 31
      %s2359 = smul.addr %s2356, 32
      %s2360 = sadd.s32 %s2358, %s2359
      %s2361 = smul.addr %s2360, 4
      %s2362 = scalar_lea.vmem %s4, %s2361
      // Predicated region
      $region37: #{wdsrnet_forward.10} parent=35 // pred_check
        %p2363 = pneg %p145
      $region38: #{wdsrnet_forward.10} parent=35 // pred_check_branch
        %2365 = sbr.rel (%p2363) target = $region40
      $region39: #{wdsrnet_forward.10} parent=35 // pred_region
        %s2366 = smul.u32 32, %s20
      $region40: #{wdsrnet_forward.10} parent=35 // pred_fallthru
        _
    $region36: #{wdsrnet_forward.10} parent=5 // pred_fallthru
      _
    %p2367 = scmp.le.s32.totalorder 2, %s10
    // Predicated region
    $region41: #{wdsrnet_forward.10} parent=5 // pred_check
      %p2368 = pneg %p2367
    $region42: #{wdsrnet_forward.10} parent=5 // pred_check_branch
      %2370 = sbr.rel (%p2368) target = $region44
    $region43: #{wdsrnet_forward.10} parent=5 // pred_region
      %s2371 = ssub.s32 %s10, 2
      // Predicated region
      $region45: #{wdsrnet_forward.10} parent=43 // pred_check
        %p2372 = pneg %p151
      $region46: #{wdsrnet_forward.10} parent=43 // pred_check_branch
        %2374 = sbr.rel (%p2372) target = $region48
      $region47: #{wdsrnet_forward.10} parent=43 // pred_region
        %s2375 = smul.u32 32, %s22
        %p2376 = scmp.lt.s32.totalorder %s21, 1
        %s2377 = scalar_select %p2376, %s21, 1
        %p2378 = scmp.lt.s32.totalorder %s2375, 31
        %s2379 = scalar_select %p2378, %s2375, 31
        %s2380 = smul.addr %s2377, 32
        %s2381 = sadd.s32 %s2379, %s2380
        %s2382 = smul.addr %s2381, 4
        %s2383 = scalar_lea.vmem %s4, %s2382
      $region48: #{wdsrnet_forward.10} parent=43 // pred_fallthru
        _
    $region44: #{wdsrnet_forward.10} parent=5 // pred_fallthru
      _
  $region6: #{wdsrnet_forward.10} parent=0 // loop_footer
    %s14 = sadd.s32 1, %s10
  $region7: #{wdsrnet_forward.10} parent=0 // loop_footer_branch
    %9 = sbr.rel target = $region3
  $region8: #{wdsrnet_forward.10} parent=0 // loop_exit
    _

</llo_original>
